<compile_context>
chip_gen: v7x
topology: tpu7x:2x2x1
jax: 0.10.0
libtpu: 0.0.40
codegen_flags: <defaults>
</compile_context>

<pallas_src>
import functools
import math

import jax
import jax.numpy as jnp
from jax import lax
from jax.experimental import pallas as pl
from jax.experimental.pallas import tpu as pltpu


def _conv_surface_kernel(dirs_ref, w_ref, out_ref, *, support_num, kernel_num,
                         chunk, compute_dtype):
    """Fused normalize -> (dir . support) -> ReLU -> max over n -> sum over s.

    dirs_ref : (1, 3, n, tv)  VMEM   (vertices on the lane axis)
    w_ref    : (3, support_num * kernel_num)  SMEM  (scalar reads)
    out_ref  : (1, kernel_num, tv)  VMEM
    """
    tv = dirs_ref.shape[-1]
    n_chunks = tv // chunk

    def chunk_body(c, carry):
        off = pl.multiple_of(c * chunk, 128)
        sl = pl.ds(off, chunk)

        x0 = dirs_ref[0, 0, :, sl].astype(jnp.float32)          # (n, chunk)
        x1 = dirs_ref[0, 1, :, sl].astype(jnp.float32)
        x2 = dirs_ref[0, 2, :, sl].astype(jnp.float32)

        # F.normalize(dim=-1): x / max(||x||, 1e-12) == x * rsqrt(max(||x||^2, 1e-24))
        sumsq = x0 * x0 + x1 * x1 + x2 * x2
        inv = lax.rsqrt(jnp.maximum(sumsq, 1e-24))               # EUP slot, ~free
        x0 = (x0 * inv).astype(compute_dtype)
        x1 = (x1 * inv).astype(compute_dtype)
        x2 = (x2 * inv).astype(compute_dtype)

        # Fused theta -> ReLU -> max over neighbors -> sum over supports.
        for k in range(kernel_num):
            acc = None
            for s in range(support_num):
                j = s * kernel_num + k
                w0 = w_ref[0, j].astype(compute_dtype)
                w1 = w_ref[1, j].astype(compute_dtype)
                w2 = w_ref[2, j].astype(compute_dtype)
                th = x0 * w0 + x1 * w1 + x2 * w2                 # (n, chunk)
                th = jnp.maximum(th, 0)                          # ReLU
                m = jnp.max(th, axis=0, keepdims=True)           # (1, chunk) max over n
                m = m.astype(jnp.float32)
                acc = m if acc is None else acc + m              # sum over supports
            # TODO(synk): batch 8 consecutive k rows into one (8, chunk) store if the
            # vst slot ever becomes binding (minor today; verify in the bundle first).
            out_ref[0, k:k + 1, sl] = acc.astype(out_ref.dtype)
        return carry

    lax.fori_loop(0, n_chunks, chunk_body, 0, unroll=True)


def _default_tile_v(v_pad, bs, *, cap=2048, min_steps=4):
    """Vertex tile: lane-dense, as large as useful, enough parallel grid steps."""
    tv = 128
    while tv * 2 <= cap and v_pad % (tv * 2) == 0:
        tv *= 2
    # v7x shards the parallel grid across 2 TensorCores: keep >= min_steps steps
    # and an even step count when possible (v5e/v6e are single-TC, unaffected).
    while tv > 128 and bs * (v_pad // tv) < min_steps:
        tv //= 2
    if tv > 128 and (bs * (v_pad // tv)) % 2 == 1:
        tv //= 2
    return tv


def conv_surface(neighbor_index, vertices, directions, *, support_num, kernel_num,
                 tile_v=None, use_bf16=False):
    """Forward pass of Conv_surface.

    neighbor_index: (bs, vertice_num, neighbor_num) int32
    vertices      : (bs, vertice_num, 3) float32
    directions    : (3, support_num * kernel_num) float32 (the nn.Parameter)
    returns       : (bs, vertice_num, kernel_num) float32
    """
    bs, v, n = neighbor_index.shape
    sk = support_num * kernel_num
    assert directions.shape == (3, sk)

    # F.normalize(self.directions, dim=0) -- tiny parameter glue.
    col_norm = jnp.sqrt(jnp.sum(directions * directions, axis=0, keepdims=True))
    w = (directions / jnp.maximum(col_norm, 1e-12)).astype(jnp.float32)

    # Build neighbor directions directly in the lane-dense (bs, 3, n, v) layout:
    # transpose the *small* tensors first, gather along the last (lane) axis,
    # subtract with broadcasting.  No transpose of the big tensor is materialized.
    verts_t = jnp.transpose(vertices, (0, 2, 1)).astype(jnp.float32)   # (bs, 3, v)
    idx_t = jnp.transpose(neighbor_index, (0, 2, 1))                   # (bs, n, v)

    # Pad the vertex axis up to a multiple of 128 so every tile is lane-dense.
    # Padded columns gather vertex 0; their outputs are sliced off below.
    v_pad = -(-v // 128) * 128
    if v_pad != v:
        verts_t = jnp.pad(verts_t, ((0, 0), (0, 0), (0, v_pad - v)))
        idx_t = jnp.pad(idx_t, ((0, 0), (0, 0), (0, v_pad - v)))

    # TODO(synk): only prototype an in-kernel gather (vertices resident as a (3, v)
    # VMEM block + neighbor_index via scalar prefetch) if the XLA gather + dirs_t
    # HBM round-trip measures as the bottleneck; in this lane-major layout the
    # gather runs along the lane axis and is not obviously cheaper in-kernel.
    neighbors_t = jax.vmap(lambda vt, it: vt[:, it])(verts_t, idx_t)   # (bs, 3, n, v_pad)
    dirs_t = neighbors_t - verts_t[:, :, None, :]                      # (bs, 3, n, v_pad)

    tv = tile_v if tile_v is not None else _default_tile_v(v_pad, bs)
    assert v_pad % tv == 0 and tv % 128 == 0
    chunk = min(tv, 512)   # inner lane-chunk bound on live vregs

    kernel = functools.partial(
        _conv_surface_kernel, support_num=support_num, kernel_num=kernel_num,
        chunk=chunk, compute_dtype=jnp.bfloat16 if use_bf16 else jnp.float32)

    cost = pl.CostEstimate(
        flops=bs * v_pad * n * (9 + 7 * sk),
        transcendentals=bs * v_pad * n,
        bytes_accessed=int(dirs_t.size) * 4 + bs * kernel_num * v_pad * 4 + 3 * sk * 4)

    out_t = pl.pallas_call(
        kernel,
        out_shape=jax.ShapeDtypeStruct((bs, kernel_num, v_pad), vertices.dtype),
        grid_spec=pltpu.PrefetchScalarGridSpec(
            num_scalar_prefetch=0,
            grid=(bs, v_pad // tv),
            in_specs=[
                pl.BlockSpec((1, 3, n, tv), lambda b, i: (b, 0, 0, i)),
                pl.BlockSpec(memory_space=pltpu.MemorySpace.SMEM),   # w: scalar reads
            ],
            out_specs=pl.BlockSpec((1, kernel_num, tv), lambda b, i: (b, 0, i)),
        ),
        compiler_params=pltpu.CompilerParams(
            dimension_semantics=("parallel", "parallel")),
        cost_estimate=cost,
    )(dirs_t, w)

    out = jnp.transpose(out_t, (0, 2, 1))       # (bs, v_pad, kernel_num) -- small
    return out[:, :v, :]


def _reference(neighbor_index, vertices, directions, *, support_num, kernel_num):
    """Pure-JAX reference mirroring the PyTorch forward."""
    bs, v, n = neighbor_index.shape
    neighbors = jax.vmap(lambda verts, idx: verts[idx])(vertices, neighbor_index)
    nd = neighbors - vertices[:, :, None, :]
    nd_norm = nd / jnp.maximum(
        jnp.sqrt(jnp.sum(nd * nd, axis=-1, keepdims=True)), 1e-12)
    w = directions / jnp.maximum(
        jnp.sqrt(jnp.sum(directions * directions, axis=0, keepdims=True)), 1e-12)
    theta = nd_norm @ w                                  # (bs, v, n, s*k)
    theta = jnp.maximum(theta, 0.0)
    theta = theta.reshape(bs, v, n, support_num, kernel_num)
    theta = jnp.max(theta, axis=2)                       # (bs, v, s, k)
    return jnp.sum(theta, axis=2)                        # (bs, v, k)


if __name__ == "__main__":
    # Small shapes consistent with the module's forward.
    bs, v, n = 2, 256, 8
    support_num, kernel_num = 3, 32

    key = jax.random.PRNGKey(0)
    k_vert, k_idx, k_dir = jax.random.split(key, 3)

    vertices = jax.random.normal(k_vert, (bs, v, 3), dtype=jnp.float32)
    neighbor_index = jax.random.randint(k_idx, (bs, v, n), 0, v, dtype=jnp.int32)

    # Deterministic parameter init matching Conv_surface.initialize():
    # uniform(-stdv, stdv), stdv = 1 / sqrt(support_num * kernel_num)
    stdv = 1.0 / math.sqrt(support_num * kernel_num)
    directions = jax.random.uniform(
        k_dir, (3, support_num * kernel_num), minval=-stdv, maxval=stdv,
        dtype=jnp.float32)

    out = conv_surface(neighbor_index, vertices, directions,
                       support_num=support_num, kernel_num=kernel_num)
    out = jax.block_until_ready(out)

    ref = _reference(neighbor_index, vertices, directions,
                     support_num=support_num, kernel_num=kernel_num)

    assert out.shape == (bs, v, kernel_num)
    assert jnp.allclose(out, ref, atol=2e-5, rtol=2e-5)
    print("KERNEL_OK")
</pallas_src>

<mosaic_0001>
module attributes {stable_mosaic.version = 11 : i64} {
  func.func @_conv_surface_kernel(%arg0: i32, %arg1: i32, %arg2: memref<1x3x8x128xf32, #tpu.memory_space<vmem>>, %arg3: memref<3x96xf32, #tpu.memory_space<smem>>, %arg4: memref<1x32x128xf32, #tpu.memory_space<vmem>>) attributes {dimension_semantics = [#tpu.dimension_semantics<parallel>, #tpu.dimension_semantics<parallel>], iteration_bounds = array<i64: 2, 2>, scalar_prefetch = 0 : i64, scratch_operands = 0 : i64, tpu.core_type = #tpu.core_type<tc>, window_params = [{transform_indices = @transform_0, window_bounds = array<i64: 1, 3, 8, 128>}, {transform_indices = @transform_1, window_bounds = array<i64: 3, 96>}, {transform_indices = @transform_2, window_bounds = array<i64: 1, 32, 128>}]} {
    %c0_i32 = arith.constant 0 : i32
    %c128_i32 = arith.constant 128 : i32
    %0 = arith.muli %c0_i32, %c128_i32 : i32
    %1 = tpu.assume_multiple %0, 128 : i32
    %c0 = arith.constant 0 : index
    %c0_0 = arith.constant 0 : index
    %c0_1 = arith.constant 0 : index
    %2 = arith.index_cast %1 : i32 to index
    %3 = vector.load %arg2[%c0, %c0_0, %c0_1, %2] : memref<1x3x8x128xf32, #tpu.memory_space<vmem>>, vector<1x1x8x128xf32>
    %4 = vector.shape_cast %3 : vector<1x1x8x128xf32> to vector<8x128xf32>
    %c0_2 = arith.constant 0 : index
    %c1 = arith.constant 1 : index
    %c0_3 = arith.constant 0 : index
    %5 = arith.index_cast %1 : i32 to index
    %6 = vector.load %arg2[%c0_2, %c1, %c0_3, %5] : memref<1x3x8x128xf32, #tpu.memory_space<vmem>>, vector<1x1x8x128xf32>
    %7 = vector.shape_cast %6 : vector<1x1x8x128xf32> to vector<8x128xf32>
    %c0_4 = arith.constant 0 : index
    %c2 = arith.constant 2 : index
    %c0_5 = arith.constant 0 : index
    %8 = arith.index_cast %1 : i32 to index
    %9 = vector.load %arg2[%c0_4, %c2, %c0_5, %8] : memref<1x3x8x128xf32, #tpu.memory_space<vmem>>, vector<1x1x8x128xf32>
    %10 = vector.shape_cast %9 : vector<1x1x8x128xf32> to vector<8x128xf32>
    %11 = arith.mulf %4, %4 : vector<8x128xf32>
    %12 = arith.mulf %7, %7 : vector<8x128xf32>
    %13 = arith.addf %11, %12 : vector<8x128xf32>
    %14 = arith.mulf %10, %10 : vector<8x128xf32>
    %15 = arith.addf %13, %14 : vector<8x128xf32>
    %cst = arith.constant 1.000000e-24 : f32
    %16 = vector.broadcast %cst : f32 to vector<8x128xf32>
    %17 = arith.maximumf %15, %16 : vector<8x128xf32>
    %18 = math.rsqrt %17 : vector<8x128xf32>
    %19 = arith.mulf %4, %18 : vector<8x128xf32>
    %20 = arith.mulf %7, %18 : vector<8x128xf32>
    %21 = arith.mulf %10, %18 : vector<8x128xf32>
    %c0_6 = arith.constant 0 : index
    %c0_7 = arith.constant 0 : index
    %22 = memref.load %arg3[%c0_6, %c0_7] : memref<3x96xf32, #tpu.memory_space<smem>>
    %c1_8 = arith.constant 1 : index
    %c0_9 = arith.constant 0 : index
    %23 = memref.load %arg3[%c1_8, %c0_9] : memref<3x96xf32, #tpu.memory_space<smem>>
    %c2_10 = arith.constant 2 : index
    %c0_11 = arith.constant 0 : index
    %24 = memref.load %arg3[%c2_10, %c0_11] : memref<3x96xf32, #tpu.memory_space<smem>>
    %25 = vector.broadcast %22 : f32 to vector<8x128xf32>
    %26 = arith.mulf %19, %25 : vector<8x128xf32>
    %27 = vector.broadcast %23 : f32 to vector<8x128xf32>
    %28 = arith.mulf %20, %27 : vector<8x128xf32>
    %29 = arith.addf %26, %28 : vector<8x128xf32>
    %30 = vector.broadcast %24 : f32 to vector<8x128xf32>
    %31 = arith.mulf %21, %30 : vector<8x128xf32>
    %32 = arith.addf %29, %31 : vector<8x128xf32>
    %cst_12 = arith.constant 0.000000e+00 : f32
    %33 = vector.broadcast %cst_12 : f32 to vector<8x128xf32>
    %34 = arith.maximumf %32, %33 : vector<8x128xf32>
    %cst_13 = arith.constant dense<0xFF800000> : vector<128xf32>
    %35 = vector.multi_reduction <maximumf>, %34, %cst_13 [0] : vector<8x128xf32> to vector<128xf32>
    %36 = vector.shape_cast %35 : vector<128xf32> to vector<1x128xf32>
    %c0_14 = arith.constant 0 : index
    %c32 = arith.constant 32 : index
    %37 = memref.load %arg3[%c0_14, %c32] : memref<3x96xf32, #tpu.memory_space<smem>>
    %c1_15 = arith.constant 1 : index
    %c32_16 = arith.constant 32 : index
    %38 = memref.load %arg3[%c1_15, %c32_16] : memref<3x96xf32, #tpu.memory_space<smem>>
    %c2_17 = arith.constant 2 : index
    %c32_18 = arith.constant 32 : index
    %39 = memref.load %arg3[%c2_17, %c32_18] : memref<3x96xf32, #tpu.memory_space<smem>>
    %40 = vector.broadcast %37 : f32 to vector<8x128xf32>
    %41 = arith.mulf %19, %40 : vector<8x128xf32>
    %42 = vector.broadcast %38 : f32 to vector<8x128xf32>
    %43 = arith.mulf %20, %42 : vector<8x128xf32>
    %44 = arith.addf %41, %43 : vector<8x128xf32>
    %45 = vector.broadcast %39 : f32 to vector<8x128xf32>
    %46 = arith.mulf %21, %45 : vector<8x128xf32>
    %47 = arith.addf %44, %46 : vector<8x128xf32>
    %cst_19 = arith.constant 0.000000e+00 : f32
    %48 = vector.broadcast %cst_19 : f32 to vector<8x128xf32>
    %49 = arith.maximumf %47, %48 : vector<8x128xf32>
    %cst_20 = arith.constant dense<0xFF800000> : vector<128xf32>
    %50 = vector.multi_reduction <maximumf>, %49, %cst_20 [0] : vector<8x128xf32> to vector<128xf32>
    %51 = vector.shape_cast %50 : vector<128xf32> to vector<1x128xf32>
    %52 = arith.addf %36, %51 : vector<1x128xf32>
    %c0_21 = arith.constant 0 : index
    %c64 = arith.constant 64 : index
    %53 = memref.load %arg3[%c0_21, %c64] : memref<3x96xf32, #tpu.memory_space<smem>>
    %c1_22 = arith.constant 1 : index
    %c64_23 = arith.constant 64 : index
    %54 = memref.load %arg3[%c1_22, %c64_23] : memref<3x96xf32, #tpu.memory_space<smem>>
    %c2_24 = arith.constant 2 : index
    %c64_25 = arith.constant 64 : index
    %55 = memref.load %arg3[%c2_24, %c64_25] : memref<3x96xf32, #tpu.memory_space<smem>>
    %56 = vector.broadcast %53 : f32 to vector<8x128xf32>
    %57 = arith.mulf %19, %56 : vector<8x128xf32>
    %58 = vector.broadcast %54 : f32 to vector<8x128xf32>
    %59 = arith.mulf %20, %58 : vector<8x128xf32>
    %60 = arith.addf %57, %59 : vector<8x128xf32>
    %61 = vector.broadcast %55 : f32 to vector<8x128xf32>
    %62 = arith.mulf %21, %61 : vector<8x128xf32>
    %63 = arith.addf %60, %62 : vector<8x128xf32>
    %cst_26 = arith.constant 0.000000e+00 : f32
    %64 = vector.broadcast %cst_26 : f32 to vector<8x128xf32>
    %65 = arith.maximumf %63, %64 : vector<8x128xf32>
    %cst_27 = arith.constant dense<0xFF800000> : vector<128xf32>
    %66 = vector.multi_reduction <maximumf>, %65, %cst_27 [0] : vector<8x128xf32> to vector<128xf32>
    %67 = vector.shape_cast %66 : vector<128xf32> to vector<1x128xf32>
    %68 = arith.addf %52, %67 : vector<1x128xf32>
    %c0_28 = arith.constant 0 : index
    %c0_29 = arith.constant 0 : index
    %69 = arith.index_cast %1 : i32 to index
    %70 = vector.load %arg4[%c0_28, %c0_29, %69] : memref<1x32x128xf32, #tpu.memory_space<vmem>>, vector<1x1x128xf32>
    %71 = vector.shape_cast %70 : vector<1x1x128xf32> to vector<1x128xf32>
    %72 = vector.shape_cast %68 : vector<1x128xf32> to vector<1x1x128xf32>
    tpu.vector_store %arg4[%c0_28, %c0_29, %69], %72 {strides = array<i32>} : memref<1x32x128xf32, #tpu.memory_space<vmem>>, vector<1x1x128xf32>,
    %c0_30 = arith.constant 0 : index
    %c1_31 = arith.constant 1 : index
    %73 = memref.load %arg3[%c0_30, %c1_31] : memref<3x96xf32, #tpu.memory_space<smem>>
    %c1_32 = arith.constant 1 : index
    %c1_33 = arith.constant 1 : index
    %74 = memref.load %arg3[%c1_32, %c1_33] : memref<3x96xf32, #tpu.memory_space<smem>>
    %c2_34 = arith.constant 2 : index
    %c1_35 = arith.constant 1 : index
    %75 = memref.load %arg3[%c2_34, %c1_35] : memref<3x96xf32, #tpu.memory_space<smem>>
    %76 = vector.broadcast %73 : f32 to vector<8x128xf32>
    %77 = arith.mulf %19, %76 : vector<8x128xf32>
    %78 = vector.broadcast %74 : f32 to vector<8x128xf32>
    %79 = arith.mulf %20, %78 : vector<8x128xf32>
    %80 = arith.addf %77, %79 : vector<8x128xf32>
    %81 = vector.broadcast %75 : f32 to vector<8x128xf32>
    %82 = arith.mulf %21, %81 : vector<8x128xf32>
    %83 = arith.addf %80, %82 : vector<8x128xf32>
    %cst_36 = arith.constant 0.000000e+00 : f32
    %84 = vector.broadcast %cst_36 : f32 to vector<8x128xf32>
    %85 = arith.maximumf %83, %84 : vector<8x128xf32>
    %cst_37 = arith.constant dense<0xFF800000> : vector<128xf32>
    %86 = vector.multi_reduction <maximumf>, %85, %cst_37 [0] : vector<8x128xf32> to vector<128xf32>
    %87 = vector.shape_cast %86 : vector<128xf32> to vector<1x128xf32>
    %c0_38 = arith.constant 0 : index
    %c33 = arith.constant 33 : index
    %88 = memref.load %arg3[%c0_38, %c33] : memref<3x96xf32, #tpu.memory_space<smem>>
    %c1_39 = arith.constant 1 : index
    %c33_40 = arith.constant 33 : index
    %89 = memref.load %arg3[%c1_39, %c33_40] : memref<3x96xf32, #tpu.memory_space<smem>>
    %c2_41 = arith.constant 2 : index
    %c33_42 = arith.constant 33 : index
    %90 = memref.load %arg3[%c2_41, %c33_42] : memref<3x96xf32, #tpu.memory_space<smem>>
    %91 = vector.broadcast %88 : f32 to vector<8x128xf32>
    %92 = arith.mulf %19, %91 : vector<8x128xf32>
    %93 = vector.broadcast %89 : f32 to vector<8x128xf32>
    %94 = arith.mulf %20, %93 : vector<8x128xf32>
    %95 = arith.addf %92, %94 : vector<8x128xf32>
    %96 = vector.broadcast %90 : f32 to vector<8x128xf32>
    %97 = arith.mulf %21, %96 : vector<8x128xf32>
    %98 = arith.addf %95, %97 : vector<8x128xf32>
    %cst_43 = arith.constant 0.000000e+00 : f32
    %99 = vector.broadcast %cst_43 : f32 to vector<8x128xf32>
    %100 = arith.maximumf %98, %99 : vector<8x128xf32>
    %cst_44 = arith.constant dense<0xFF800000> : vector<128xf32>
    %101 = vector.multi_reduction <maximumf>, %100, %cst_44 [0] : vector<8x128xf32> to vector<128xf32>
    %102 = vector.shape_cast %101 : vector<128xf32> to vector<1x128xf32>
    %103 = arith.addf %87, %102 : vector<1x128xf32>
    %c0_45 = arith.constant 0 : index
    %c65 = arith.constant 65 : index
    %104 = memref.load %arg3[%c0_45, %c65] : memref<3x96xf32, #tpu.memory_space<smem>>
    %c1_46 = arith.constant 1 : index
    %c65_47 = arith.constant 65 : index
    %105 = memref.load %arg3[%c1_46, %c65_47] : memref<3x96xf32, #tpu.memory_space<smem>>
    %c2_48 = arith.constant 2 : index
    %c65_49 = arith.constant 65 : index
    %106 = memref.load %arg3[%c2_48, %c65_49] : memref<3x96xf32, #tpu.memory_space<smem>>
    %107 = vector.broadcast %104 : f32 to vector<8x128xf32>
    %108 = arith.mulf %19, %107 : vector<8x128xf32>
    %109 = vector.broadcast %105 : f32 to vector<8x128xf32>
    %110 = arith.mulf %20, %109 : vector<8x128xf32>
    %111 = arith.addf %108, %110 : vector<8x128xf32>
    %112 = vector.broadcast %106 : f32 to vector<8x128xf32>
    %113 = arith.mulf %21, %112 : vector<8x128xf32>
    %114 = arith.addf %111, %113 : vector<8x128xf32>
    %cst_50 = arith.constant 0.000000e+00 : f32
    %115 = vector.broadcast %cst_50 : f32 to vector<8x128xf32>
    %116 = arith.maximumf %114, %115 : vector<8x128xf32>
    %cst_51 = arith.constant dense<0xFF800000> : vector<128xf32>
    %117 = vector.multi_reduction <maximumf>, %116, %cst_51 [0] : vector<8x128xf32> to vector<128xf32>
    %118 = vector.shape_cast %117 : vector<128xf32> to vector<1x128xf32>
    %119 = arith.addf %103, %118 : vector<1x128xf32>
    %c0_52 = arith.constant 0 : index
    %c1_53 = arith.constant 1 : index
    %120 = arith.index_cast %1 : i32 to index
    %121 = vector.load %arg4[%c0_52, %c1_53, %120] : memref<1x32x128xf32, #tpu.memory_space<vmem>>, vector<1x1x128xf32>
    %122 = vector.shape_cast %121 : vector<1x1x128xf32> to vector<1x128xf32>
    %123 = vector.shape_cast %119 : vector<1x128xf32> to vector<1x1x128xf32>
    tpu.vector_store %arg4[%c0_52, %c1_53, %120], %123 {strides = array<i32>} : memref<1x32x128xf32, #tpu.memory_space<vmem>>, vector<1x1x128xf32>,
    %c0_54 = arith.constant 0 : index
    %c2_55 = arith.constant 2 : index
    %124 = memref.load %arg3[%c0_54, %c2_55] : memref<3x96xf32, #tpu.memory_space<smem>>
    %c1_56 = arith.constant 1 : index
    %c2_57 = arith.constant 2 : index
    %125 = memref.load %arg3[%c1_56, %c2_57] : memref<3x96xf32, #tpu.memory_space<smem>>
    %c2_58 = arith.constant 2 : index
    %c2_59 = arith.constant 2 : index
    %126 = memref.load %arg3[%c2_58, %c2_59] : memref<3x96xf32, #tpu.memory_space<smem>>
    %127 = vector.broadcast %124 : f32 to vector<8x128xf32>
    %128 = arith.mulf %19, %127 : vector<8x128xf32>
    %129 = vector.broadcast %125 : f32 to vector<8x128xf32>
    %130 = arith.mulf %20, %129 : vector<8x128xf32>
    %131 = arith.addf %128, %130 : vector<8x128xf32>
    %132 = vector.broadcast %126 : f32 to vector<8x128xf32>
    %133 = arith.mulf %21, %132 : vector<8x128xf32>
    %134 = arith.addf %131, %133 : vector<8x128xf32>
    %cst_60 = arith.constant 0.000000e+00 : f32
    %135 = vector.broadcast %cst_60 : f32 to vector<8x128xf32>
    %136 = arith.maximumf %134, %135 : vector<8x128xf32>
    %cst_61 = arith.constant dense<0xFF800000> : vector<128xf32>
    %137 = vector.multi_reduction <maximumf>, %136, %cst_61 [0] : vector<8x128xf32> to vector<128xf32>
    %138 = vector.shape_cast %137 : vector<128xf32> to vector<1x128xf32>
    %c0_62 = arith.constant 0 : index
    %c34 = arith.constant 34 : index
    %139 = memref.load %arg3[%c0_62, %c34] : memref<3x96xf32, #tpu.memory_space<smem>>
    %c1_63 = arith.constant 1 : index
    %c34_64 = arith.constant 34 : index
    %140 = memref.load %arg3[%c1_63, %c34_64] : memref<3x96xf32, #tpu.memory_space<smem>>
    %c2_65 = arith.constant 2 : index
    %c34_66 = arith.constant 34 : index
    %141 = memref.load %arg3[%c2_65, %c34_66] : memref<3x96xf32, #tpu.memory_space<smem>>
    %142 = vector.broadcast %139 : f32 to vector<8x128xf32>
    %143 = arith.mulf %19, %142 : vector<8x128xf32>
    %144 = vector.broadcast %140 : f32 to vector<8x128xf32>
    %145 = arith.mulf %20, %144 : vector<8x128xf32>
    %146 = arith.addf %143, %145 : vector<8x128xf32>
    %147 = vector.broadcast %141 : f32 to vector<8x128xf32>
    %148 = arith.mulf %21, %147 : vector<8x128xf32>
    %149 = arith.addf %146, %148 : vector<8x128xf32>
    %cst_67 = arith.constant 0.000000e+00 : f32
    %150 = vector.broadcast %cst_67 : f32 to vector<8x128xf32>
    %151 = arith.maximumf %149, %150 : vector<8x128xf32>
    %cst_68 = arith.constant dense<0xFF800000> : vector<128xf32>
    %152 = vector.multi_reduction <maximumf>, %151, %cst_68 [0] : vector<8x128xf32> to vector<128xf32>
    %153 = vector.shape_cast %152 : vector<128xf32> to vector<1x128xf32>
    %154 = arith.addf %138, %153 : vector<1x128xf32>
    %c0_69 = arith.constant 0 : index
    %c66 = arith.constant 66 : index
    %155 = memref.load %arg3[%c0_69, %c66] : memref<3x96xf32, #tpu.memory_space<smem>>
    %c1_70 = arith.constant 1 : index
    %c66_71 = arith.constant 66 : index
    %156 = memref.load %arg3[%c1_70, %c66_71] : memref<3x96xf32, #tpu.memory_space<smem>>
    %c2_72 = arith.constant 2 : index
    %c66_73 = arith.constant 66 : index
    %157 = memref.load %arg3[%c2_72, %c66_73] : memref<3x96xf32, #tpu.memory_space<smem>>
    %158 = vector.broadcast %155 : f32 to vector<8x128xf32>
    %159 = arith.mulf %19, %158 : vector<8x128xf32>
    %160 = vector.broadcast %156 : f32 to vector<8x128xf32>
    %161 = arith.mulf %20, %160 : vector<8x128xf32>
    %162 = arith.addf %159, %161 : vector<8x128xf32>
    %163 = vector.broadcast %157 : f32 to vector<8x128xf32>
    %164 = arith.mulf %21, %163 : vector<8x128xf32>
    %165 = arith.addf %162, %164 : vector<8x128xf32>
    %cst_74 = arith.constant 0.000000e+00 : f32
    %166 = vector.broadcast %cst_74 : f32 to vector<8x128xf32>
    %167 = arith.maximumf %165, %166 : vector<8x128xf32>
    %cst_75 = arith.constant dense<0xFF800000> : vector<128xf32>
    %168 = vector.multi_reduction <maximumf>, %167, %cst_75 [0] : vector<8x128xf32> to vector<128xf32>
    %169 = vector.shape_cast %168 : vector<128xf32> to vector<1x128xf32>
    %170 = arith.addf %154, %169 : vector<1x128xf32>
    %c0_76 = arith.constant 0 : index
    %c2_77 = arith.constant 2 : index
    %171 = arith.index_cast %1 : i32 to index
    %172 = vector.load %arg4[%c0_76, %c2_77, %171] : memref<1x32x128xf32, #tpu.memory_space<vmem>>, vector<1x1x128xf32>
    %173 = vector.shape_cast %172 : vector<1x1x128xf32> to vector<1x128xf32>
    %174 = vector.shape_cast %170 : vector<1x128xf32> to vector<1x1x128xf32>
    tpu.vector_store %arg4[%c0_76, %c2_77, %171], %174 {strides = array<i32>} : memref<1x32x128xf32, #tpu.memory_space<vmem>>, vector<1x1x128xf32>,
    %c0_78 = arith.constant 0 : index
    %c3 = arith.constant 3 : index
    %175 = memref.load %arg3[%c0_78, %c3] : memref<3x96xf32, #tpu.memory_space<smem>>
    %c1_79 = arith.constant 1 : index
    %c3_80 = arith.constant 3 : index
    %176 = memref.load %arg3[%c1_79, %c3_80] : memref<3x96xf32, #tpu.memory_space<smem>>
    %c2_81 = arith.constant 2 : index
    %c3_82 = arith.constant 3 : index
    %177 = memref.load %arg3[%c2_81, %c3_82] : memref<3x96xf32, #tpu.memory_space<smem>>
    %178 = vector.broadcast %175 : f32 to vector<8x128xf32>
    %179 = arith.mulf %19, %178 : vector<8x128xf32>
    %180 = vector.broadcast %176 : f32 to vector<8x128xf32>
    %181 = arith.mulf %20, %180 : vector<8x128xf32>
    %182 = arith.addf %179, %181 : vector<8x128xf32>
    %183 = vector.broadcast %177 : f32 to vector<8x128xf32>
    %184 = arith.mulf %21, %183 : vector<8x128xf32>
    %185 = arith.addf %182, %184 : vector<8x128xf32>
    %cst_83 = arith.constant 0.000000e+00 : f32
    %186 = vector.broadcast %cst_83 : f32 to vector<8x128xf32>
    %187 = arith.maximumf %185, %186 : vector<8x128xf32>
    %cst_84 = arith.constant dense<0xFF800000> : vector<128xf32>
    %188 = vector.multi_reduction <maximumf>, %187, %cst_84 [0] : vector<8x128xf32> to vector<128xf32>
    %189 = vector.shape_cast %188 : vector<128xf32> to vector<1x128xf32>
    %c0_85 = arith.constant 0 : index
    %c35 = arith.constant 35 : index
    %190 = memref.load %arg3[%c0_85, %c35] : memref<3x96xf32, #tpu.memory_space<smem>>
    %c1_86 = arith.constant 1 : index
    %c35_87 = arith.constant 35 : index
    %191 = memref.load %arg3[%c1_86, %c35_87] : memref<3x96xf32, #tpu.memory_space<smem>>
    %c2_88 = arith.constant 2 : index
    %c35_89 = arith.constant 35 : index
    %192 = memref.load %arg3[%c2_88, %c35_89] : memref<3x96xf32, #tpu.memory_space<smem>>
    %193 = vector.broadcast %190 : f32 to vector<8x128xf32>
    %194 = arith.mulf %19, %193 : vector<8x128xf32>
    %195 = vector.broadcast %191 : f32 to vector<8x128xf32>
    %196 = arith.mulf %20, %195 : vector<8x128xf32>
    %197 = arith.addf %194, %196 : vector<8x128xf32>
    %198 = vector.broadcast %192 : f32 to vector<8x128xf32>
    %199 = arith.mulf %21, %198 : vector<8x128xf32>
    %200 = arith.addf %197, %199 : vector<8x128xf32>
    %cst_90 = arith.constant 0.000000e+00 : f32
    %201 = vector.broadcast %cst_90 : f32 to vector<8x128xf32>
    %202 = arith.maximumf %200, %201 : vector<8x128xf32>
    %cst_91 = arith.constant dense<0xFF800000> : vector<128xf32>
    %203 = vector.multi_reduction <maximumf>, %202, %cst_91 [0] : vector<8x128xf32> to vector<128xf32>
    %204 = vector.shape_cast %203 : vector<128xf32> to vector<1x128xf32>
    %205 = arith.addf %189, %204 : vector<1x128xf32>
    %c0_92 = arith.constant 0 : index
    %c67 = arith.constant 67 : index
    %206 = memref.load %arg3[%c0_92, %c67] : memref<3x96xf32, #tpu.memory_space<smem>>
    %c1_93 = arith.constant 1 : index
    %c67_94 = arith.constant 67 : index
    %207 = memref.load %arg3[%c1_93, %c67_94] : memref<3x96xf32, #tpu.memory_space<smem>>
    %c2_95 = arith.constant 2 : index
    %c67_96 = arith.constant 67 : index
    %208 = memref.load %arg3[%c2_95, %c67_96] : memref<3x96xf32, #tpu.memory_space<smem>>
    %209 = vector.broadcast %206 : f32 to vector<8x128xf32>
    %210 = arith.mulf %19, %209 : vector<8x128xf32>
    %211 = vector.broadcast %207 : f32 to vector<8x128xf32>
    %212 = arith.mulf %20, %211 : vector<8x128xf32>
    %213 = arith.addf %210, %212 : vector<8x128xf32>
    %214 = vector.broadcast %208 : f32 to vector<8x128xf32>
    %215 = arith.mulf %21, %214 : vector<8x128xf32>
    %216 = arith.addf %213, %215 : vector<8x128xf32>
    %cst_97 = arith.constant 0.000000e+00 : f32
    %217 = vector.broadcast %cst_97 : f32 to vector<8x128xf32>
    %218 = arith.maximumf %216, %217 : vector<8x128xf32>
    %cst_98 = arith.constant dense<0xFF800000> : vector<128xf32>
    %219 = vector.multi_reduction <maximumf>, %218, %cst_98 [0] : vector<8x128xf32> to vector<128xf32>
    %220 = vector.shape_cast %219 : vector<128xf32> to vector<1x128xf32>
    %221 = arith.addf %205, %220 : vector<1x128xf32>
    %c0_99 = arith.constant 0 : index
    %c3_100 = arith.constant 3 : index
    %222 = arith.index_cast %1 : i32 to index
    %223 = vector.load %arg4[%c0_99, %c3_100, %222] : memref<1x32x128xf32, #tpu.memory_space<vmem>>, vector<1x1x128xf32>
    %224 = vector.shape_cast %223 : vector<1x1x128xf32> to vector<1x128xf32>
    %225 = vector.shape_cast %221 : vector<1x128xf32> to vector<1x1x128xf32>
    tpu.vector_store %arg4[%c0_99, %c3_100, %222], %225 {strides = array<i32>} : memref<1x32x128xf32, #tpu.memory_space<vmem>>, vector<1x1x128xf32>,
    %c0_101 = arith.constant 0 : index
    %c4 = arith.constant 4 : index
    %226 = memref.load %arg3[%c0_101, %c4] : memref<3x96xf32, #tpu.memory_space<smem>>
    %c1_102 = arith.constant 1 : index
    %c4_103 = arith.constant 4 : index
    %227 = memref.load %arg3[%c1_102, %c4_103] : memref<3x96xf32, #tpu.memory_space<smem>>
    %c2_104 = arith.constant 2 : index
    %c4_105 = arith.constant 4 : index
    %228 = memref.load %arg3[%c2_104, %c4_105] : memref<3x96xf32, #tpu.memory_space<smem>>
    %229 = vector.broadcast %226 : f32 to vector<8x128xf32>
    %230 = arith.mulf %19, %229 : vector<8x128xf32>
    %231 = vector.broadcast %227 : f32 to vector<8x128xf32>
    %232 = arith.mulf %20, %231 : vector<8x128xf32>
    %233 = arith.addf %230, %232 : vector<8x128xf32>
    %234 = vector.broadcast %228 : f32 to vector<8x128xf32>
    %235 = arith.mulf %21, %234 : vector<8x128xf32>
    %236 = arith.addf %233, %235 : vector<8x128xf32>
    %cst_106 = arith.constant 0.000000e+00 : f32
    %237 = vector.broadcast %cst_106 : f32 to vector<8x128xf32>
    %238 = arith.maximumf %236, %237 : vector<8x128xf32>
    %cst_107 = arith.constant dense<0xFF800000> : vector<128xf32>
    %239 = vector.multi_reduction <maximumf>, %238, %cst_107 [0] : vector<8x128xf32> to vector<128xf32>
    %240 = vector.shape_cast %239 : vector<128xf32> to vector<1x128xf32>
    %c0_108 = arith.constant 0 : index
    %c36 = arith.constant 36 : index
    %241 = memref.load %arg3[%c0_108, %c36] : memref<3x96xf32, #tpu.memory_space<smem>>
    %c1_109 = arith.constant 1 : index
    %c36_110 = arith.constant 36 : index
    %242 = memref.load %arg3[%c1_109, %c36_110] : memref<3x96xf32, #tpu.memory_space<smem>>
    %c2_111 = arith.constant 2 : index
    %c36_112 = arith.constant 36 : index
    %243 = memref.load %arg3[%c2_111, %c36_112] : memref<3x96xf32, #tpu.memory_space<smem>>
    %244 = vector.broadcast %241 : f32 to vector<8x128xf32>
    %245 = arith.mulf %19, %244 : vector<8x128xf32>
    %246 = vector.broadcast %242 : f32 to vector<8x128xf32>
    %247 = arith.mulf %20, %246 : vector<8x128xf32>
    %248 = arith.addf %245, %247 : vector<8x128xf32>
    %249 = vector.broadcast %243 : f32 to vector<8x128xf32>
    %250 = arith.mulf %21, %249 : vector<8x128xf32>
    %251 = arith.addf %248, %250 : vector<8x128xf32>
    %cst_113 = arith.constant 0.000000e+00 : f32
    %252 = vector.broadcast %cst_113 : f32 to vector<8x128xf32>
    %253 = arith.maximumf %251, %252 : vector<8x128xf32>
    %cst_114 = arith.constant dense<0xFF800000> : vector<128xf32>
    %254 = vector.multi_reduction <maximumf>, %253, %cst_114 [0] : vector<8x128xf32> to vector<128xf32>
    %255 = vector.shape_cast %254 : vector<128xf32> to vector<1x128xf32>
    %256 = arith.addf %240, %255 : vector<1x128xf32>
    %c0_115 = arith.constant 0 : index
    %c68 = arith.constant 68 : index
    %257 = memref.load %arg3[%c0_115, %c68] : memref<3x96xf32, #tpu.memory_space<smem>>
    %c1_116 = arith.constant 1 : index
    %c68_117 = arith.constant 68 : index
    %258 = memref.load %arg3[%c1_116, %c68_117] : memref<3x96xf32, #tpu.memory_space<smem>>
    %c2_118 = arith.constant 2 : index
    %c68_119 = arith.constant 68 : index
    %259 = memref.load %arg3[%c2_118, %c68_119] : memref<3x96xf32, #tpu.memory_space<smem>>
    %260 = vector.broadcast %257 : f32 to vector<8x128xf32>
    %261 = arith.mulf %19, %260 : vector<8x128xf32>
    %262 = vector.broadcast %258 : f32 to vector<8x128xf32>
    %263 = arith.mulf %20, %262 : vector<8x128xf32>
    %264 = arith.addf %261, %263 : vector<8x128xf32>
    %265 = vector.broadcast %259 : f32 to vector<8x128xf32>
    %266 = arith.mulf %21, %265 : vector<8x128xf32>
    %267 = arith.addf %264, %266 : vector<8x128xf32>
    %cst_120 = arith.constant 0.000000e+00 : f32
    %268 = vector.broadcast %cst_120 : f32 to vector<8x128xf32>
    %269 = arith.maximumf %267, %268 : vector<8x128xf32>
    %cst_121 = arith.constant dense<0xFF800000> : vector<128xf32>
    %270 = vector.multi_reduction <maximumf>, %269, %cst_121 [0] : vector<8x128xf32> to vector<128xf32>
    %271 = vector.shape_cast %270 : vector<128xf32> to vector<1x128xf32>
    %272 = arith.addf %256, %271 : vector<1x128xf32>
    %c0_122 = arith.constant 0 : index
    %c4_123 = arith.constant 4 : index
    %273 = arith.index_cast %1 : i32 to index
    %274 = vector.load %arg4[%c0_122, %c4_123, %273] : memref<1x32x128xf32, #tpu.memory_space<vmem>>, vector<1x1x128xf32>
    %275 = vector.shape_cast %274 : vector<1x1x128xf32> to vector<1x128xf32>
    %276 = vector.shape_cast %272 : vector<1x128xf32> to vector<1x1x128xf32>
    tpu.vector_store %arg4[%c0_122, %c4_123, %273], %276 {strides = array<i32>} : memref<1x32x128xf32, #tpu.memory_space<vmem>>, vector<1x1x128xf32>,
    %c0_124 = arith.constant 0 : index
    %c5 = arith.constant 5 : index
    %277 = memref.load %arg3[%c0_124, %c5] : memref<3x96xf32, #tpu.memory_space<smem>>
    %c1_125 = arith.constant 1 : index
    %c5_126 = arith.constant 5 : index
    %278 = memref.load %arg3[%c1_125, %c5_126] : memref<3x96xf32, #tpu.memory_space<smem>>
    %c2_127 = arith.constant 2 : index
    %c5_128 = arith.constant 5 : index
    %279 = memref.load %arg3[%c2_127, %c5_128] : memref<3x96xf32, #tpu.memory_space<smem>>
    %280 = vector.broadcast %277 : f32 to vector<8x128xf32>
    %281 = arith.mulf %19, %280 : vector<8x128xf32>
    %282 = vector.broadcast %278 : f32 to vector<8x128xf32>
    %283 = arith.mulf %20, %282 : vector<8x128xf32>
    %284 = arith.addf %281, %283 : vector<8x128xf32>
    %285 = vector.broadcast %279 : f32 to vector<8x128xf32>
    %286 = arith.mulf %21, %285 : vector<8x128xf32>
    %287 = arith.addf %284, %286 : vector<8x128xf32>
    %cst_129 = arith.constant 0.000000e+00 : f32
    %288 = vector.broadcast %cst_129 : f32 to vector<8x128xf32>
    %289 = arith.maximumf %287, %288 : vector<8x128xf32>
    %cst_130 = arith.constant dense<0xFF800000> : vector<128xf32>
    %290 = vector.multi_reduction <maximumf>, %289, %cst_130 [0] : vector<8x128xf32> to vector<128xf32>
    %291 = vector.shape_cast %290 : vector<128xf32> to vector<1x128xf32>
    %c0_131 = arith.constant 0 : index
    %c37 = arith.constant 37 : index
    %292 = memref.load %arg3[%c0_131, %c37] : memref<3x96xf32, #tpu.memory_space<smem>>
    %c1_132 = arith.constant 1 : index
    %c37_133 = arith.constant 37 : index
    %293 = memref.load %arg3[%c1_132, %c37_133] : memref<3x96xf32, #tpu.memory_space<smem>>
    %c2_134 = arith.constant 2 : index
    %c37_135 = arith.constant 37 : index
    %294 = memref.load %arg3[%c2_134, %c37_135] : memref<3x96xf32, #tpu.memory_space<smem>>
    %295 = vector.broadcast %292 : f32 to vector<8x128xf32>
    %296 = arith.mulf %19, %295 : vector<8x128xf32>
    %297 = vector.broadcast %293 : f32 to vector<8x128xf32>
    %298 = arith.mulf %20, %297 : vector<8x128xf32>
    %299 = arith.addf %296, %298 : vector<8x128xf32>
    %300 = vector.broadcast %294 : f32 to vector<8x128xf32>
    %301 = arith.mulf %21, %300 : vector<8x128xf32>
    %302 = arith.addf %299, %301 : vector<8x128xf32>
    %cst_136 = arith.constant 0.000000e+00 : f32
    %303 = vector.broadcast %cst_136 : f32 to vector<8x128xf32>
    %304 = arith.maximumf %302, %303 : vector<8x128xf32>
    %cst_137 = arith.constant dense<0xFF800000> : vector<128xf32>
    %305 = vector.multi_reduction <maximumf>, %304, %cst_137 [0] : vector<8x128xf32> to vector<128xf32>
    %306 = vector.shape_cast %305 : vector<128xf32> to vector<1x128xf32>
    %307 = arith.addf %291, %306 : vector<1x128xf32>
    %c0_138 = arith.constant 0 : index
    %c69 = arith.constant 69 : index
    %308 = memref.load %arg3[%c0_138, %c69] : memref<3x96xf32, #tpu.memory_space<smem>>
    %c1_139 = arith.constant 1 : index
    %c69_140 = arith.constant 69 : index
    %309 = memref.load %arg3[%c1_139, %c69_140] : memref<3x96xf32, #tpu.memory_space<smem>>
    %c2_141 = arith.constant 2 : index
    %c69_142 = arith.constant 69 : index
    %310 = memref.load %arg3[%c2_141, %c69_142] : memref<3x96xf32, #tpu.memory_space<smem>>
    %311 = vector.broadcast %308 : f32 to vector<8x128xf32>
    %312 = arith.mulf %19, %311 : vector<8x128xf32>
    %313 = vector.broadcast %309 : f32 to vector<8x128xf32>
    %314 = arith.mulf %20, %313 : vector<8x128xf32>
    %315 = arith.addf %312, %314 : vector<8x128xf32>
    %316 = vector.broadcast %310 : f32 to vector<8x128xf32>
    %317 = arith.mulf %21, %316 : vector<8x128xf32>
    %318 = arith.addf %315, %317 : vector<8x128xf32>
    %cst_143 = arith.constant 0.000000e+00 : f32
    %319 = vector.broadcast %cst_143 : f32 to vector<8x128xf32>
    %320 = arith.maximumf %318, %319 : vector<8x128xf32>
    %cst_144 = arith.constant dense<0xFF800000> : vector<128xf32>
    %321 = vector.multi_reduction <maximumf>, %320, %cst_144 [0] : vector<8x128xf32> to vector<128xf32>
    %322 = vector.shape_cast %321 : vector<128xf32> to vector<1x128xf32>
    %323 = arith.addf %307, %322 : vector<1x128xf32>
    %c0_145 = arith.constant 0 : index
    %c5_146 = arith.constant 5 : index
    %324 = arith.index_cast %1 : i32 to index
    %325 = vector.load %arg4[%c0_145, %c5_146, %324] : memref<1x32x128xf32, #tpu.memory_space<vmem>>, vector<1x1x128xf32>
    %326 = vector.shape_cast %325 : vector<1x1x128xf32> to vector<1x128xf32>
    %327 = vector.shape_cast %323 : vector<1x128xf32> to vector<1x1x128xf32>
    tpu.vector_store %arg4[%c0_145, %c5_146, %324], %327 {strides = array<i32>} : memref<1x32x128xf32, #tpu.memory_space<vmem>>, vector<1x1x128xf32>,
    %c0_147 = arith.constant 0 : index
    %c6 = arith.constant 6 : index
    %328 = memref.load %arg3[%c0_147, %c6] : memref<3x96xf32, #tpu.memory_space<smem>>
    %c1_148 = arith.constant 1 : index
    %c6_149 = arith.constant 6 : index
    %329 = memref.load %arg3[%c1_148, %c6_149] : memref<3x96xf32, #tpu.memory_space<smem>>
    %c2_150 = arith.constant 2 : index
    %c6_151 = arith.constant 6 : index
    %330 = memref.load %arg3[%c2_150, %c6_151] : memref<3x96xf32, #tpu.memory_space<smem>>
    %331 = vector.broadcast %328 : f32 to vector<8x128xf32>
    %332 = arith.mulf %19, %331 : vector<8x128xf32>
    %333 = vector.broadcast %329 : f32 to vector<8x128xf32>
    %334 = arith.mulf %20, %333 : vector<8x128xf32>
    %335 = arith.addf %332, %334 : vector<8x128xf32>
    %336 = vector.broadcast %330 : f32 to vector<8x128xf32>
    %337 = arith.mulf %21, %336 : vector<8x128xf32>
    %338 = arith.addf %335, %337 : vector<8x128xf32>
    %cst_152 = arith.constant 0.000000e+00 : f32
    %339 = vector.broadcast %cst_152 : f32 to vector<8x128xf32>
    %340 = arith.maximumf %338, %339 : vector<8x128xf32>
    %cst_153 = arith.constant dense<0xFF800000> : vector<128xf32>
    %341 = vector.multi_reduction <maximumf>, %340, %cst_153 [0] : vector<8x128xf32> to vector<128xf32>
    %342 = vector.shape_cast %341 : vector<128xf32> to vector<1x128xf32>
    %c0_154 = arith.constant 0 : index
    %c38 = arith.constant 38 : index
    %343 = memref.load %arg3[%c0_154, %c38] : memref<3x96xf32, #tpu.memory_space<smem>>
    %c1_155 = arith.constant 1 : index
    %c38_156 = arith.constant 38 : index
    %344 = memref.load %arg3[%c1_155, %c38_156] : memref<3x96xf32, #tpu.memory_space<smem>>
    %c2_157 = arith.constant 2 : index
    %c38_158 = arith.constant 38 : index
    %345 = memref.load %arg3[%c2_157, %c38_158] : memref<3x96xf32, #tpu.memory_space<smem>>
    %346 = vector.broadcast %343 : f32 to vector<8x128xf32>
    %347 = arith.mulf %19, %346 : vector<8x128xf32>
    %348 = vector.broadcast %344 : f32 to vector<8x128xf32>
    %349 = arith.mulf %20, %348 : vector<8x128xf32>
    %350 = arith.addf %347, %349 : vector<8x128xf32>
    %351 = vector.broadcast %345 : f32 to vector<8x128xf32>
    %352 = arith.mulf %21, %351 : vector<8x128xf32>
    %353 = arith.addf %350, %352 : vector<8x128xf32>
    %cst_159 = arith.constant 0.000000e+00 : f32
    %354 = vector.broadcast %cst_159 : f32 to vector<8x128xf32>
    %355 = arith.maximumf %353, %354 : vector<8x128xf32>
    %cst_160 = arith.constant dense<0xFF800000> : vector<128xf32>
    %356 = vector.multi_reduction <maximumf>, %355, %cst_160 [0] : vector<8x128xf32> to vector<128xf32>
    %357 = vector.shape_cast %356 : vector<128xf32> to vector<1x128xf32>
    %358 = arith.addf %342, %357 : vector<1x128xf32>
    %c0_161 = arith.constant 0 : index
    %c70 = arith.constant 70 : index
    %359 = memref.load %arg3[%c0_161, %c70] : memref<3x96xf32, #tpu.memory_space<smem>>
    %c1_162 = arith.constant 1 : index
    %c70_163 = arith.constant 70 : index
    %360 = memref.load %arg3[%c1_162, %c70_163] : memref<3x96xf32, #tpu.memory_space<smem>>
    %c2_164 = arith.constant 2 : index
    %c70_165 = arith.constant 70 : index
    %361 = memref.load %arg3[%c2_164, %c70_165] : memref<3x96xf32, #tpu.memory_space<smem>>
    %362 = vector.broadcast %359 : f32 to vector<8x128xf32>
    %363 = arith.mulf %19, %362 : vector<8x128xf32>
    %364 = vector.broadcast %360 : f32 to vector<8x128xf32>
    %365 = arith.mulf %20, %364 : vector<8x128xf32>
    %366 = arith.addf %363, %365 : vector<8x128xf32>
    %367 = vector.broadcast %361 : f32 to vector<8x128xf32>
    %368 = arith.mulf %21, %367 : vector<8x128xf32>
    %369 = arith.addf %366, %368 : vector<8x128xf32>
    %cst_166 = arith.constant 0.000000e+00 : f32
    %370 = vector.broadcast %cst_166 : f32 to vector<8x128xf32>
    %371 = arith.maximumf %369, %370 : vector<8x128xf32>
    %cst_167 = arith.constant dense<0xFF800000> : vector<128xf32>
    %372 = vector.multi_reduction <maximumf>, %371, %cst_167 [0] : vector<8x128xf32> to vector<128xf32>
    %373 = vector.shape_cast %372 : vector<128xf32> to vector<1x128xf32>
    %374 = arith.addf %358, %373 : vector<1x128xf32>
    %c0_168 = arith.constant 0 : index
    %c6_169 = arith.constant 6 : index
    %375 = arith.index_cast %1 : i32 to index
    %376 = vector.load %arg4[%c0_168, %c6_169, %375] : memref<1x32x128xf32, #tpu.memory_space<vmem>>, vector<1x1x128xf32>
    %377 = vector.shape_cast %376 : vector<1x1x128xf32> to vector<1x128xf32>
    %378 = vector.shape_cast %374 : vector<1x128xf32> to vector<1x1x128xf32>
    tpu.vector_store %arg4[%c0_168, %c6_169, %375], %378 {strides = array<i32>} : memref<1x32x128xf32, #tpu.memory_space<vmem>>, vector<1x1x128xf32>,
    %c0_170 = arith.constant 0 : index
    %c7 = arith.constant 7 : index
    %379 = memref.load %arg3[%c0_170, %c7] : memref<3x96xf32, #tpu.memory_space<smem>>
    %c1_171 = arith.constant 1 : index
    %c7_172 = arith.constant 7 : index
    %380 = memref.load %arg3[%c1_171, %c7_172] : memref<3x96xf32, #tpu.memory_space<smem>>
    %c2_173 = arith.constant 2 : index
    %c7_174 = arith.constant 7 : index
    %381 = memref.load %arg3[%c2_173, %c7_174] : memref<3x96xf32, #tpu.memory_space<smem>>
    %382 = vector.broadcast %379 : f32 to vector<8x128xf32>
    %383 = arith.mulf %19, %382 : vector<8x128xf32>
    %384 = vector.broadcast %380 : f32 to vector<8x128xf32>
    %385 = arith.mulf %20, %384 : vector<8x128xf32>
    %386 = arith.addf %383, %385 : vector<8x128xf32>
    %387 = vector.broadcast %381 : f32 to vector<8x128xf32>
    %388 = arith.mulf %21, %387 : vector<8x128xf32>
    %389 = arith.addf %386, %388 : vector<8x128xf32>
    %cst_175 = arith.constant 0.000000e+00 : f32
    %390 = vector.broadcast %cst_175 : f32 to vector<8x128xf32>
    %391 = arith.maximumf %389, %390 : vector<8x128xf32>
    %cst_176 = arith.constant dense<0xFF800000> : vector<128xf32>
    %392 = vector.multi_reduction <maximumf>, %391, %cst_176 [0] : vector<8x128xf32> to vector<128xf32>
    %393 = vector.shape_cast %392 : vector<128xf32> to vector<1x128xf32>
    %c0_177 = arith.constant 0 : index
    %c39 = arith.constant 39 : index
    %394 = memref.load %arg3[%c0_177, %c39] : memref<3x96xf32, #tpu.memory_space<smem>>
    %c1_178 = arith.constant 1 : index
    %c39_179 = arith.constant 39 : index
    %395 = memref.load %arg3[%c1_178, %c39_179] : memref<3x96xf32, #tpu.memory_space<smem>>
    %c2_180 = arith.constant 2 : index
    %c39_181 = arith.constant 39 : index
    %396 = memref.load %arg3[%c2_180, %c39_181] : memref<3x96xf32, #tpu.memory_space<smem>>
    %397 = vector.broadcast %394 : f32 to vector<8x128xf32>
    %398 = arith.mulf %19, %397 : vector<8x128xf32>
    %399 = vector.broadcast %395 : f32 to vector<8x128xf32>
    %400 = arith.mulf %20, %399 : vector<8x128xf32>
    %401 = arith.addf %398, %400 : vector<8x128xf32>
    %402 = vector.broadcast %396 : f32 to vector<8x128xf32>
    %403 = arith.mulf %21, %402 : vector<8x128xf32>
    %404 = arith.addf %401, %403 : vector<8x128xf32>
    %cst_182 = arith.constant 0.000000e+00 : f32
    %405 = vector.broadcast %cst_182 : f32 to vector<8x128xf32>
    %406 = arith.maximumf %404, %405 : vector<8x128xf32>
    %cst_183 = arith.constant dense<0xFF800000> : vector<128xf32>
    %407 = vector.multi_reduction <maximumf>, %406, %cst_183 [0] : vector<8x128xf32> to vector<128xf32>
    %408 = vector.shape_cast %407 : vector<128xf32> to vector<1x128xf32>
    %409 = arith.addf %393, %408 : vector<1x128xf32>
    %c0_184 = arith.constant 0 : index
    %c71 = arith.constant 71 : index
    %410 = memref.load %arg3[%c0_184, %c71] : memref<3x96xf32, #tpu.memory_space<smem>>
    %c1_185 = arith.constant 1 : index
    %c71_186 = arith.constant 71 : index
    %411 = memref.load %arg3[%c1_185, %c71_186] : memref<3x96xf32, #tpu.memory_space<smem>>
    %c2_187 = arith.constant 2 : index
    %c71_188 = arith.constant 71 : index
    %412 = memref.load %arg3[%c2_187, %c71_188] : memref<3x96xf32, #tpu.memory_space<smem>>
    %413 = vector.broadcast %410 : f32 to vector<8x128xf32>
    %414 = arith.mulf %19, %413 : vector<8x128xf32>
    %415 = vector.broadcast %411 : f32 to vector<8x128xf32>
    %416 = arith.mulf %20, %415 : vector<8x128xf32>
    %417 = arith.addf %414, %416 : vector<8x128xf32>
    %418 = vector.broadcast %412 : f32 to vector<8x128xf32>
    %419 = arith.mulf %21, %418 : vector<8x128xf32>
    %420 = arith.addf %417, %419 : vector<8x128xf32>
    %cst_189 = arith.constant 0.000000e+00 : f32
    %421 = vector.broadcast %cst_189 : f32 to vector<8x128xf32>
    %422 = arith.maximumf %420, %421 : vector<8x128xf32>
    %cst_190 = arith.constant dense<0xFF800000> : vector<128xf32>
    %423 = vector.multi_reduction <maximumf>, %422, %cst_190 [0] : vector<8x128xf32> to vector<128xf32>
    %424 = vector.shape_cast %423 : vector<128xf32> to vector<1x128xf32>
    %425 = arith.addf %409, %424 : vector<1x128xf32>
    %c0_191 = arith.constant 0 : index
    %c7_192 = arith.constant 7 : index
    %426 = arith.index_cast %1 : i32 to index
    %427 = vector.load %arg4[%c0_191, %c7_192, %426] : memref<1x32x128xf32, #tpu.memory_space<vmem>>, vector<1x1x128xf32>
    %428 = vector.shape_cast %427 : vector<1x1x128xf32> to vector<1x128xf32>
    %429 = vector.shape_cast %425 : vector<1x128xf32> to vector<1x1x128xf32>
    tpu.vector_store %arg4[%c0_191, %c7_192, %426], %429 {strides = array<i32>} : memref<1x32x128xf32, #tpu.memory_space<vmem>>, vector<1x1x128xf32>,
    %c0_193 = arith.constant 0 : index
    %c8 = arith.constant 8 : index
    %430 = memref.load %arg3[%c0_193, %c8] : memref<3x96xf32, #tpu.memory_space<smem>>
    %c1_194 = arith.constant 1 : index
    %c8_195 = arith.constant 8 : index
    %431 = memref.load %arg3[%c1_194, %c8_195] : memref<3x96xf32, #tpu.memory_space<smem>>
    %c2_196 = arith.constant 2 : index
    %c8_197 = arith.constant 8 : index
    %432 = memref.load %arg3[%c2_196, %c8_197] : memref<3x96xf32, #tpu.memory_space<smem>>
    %433 = vector.broadcast %430 : f32 to vector<8x128xf32>
    %434 = arith.mulf %19, %433 : vector<8x128xf32>
    %435 = vector.broadcast %431 : f32 to vector<8x128xf32>
    %436 = arith.mulf %20, %435 : vector<8x128xf32>
    %437 = arith.addf %434, %436 : vector<8x128xf32>
    %438 = vector.broadcast %432 : f32 to vector<8x128xf32>
    %439 = arith.mulf %21, %438 : vector<8x128xf32>
    %440 = arith.addf %437, %439 : vector<8x128xf32>
    %cst_198 = arith.constant 0.000000e+00 : f32
    %441 = vector.broadcast %cst_198 : f32 to vector<8x128xf32>
    %442 = arith.maximumf %440, %441 : vector<8x128xf32>
    %cst_199 = arith.constant dense<0xFF800000> : vector<128xf32>
    %443 = vector.multi_reduction <maximumf>, %442, %cst_199 [0] : vector<8x128xf32> to vector<128xf32>
    %444 = vector.shape_cast %443 : vector<128xf32> to vector<1x128xf32>
    %c0_200 = arith.constant 0 : index
    %c40 = arith.constant 40 : index
    %445 = memref.load %arg3[%c0_200, %c40] : memref<3x96xf32, #tpu.memory_space<smem>>
    %c1_201 = arith.constant 1 : index
    %c40_202 = arith.constant 40 : index
    %446 = memref.load %arg3[%c1_201, %c40_202] : memref<3x96xf32, #tpu.memory_space<smem>>
    %c2_203 = arith.constant 2 : index
    %c40_204 = arith.constant 40 : index
    %447 = memref.load %arg3[%c2_203, %c40_204] : memref<3x96xf32, #tpu.memory_space<smem>>
    %448 = vector.broadcast %445 : f32 to vector<8x128xf32>
    %449 = arith.mulf %19, %448 : vector<8x128xf32>
    %450 = vector.broadcast %446 : f32 to vector<8x128xf32>
    %451 = arith.mulf %20, %450 : vector<8x128xf32>
    %452 = arith.addf %449, %451 : vector<8x128xf32>
    %453 = vector.broadcast %447 : f32 to vector<8x128xf32>
    %454 = arith.mulf %21, %453 : vector<8x128xf32>
    %455 = arith.addf %452, %454 : vector<8x128xf32>
    %cst_205 = arith.constant 0.000000e+00 : f32
    %456 = vector.broadcast %cst_205 : f32 to vector<8x128xf32>
    %457 = arith.maximumf %455, %456 : vector<8x128xf32>
    %cst_206 = arith.constant dense<0xFF800000> : vector<128xf32>
    %458 = vector.multi_reduction <maximumf>, %457, %cst_206 [0] : vector<8x128xf32> to vector<128xf32>
    %459 = vector.shape_cast %458 : vector<128xf32> to vector<1x128xf32>
    %460 = arith.addf %444, %459 : vector<1x128xf32>
    %c0_207 = arith.constant 0 : index
    %c72 = arith.constant 72 : index
    %461 = memref.load %arg3[%c0_207, %c72] : memref<3x96xf32, #tpu.memory_space<smem>>
    %c1_208 = arith.constant 1 : index
    %c72_209 = arith.constant 72 : index
    %462 = memref.load %arg3[%c1_208, %c72_209] : memref<3x96xf32, #tpu.memory_space<smem>>
    %c2_210 = arith.constant 2 : index
    %c72_211 = arith.constant 72 : index
    %463 = memref.load %arg3[%c2_210, %c72_211] : memref<3x96xf32, #tpu.memory_space<smem>>
    %464 = vector.broadcast %461 : f32 to vector<8x128xf32>
    %465 = arith.mulf %19, %464 : vector<8x128xf32>
    %466 = vector.broadcast %462 : f32 to vector<8x128xf32>
    %467 = arith.mulf %20, %466 : vector<8x128xf32>
    %468 = arith.addf %465, %467 : vector<8x128xf32>
    %469 = vector.broadcast %463 : f32 to vector<8x128xf32>
    %470 = arith.mulf %21, %469 : vector<8x128xf32>
    %471 = arith.addf %468, %470 : vector<8x128xf32>
    %cst_212 = arith.constant 0.000000e+00 : f32
    %472 = vector.broadcast %cst_212 : f32 to vector<8x128xf32>
    %473 = arith.maximumf %471, %472 : vector<8x128xf32>
    %cst_213 = arith.constant dense<0xFF800000> : vector<128xf32>
    %474 = vector.multi_reduction <maximumf>, %473, %cst_213 [0] : vector<8x128xf32> to vector<128xf32>
    %475 = vector.shape_cast %474 : vector<128xf32> to vector<1x128xf32>
    %476 = arith.addf %460, %475 : vector<1x128xf32>
    %c0_214 = arith.constant 0 : index
    %c8_215 = arith.constant 8 : index
    %477 = arith.index_cast %1 : i32 to index
    %478 = vector.load %arg4[%c0_214, %c8_215, %477] : memref<1x32x128xf32, #tpu.memory_space<vmem>>, vector<1x1x128xf32>
    %479 = vector.shape_cast %478 : vector<1x1x128xf32> to vector<1x128xf32>
    %480 = vector.shape_cast %476 : vector<1x128xf32> to vector<1x1x128xf32>
    tpu.vector_store %arg4[%c0_214, %c8_215, %477], %480 {strides = array<i32>} : memref<1x32x128xf32, #tpu.memory_space<vmem>>, vector<1x1x128xf32>,
    %c0_216 = arith.constant 0 : index
    %c9 = arith.constant 9 : index
    %481 = memref.load %arg3[%c0_216, %c9] : memref<3x96xf32, #tpu.memory_space<smem>>
    %c1_217 = arith.constant 1 : index
    %c9_218 = arith.constant 9 : index
    %482 = memref.load %arg3[%c1_217, %c9_218] : memref<3x96xf32, #tpu.memory_space<smem>>
    %c2_219 = arith.constant 2 : index
    %c9_220 = arith.constant 9 : index
    %483 = memref.load %arg3[%c2_219, %c9_220] : memref<3x96xf32, #tpu.memory_space<smem>>
    %484 = vector.broadcast %481 : f32 to vector<8x128xf32>
    %485 = arith.mulf %19, %484 : vector<8x128xf32>
    %486 = vector.broadcast %482 : f32 to vector<8x128xf32>
    %487 = arith.mulf %20, %486 : vector<8x128xf32>
    %488 = arith.addf %485, %487 : vector<8x128xf32>
    %489 = vector.broadcast %483 : f32 to vector<8x128xf32>
    %490 = arith.mulf %21, %489 : vector<8x128xf32>
    %491 = arith.addf %488, %490 : vector<8x128xf32>
    %cst_221 = arith.constant 0.000000e+00 : f32
    %492 = vector.broadcast %cst_221 : f32 to vector<8x128xf32>
    %493 = arith.maximumf %491, %492 : vector<8x128xf32>
    %cst_222 = arith.constant dense<0xFF800000> : vector<128xf32>
    %494 = vector.multi_reduction <maximumf>, %493, %cst_222 [0] : vector<8x128xf32> to vector<128xf32>
    %495 = vector.shape_cast %494 : vector<128xf32> to vector<1x128xf32>
    %c0_223 = arith.constant 0 : index
    %c41 = arith.constant 41 : index
    %496 = memref.load %arg3[%c0_223, %c41] : memref<3x96xf32, #tpu.memory_space<smem>>
    %c1_224 = arith.constant 1 : index
    %c41_225 = arith.constant 41 : index
    %497 = memref.load %arg3[%c1_224, %c41_225] : memref<3x96xf32, #tpu.memory_space<smem>>
    %c2_226 = arith.constant 2 : index
    %c41_227 = arith.constant 41 : index
    %498 = memref.load %arg3[%c2_226, %c41_227] : memref<3x96xf32, #tpu.memory_space<smem>>
    %499 = vector.broadcast %496 : f32 to vector<8x128xf32>
    %500 = arith.mulf %19, %499 : vector<8x128xf32>
    %501 = vector.broadcast %497 : f32 to vector<8x128xf32>
    %502 = arith.mulf %20, %501 : vector<8x128xf32>
    %503 = arith.addf %500, %502 : vector<8x128xf32>
    %504 = vector.broadcast %498 : f32 to vector<8x128xf32>
    %505 = arith.mulf %21, %504 : vector<8x128xf32>
    %506 = arith.addf %503, %505 : vector<8x128xf32>
    %cst_228 = arith.constant 0.000000e+00 : f32
    %507 = vector.broadcast %cst_228 : f32 to vector<8x128xf32>
    %508 = arith.maximumf %506, %507 : vector<8x128xf32>
    %cst_229 = arith.constant dense<0xFF800000> : vector<128xf32>
    %509 = vector.multi_reduction <maximumf>, %508, %cst_229 [0] : vector<8x128xf32> to vector<128xf32>
    %510 = vector.shape_cast %509 : vector<128xf32> to vector<1x128xf32>
    %511 = arith.addf %495, %510 : vector<1x128xf32>
    %c0_230 = arith.constant 0 : index
    %c73 = arith.constant 73 : index
    %512 = memref.load %arg3[%c0_230, %c73] : memref<3x96xf32, #tpu.memory_space<smem>>
    %c1_231 = arith.constant 1 : index
    %c73_232 = arith.constant 73 : index
    %513 = memref.load %arg3[%c1_231, %c73_232] : memref<3x96xf32, #tpu.memory_space<smem>>
    %c2_233 = arith.constant 2 : index
    %c73_234 = arith.constant 73 : index
    %514 = memref.load %arg3[%c2_233, %c73_234] : memref<3x96xf32, #tpu.memory_space<smem>>
    %515 = vector.broadcast %512 : f32 to vector<8x128xf32>
    %516 = arith.mulf %19, %515 : vector<8x128xf32>
    %517 = vector.broadcast %513 : f32 to vector<8x128xf32>
    %518 = arith.mulf %20, %517 : vector<8x128xf32>
    %519 = arith.addf %516, %518 : vector<8x128xf32>
    %520 = vector.broadcast %514 : f32 to vector<8x128xf32>
    %521 = arith.mulf %21, %520 : vector<8x128xf32>
    %522 = arith.addf %519, %521 : vector<8x128xf32>
    %cst_235 = arith.constant 0.000000e+00 : f32
    %523 = vector.broadcast %cst_235 : f32 to vector<8x128xf32>
    %524 = arith.maximumf %522, %523 : vector<8x128xf32>
    %cst_236 = arith.constant dense<0xFF800000> : vector<128xf32>
    %525 = vector.multi_reduction <maximumf>, %524, %cst_236 [0] : vector<8x128xf32> to vector<128xf32>
    %526 = vector.shape_cast %525 : vector<128xf32> to vector<1x128xf32>
    %527 = arith.addf %511, %526 : vector<1x128xf32>
    %c0_237 = arith.constant 0 : index
    %c9_238 = arith.constant 9 : index
    %528 = arith.index_cast %1 : i32 to index
    %529 = vector.load %arg4[%c0_237, %c9_238, %528] : memref<1x32x128xf32, #tpu.memory_space<vmem>>, vector<1x1x128xf32>
    %530 = vector.shape_cast %529 : vector<1x1x128xf32> to vector<1x128xf32>
    %531 = vector.shape_cast %527 : vector<1x128xf32> to vector<1x1x128xf32>
    tpu.vector_store %arg4[%c0_237, %c9_238, %528], %531 {strides = array<i32>} : memref<1x32x128xf32, #tpu.memory_space<vmem>>, vector<1x1x128xf32>,
    %c0_239 = arith.constant 0 : index
    %c10 = arith.constant 10 : index
    %532 = memref.load %arg3[%c0_239, %c10] : memref<3x96xf32, #tpu.memory_space<smem>>
    %c1_240 = arith.constant 1 : index
    %c10_241 = arith.constant 10 : index
    %533 = memref.load %arg3[%c1_240, %c10_241] : memref<3x96xf32, #tpu.memory_space<smem>>
    %c2_242 = arith.constant 2 : index
    %c10_243 = arith.constant 10 : index
    %534 = memref.load %arg3[%c2_242, %c10_243] : memref<3x96xf32, #tpu.memory_space<smem>>
    %535 = vector.broadcast %532 : f32 to vector<8x128xf32>
    %536 = arith.mulf %19, %535 : vector<8x128xf32>
    %537 = vector.broadcast %533 : f32 to vector<8x128xf32>
    %538 = arith.mulf %20, %537 : vector<8x128xf32>
    %539 = arith.addf %536, %538 : vector<8x128xf32>
    %540 = vector.broadcast %534 : f32 to vector<8x128xf32>
    %541 = arith.mulf %21, %540 : vector<8x128xf32>
    %542 = arith.addf %539, %541 : vector<8x128xf32>
    %cst_244 = arith.constant 0.000000e+00 : f32
    %543 = vector.broadcast %cst_244 : f32 to vector<8x128xf32>
    %544 = arith.maximumf %542, %543 : vector<8x128xf32>
    %cst_245 = arith.constant dense<0xFF800000> : vector<128xf32>
    %545 = vector.multi_reduction <maximumf>, %544, %cst_245 [0] : vector<8x128xf32> to vector<128xf32>
    %546 = vector.shape_cast %545 : vector<128xf32> to vector<1x128xf32>
    %c0_246 = arith.constant 0 : index
    %c42 = arith.constant 42 : index
    %547 = memref.load %arg3[%c0_246, %c42] : memref<3x96xf32, #tpu.memory_space<smem>>
    %c1_247 = arith.constant 1 : index
    %c42_248 = arith.constant 42 : index
    %548 = memref.load %arg3[%c1_247, %c42_248] : memref<3x96xf32, #tpu.memory_space<smem>>
    %c2_249 = arith.constant 2 : index
    %c42_250 = arith.constant 42 : index
    %549 = memref.load %arg3[%c2_249, %c42_250] : memref<3x96xf32, #tpu.memory_space<smem>>
    %550 = vector.broadcast %547 : f32 to vector<8x128xf32>
    %551 = arith.mulf %19, %550 : vector<8x128xf32>
    %552 = vector.broadcast %548 : f32 to vector<8x128xf32>
    %553 = arith.mulf %20, %552 : vector<8x128xf32>
    %554 = arith.addf %551, %553 : vector<8x128xf32>
    %555 = vector.broadcast %549 : f32 to vector<8x128xf32>
    %556 = arith.mulf %21, %555 : vector<8x128xf32>
    %557 = arith.addf %554, %556 : vector<8x128xf32>
    %cst_251 = arith.constant 0.000000e+00 : f32
    %558 = vector.broadcast %cst_251 : f32 to vector<8x128xf32>
    %559 = arith.maximumf %557, %558 : vector<8x128xf32>
    %cst_252 = arith.constant dense<0xFF800000> : vector<128xf32>
    %560 = vector.multi_reduction <maximumf>, %559, %cst_252 [0] : vector<8x128xf32> to vector<128xf32>
    %561 = vector.shape_cast %560 : vector<128xf32> to vector<1x128xf32>
    %562 = arith.addf %546, %561 : vector<1x128xf32>
    %c0_253 = arith.constant 0 : index
    %c74 = arith.constant 74 : index
    %563 = memref.load %arg3[%c0_253, %c74] : memref<3x96xf32, #tpu.memory_space<smem>>
    %c1_254 = arith.constant 1 : index
    %c74_255 = arith.constant 74 : index
    %564 = memref.load %arg3[%c1_254, %c74_255] : memref<3x96xf32, #tpu.memory_space<smem>>
    %c2_256 = arith.constant 2 : index
    %c74_257 = arith.constant 74 : index
    %565 = memref.load %arg3[%c2_256, %c74_257] : memref<3x96xf32, #tpu.memory_space<smem>>
    %566 = vector.broadcast %563 : f32 to vector<8x128xf32>
    %567 = arith.mulf %19, %566 : vector<8x128xf32>
    %568 = vector.broadcast %564 : f32 to vector<8x128xf32>
    %569 = arith.mulf %20, %568 : vector<8x128xf32>
    %570 = arith.addf %567, %569 : vector<8x128xf32>
    %571 = vector.broadcast %565 : f32 to vector<8x128xf32>
    %572 = arith.mulf %21, %571 : vector<8x128xf32>
    %573 = arith.addf %570, %572 : vector<8x128xf32>
    %cst_258 = arith.constant 0.000000e+00 : f32
    %574 = vector.broadcast %cst_258 : f32 to vector<8x128xf32>
    %575 = arith.maximumf %573, %574 : vector<8x128xf32>
    %cst_259 = arith.constant dense<0xFF800000> : vector<128xf32>
    %576 = vector.multi_reduction <maximumf>, %575, %cst_259 [0] : vector<8x128xf32> to vector<128xf32>
    %577 = vector.shape_cast %576 : vector<128xf32> to vector<1x128xf32>
    %578 = arith.addf %562, %577 : vector<1x128xf32>
    %c0_260 = arith.constant 0 : index
    %c10_261 = arith.constant 10 : index
    %579 = arith.index_cast %1 : i32 to index
    %580 = vector.load %arg4[%c0_260, %c10_261, %579] : memref<1x32x128xf32, #tpu.memory_space<vmem>>, vector<1x1x128xf32>
    %581 = vector.shape_cast %580 : vector<1x1x128xf32> to vector<1x128xf32>
    %582 = vector.shape_cast %578 : vector<1x128xf32> to vector<1x1x128xf32>
    tpu.vector_store %arg4[%c0_260, %c10_261, %579], %582 {strides = array<i32>} : memref<1x32x128xf32, #tpu.memory_space<vmem>>, vector<1x1x128xf32>,
    %c0_262 = arith.constant 0 : index
    %c11 = arith.constant 11 : index
    %583 = memref.load %arg3[%c0_262, %c11] : memref<3x96xf32, #tpu.memory_space<smem>>
    %c1_263 = arith.constant 1 : index
    %c11_264 = arith.constant 11 : index
    %584 = memref.load %arg3[%c1_263, %c11_264] : memref<3x96xf32, #tpu.memory_space<smem>>
    %c2_265 = arith.constant 2 : index
    %c11_266 = arith.constant 11 : index
    %585 = memref.load %arg3[%c2_265, %c11_266] : memref<3x96xf32, #tpu.memory_space<smem>>
    %586 = vector.broadcast %583 : f32 to vector<8x128xf32>
    %587 = arith.mulf %19, %586 : vector<8x128xf32>
    %588 = vector.broadcast %584 : f32 to vector<8x128xf32>
    %589 = arith.mulf %20, %588 : vector<8x128xf32>
    %590 = arith.addf %587, %589 : vector<8x128xf32>
    %591 = vector.broadcast %585 : f32 to vector<8x128xf32>
    %592 = arith.mulf %21, %591 : vector<8x128xf32>
    %593 = arith.addf %590, %592 : vector<8x128xf32>
    %cst_267 = arith.constant 0.000000e+00 : f32
    %594 = vector.broadcast %cst_267 : f32 to vector<8x128xf32>
    %595 = arith.maximumf %593, %594 : vector<8x128xf32>
    %cst_268 = arith.constant dense<0xFF800000> : vector<128xf32>
    %596 = vector.multi_reduction <maximumf>, %595, %cst_268 [0] : vector<8x128xf32> to vector<128xf32>
    %597 = vector.shape_cast %596 : vector<128xf32> to vector<1x128xf32>
    %c0_269 = arith.constant 0 : index
    %c43 = arith.constant 43 : index
    %598 = memref.load %arg3[%c0_269, %c43] : memref<3x96xf32, #tpu.memory_space<smem>>
    %c1_270 = arith.constant 1 : index
    %c43_271 = arith.constant 43 : index
    %599 = memref.load %arg3[%c1_270, %c43_271] : memref<3x96xf32, #tpu.memory_space<smem>>
    %c2_272 = arith.constant 2 : index
    %c43_273 = arith.constant 43 : index
    %600 = memref.load %arg3[%c2_272, %c43_273] : memref<3x96xf32, #tpu.memory_space<smem>>
    %601 = vector.broadcast %598 : f32 to vector<8x128xf32>
    %602 = arith.mulf %19, %601 : vector<8x128xf32>
    %603 = vector.broadcast %599 : f32 to vector<8x128xf32>
    %604 = arith.mulf %20, %603 : vector<8x128xf32>
    %605 = arith.addf %602, %604 : vector<8x128xf32>
    %606 = vector.broadcast %600 : f32 to vector<8x128xf32>
    %607 = arith.mulf %21, %606 : vector<8x128xf32>
    %608 = arith.addf %605, %607 : vector<8x128xf32>
    %cst_274 = arith.constant 0.000000e+00 : f32
    %609 = vector.broadcast %cst_274 : f32 to vector<8x128xf32>
    %610 = arith.maximumf %608, %609 : vector<8x128xf32>
    %cst_275 = arith.constant dense<0xFF800000> : vector<128xf32>
    %611 = vector.multi_reduction <maximumf>, %610, %cst_275 [0] : vector<8x128xf32> to vector<128xf32>
    %612 = vector.shape_cast %611 : vector<128xf32> to vector<1x128xf32>
    %613 = arith.addf %597, %612 : vector<1x128xf32>
    %c0_276 = arith.constant 0 : index
    %c75 = arith.constant 75 : index
    %614 = memref.load %arg3[%c0_276, %c75] : memref<3x96xf32, #tpu.memory_space<smem>>
    %c1_277 = arith.constant 1 : index
    %c75_278 = arith.constant 75 : index
    %615 = memref.load %arg3[%c1_277, %c75_278] : memref<3x96xf32, #tpu.memory_space<smem>>
    %c2_279 = arith.constant 2 : index
    %c75_280 = arith.constant 75 : index
    %616 = memref.load %arg3[%c2_279, %c75_280] : memref<3x96xf32, #tpu.memory_space<smem>>
    %617 = vector.broadcast %614 : f32 to vector<8x128xf32>
    %618 = arith.mulf %19, %617 : vector<8x128xf32>
    %619 = vector.broadcast %615 : f32 to vector<8x128xf32>
    %620 = arith.mulf %20, %619 : vector<8x128xf32>
    %621 = arith.addf %618, %620 : vector<8x128xf32>
    %622 = vector.broadcast %616 : f32 to vector<8x128xf32>
    %623 = arith.mulf %21, %622 : vector<8x128xf32>
    %624 = arith.addf %621, %623 : vector<8x128xf32>
    %cst_281 = arith.constant 0.000000e+00 : f32
    %625 = vector.broadcast %cst_281 : f32 to vector<8x128xf32>
    %626 = arith.maximumf %624, %625 : vector<8x128xf32>
    %cst_282 = arith.constant dense<0xFF800000> : vector<128xf32>
    %627 = vector.multi_reduction <maximumf>, %626, %cst_282 [0] : vector<8x128xf32> to vector<128xf32>
    %628 = vector.shape_cast %627 : vector<128xf32> to vector<1x128xf32>
    %629 = arith.addf %613, %628 : vector<1x128xf32>
    %c0_283 = arith.constant 0 : index
    %c11_284 = arith.constant 11 : index
    %630 = arith.index_cast %1 : i32 to index
    %631 = vector.load %arg4[%c0_283, %c11_284, %630] : memref<1x32x128xf32, #tpu.memory_space<vmem>>, vector<1x1x128xf32>
    %632 = vector.shape_cast %631 : vector<1x1x128xf32> to vector<1x128xf32>
    %633 = vector.shape_cast %629 : vector<1x128xf32> to vector<1x1x128xf32>
    tpu.vector_store %arg4[%c0_283, %c11_284, %630], %633 {strides = array<i32>} : memref<1x32x128xf32, #tpu.memory_space<vmem>>, vector<1x1x128xf32>,
    %c0_285 = arith.constant 0 : index
    %c12 = arith.constant 12 : index
    %634 = memref.load %arg3[%c0_285, %c12] : memref<3x96xf32, #tpu.memory_space<smem>>
    %c1_286 = arith.constant 1 : index
    %c12_287 = arith.constant 12 : index
    %635 = memref.load %arg3[%c1_286, %c12_287] : memref<3x96xf32, #tpu.memory_space<smem>>
    %c2_288 = arith.constant 2 : index
    %c12_289 = arith.constant 12 : index
    %636 = memref.load %arg3[%c2_288, %c12_289] : memref<3x96xf32, #tpu.memory_space<smem>>
    %637 = vector.broadcast %634 : f32 to vector<8x128xf32>
    %638 = arith.mulf %19, %637 : vector<8x128xf32>
    %639 = vector.broadcast %635 : f32 to vector<8x128xf32>
    %640 = arith.mulf %20, %639 : vector<8x128xf32>
    %641 = arith.addf %638, %640 : vector<8x128xf32>
    %642 = vector.broadcast %636 : f32 to vector<8x128xf32>
    %643 = arith.mulf %21, %642 : vector<8x128xf32>
    %644 = arith.addf %641, %643 : vector<8x128xf32>
    %cst_290 = arith.constant 0.000000e+00 : f32
    %645 = vector.broadcast %cst_290 : f32 to vector<8x128xf32>
    %646 = arith.maximumf %644, %645 : vector<8x128xf32>
    %cst_291 = arith.constant dense<0xFF800000> : vector<128xf32>
    %647 = vector.multi_reduction <maximumf>, %646, %cst_291 [0] : vector<8x128xf32> to vector<128xf32>
    %648 = vector.shape_cast %647 : vector<128xf32> to vector<1x128xf32>
    %c0_292 = arith.constant 0 : index
    %c44 = arith.constant 44 : index
    %649 = memref.load %arg3[%c0_292, %c44] : memref<3x96xf32, #tpu.memory_space<smem>>
    %c1_293 = arith.constant 1 : index
    %c44_294 = arith.constant 44 : index
    %650 = memref.load %arg3[%c1_293, %c44_294] : memref<3x96xf32, #tpu.memory_space<smem>>
    %c2_295 = arith.constant 2 : index
    %c44_296 = arith.constant 44 : index
    %651 = memref.load %arg3[%c2_295, %c44_296] : memref<3x96xf32, #tpu.memory_space<smem>>
    %652 = vector.broadcast %649 : f32 to vector<8x128xf32>
    %653 = arith.mulf %19, %652 : vector<8x128xf32>
    %654 = vector.broadcast %650 : f32 to vector<8x128xf32>
    %655 = arith.mulf %20, %654 : vector<8x128xf32>
    %656 = arith.addf %653, %655 : vector<8x128xf32>
    %657 = vector.broadcast %651 : f32 to vector<8x128xf32>
    %658 = arith.mulf %21, %657 : vector<8x128xf32>
    %659 = arith.addf %656, %658 : vector<8x128xf32>
    %cst_297 = arith.constant 0.000000e+00 : f32
    %660 = vector.broadcast %cst_297 : f32 to vector<8x128xf32>
    %661 = arith.maximumf %659, %660 : vector<8x128xf32>
    %cst_298 = arith.constant dense<0xFF800000> : vector<128xf32>
    %662 = vector.multi_reduction <maximumf>, %661, %cst_298 [0] : vector<8x128xf32> to vector<128xf32>
    %663 = vector.shape_cast %662 : vector<128xf32> to vector<1x128xf32>
    %664 = arith.addf %648, %663 : vector<1x128xf32>
    %c0_299 = arith.constant 0 : index
    %c76 = arith.constant 76 : index
    %665 = memref.load %arg3[%c0_299, %c76] : memref<3x96xf32, #tpu.memory_space<smem>>
    %c1_300 = arith.constant 1 : index
    %c76_301 = arith.constant 76 : index
    %666 = memref.load %arg3[%c1_300, %c76_301] : memref<3x96xf32, #tpu.memory_space<smem>>
    %c2_302 = arith.constant 2 : index
    %c76_303 = arith.constant 76 : index
    %667 = memref.load %arg3[%c2_302, %c76_303] : memref<3x96xf32, #tpu.memory_space<smem>>
    %668 = vector.broadcast %665 : f32 to vector<8x128xf32>
    %669 = arith.mulf %19, %668 : vector<8x128xf32>
    %670 = vector.broadcast %666 : f32 to vector<8x128xf32>
    %671 = arith.mulf %20, %670 : vector<8x128xf32>
    %672 = arith.addf %669, %671 : vector<8x128xf32>
    %673 = vector.broadcast %667 : f32 to vector<8x128xf32>
    %674 = arith.mulf %21, %673 : vector<8x128xf32>
    %675 = arith.addf %672, %674 : vector<8x128xf32>
    %cst_304 = arith.constant 0.000000e+00 : f32
    %676 = vector.broadcast %cst_304 : f32 to vector<8x128xf32>
    %677 = arith.maximumf %675, %676 : vector<8x128xf32>
    %cst_305 = arith.constant dense<0xFF800000> : vector<128xf32>
    %678 = vector.multi_reduction <maximumf>, %677, %cst_305 [0] : vector<8x128xf32> to vector<128xf32>
    %679 = vector.shape_cast %678 : vector<128xf32> to vector<1x128xf32>
    %680 = arith.addf %664, %679 : vector<1x128xf32>
    %c0_306 = arith.constant 0 : index
    %c12_307 = arith.constant 12 : index
    %681 = arith.index_cast %1 : i32 to index
    %682 = vector.load %arg4[%c0_306, %c12_307, %681] : memref<1x32x128xf32, #tpu.memory_space<vmem>>, vector<1x1x128xf32>
    %683 = vector.shape_cast %682 : vector<1x1x128xf32> to vector<1x128xf32>
    %684 = vector.shape_cast %680 : vector<1x128xf32> to vector<1x1x128xf32>
    tpu.vector_store %arg4[%c0_306, %c12_307, %681], %684 {strides = array<i32>} : memref<1x32x128xf32, #tpu.memory_space<vmem>>, vector<1x1x128xf32>,
    %c0_308 = arith.constant 0 : index
    %c13 = arith.constant 13 : index
    %685 = memref.load %arg3[%c0_308, %c13] : memref<3x96xf32, #tpu.memory_space<smem>>
    %c1_309 = arith.constant 1 : index
    %c13_310 = arith.constant 13 : index
    %686 = memref.load %arg3[%c1_309, %c13_310] : memref<3x96xf32, #tpu.memory_space<smem>>
    %c2_311 = arith.constant 2 : index
    %c13_312 = arith.constant 13 : index
    %687 = memref.load %arg3[%c2_311, %c13_312] : memref<3x96xf32, #tpu.memory_space<smem>>
    %688 = vector.broadcast %685 : f32 to vector<8x128xf32>
    %689 = arith.mulf %19, %688 : vector<8x128xf32>
    %690 = vector.broadcast %686 : f32 to vector<8x128xf32>
    %691 = arith.mulf %20, %690 : vector<8x128xf32>
    %692 = arith.addf %689, %691 : vector<8x128xf32>
    %693 = vector.broadcast %687 : f32 to vector<8x128xf32>
    %694 = arith.mulf %21, %693 : vector<8x128xf32>
    %695 = arith.addf %692, %694 : vector<8x128xf32>
    %cst_313 = arith.constant 0.000000e+00 : f32
    %696 = vector.broadcast %cst_313 : f32 to vector<8x128xf32>
    %697 = arith.maximumf %695, %696 : vector<8x128xf32>
    %cst_314 = arith.constant dense<0xFF800000> : vector<128xf32>
    %698 = vector.multi_reduction <maximumf>, %697, %cst_314 [0] : vector<8x128xf32> to vector<128xf32>
    %699 = vector.shape_cast %698 : vector<128xf32> to vector<1x128xf32>
    %c0_315 = arith.constant 0 : index
    %c45 = arith.constant 45 : index
    %700 = memref.load %arg3[%c0_315, %c45] : memref<3x96xf32, #tpu.memory_space<smem>>
    %c1_316 = arith.constant 1 : index
    %c45_317 = arith.constant 45 : index
    %701 = memref.load %arg3[%c1_316, %c45_317] : memref<3x96xf32, #tpu.memory_space<smem>>
    %c2_318 = arith.constant 2 : index
    %c45_319 = arith.constant 45 : index
    %702 = memref.load %arg3[%c2_318, %c45_319] : memref<3x96xf32, #tpu.memory_space<smem>>
    %703 = vector.broadcast %700 : f32 to vector<8x128xf32>
    %704 = arith.mulf %19, %703 : vector<8x128xf32>
    %705 = vector.broadcast %701 : f32 to vector<8x128xf32>
    %706 = arith.mulf %20, %705 : vector<8x128xf32>
    %707 = arith.addf %704, %706 : vector<8x128xf32>
    %708 = vector.broadcast %702 : f32 to vector<8x128xf32>
    %709 = arith.mulf %21, %708 : vector<8x128xf32>
    %710 = arith.addf %707, %709 : vector<8x128xf32>
    %cst_320 = arith.constant 0.000000e+00 : f32
    %711 = vector.broadcast %cst_320 : f32 to vector<8x128xf32>
    %712 = arith.maximumf %710, %711 : vector<8x128xf32>
    %cst_321 = arith.constant dense<0xFF800000> : vector<128xf32>
    %713 = vector.multi_reduction <maximumf>, %712, %cst_321 [0] : vector<8x128xf32> to vector<128xf32>
    %714 = vector.shape_cast %713 : vector<128xf32> to vector<1x128xf32>
    %715 = arith.addf %699, %714 : vector<1x128xf32>
    %c0_322 = arith.constant 0 : index
    %c77 = arith.constant 77 : index
    %716 = memref.load %arg3[%c0_322, %c77] : memref<3x96xf32, #tpu.memory_space<smem>>
    %c1_323 = arith.constant 1 : index
    %c77_324 = arith.constant 77 : index
    %717 = memref.load %arg3[%c1_323, %c77_324] : memref<3x96xf32, #tpu.memory_space<smem>>
    %c2_325 = arith.constant 2 : index
    %c77_326 = arith.constant 77 : index
    %718 = memref.load %arg3[%c2_325, %c77_326] : memref<3x96xf32, #tpu.memory_space<smem>>
    %719 = vector.broadcast %716 : f32 to vector<8x128xf32>
    %720 = arith.mulf %19, %719 : vector<8x128xf32>
    %721 = vector.broadcast %717 : f32 to vector<8x128xf32>
    %722 = arith.mulf %20, %721 : vector<8x128xf32>
    %723 = arith.addf %720, %722 : vector<8x128xf32>
    %724 = vector.broadcast %718 : f32 to vector<8x128xf32>
    %725 = arith.mulf %21, %724 : vector<8x128xf32>
    %726 = arith.addf %723, %725 : vector<8x128xf32>
    %cst_327 = arith.constant 0.000000e+00 : f32
    %727 = vector.broadcast %cst_327 : f32 to vector<8x128xf32>
    %728 = arith.maximumf %726, %727 : vector<8x128xf32>
    %cst_328 = arith.constant dense<0xFF800000> : vector<128xf32>
    %729 = vector.multi_reduction <maximumf>, %728, %cst_328 [0] : vector<8x128xf32> to vector<128xf32>
    %730 = vector.shape_cast %729 : vector<128xf32> to vector<1x128xf32>
    %731 = arith.addf %715, %730 : vector<1x128xf32>
    %c0_329 = arith.constant 0 : index
    %c13_330 = arith.constant 13 : index
    %732 = arith.index_cast %1 : i32 to index
    %733 = vector.load %arg4[%c0_329, %c13_330, %732] : memref<1x32x128xf32, #tpu.memory_space<vmem>>, vector<1x1x128xf32>
    %734 = vector.shape_cast %733 : vector<1x1x128xf32> to vector<1x128xf32>
    %735 = vector.shape_cast %731 : vector<1x128xf32> to vector<1x1x128xf32>
    tpu.vector_store %arg4[%c0_329, %c13_330, %732], %735 {strides = array<i32>} : memref<1x32x128xf32, #tpu.memory_space<vmem>>, vector<1x1x128xf32>,
    %c0_331 = arith.constant 0 : index
    %c14 = arith.constant 14 : index
    %736 = memref.load %arg3[%c0_331, %c14] : memref<3x96xf32, #tpu.memory_space<smem>>
    %c1_332 = arith.constant 1 : index
    %c14_333 = arith.constant 14 : index
    %737 = memref.load %arg3[%c1_332, %c14_333] : memref<3x96xf32, #tpu.memory_space<smem>>
    %c2_334 = arith.constant 2 : index
    %c14_335 = arith.constant 14 : index
    %738 = memref.load %arg3[%c2_334, %c14_335] : memref<3x96xf32, #tpu.memory_space<smem>>
    %739 = vector.broadcast %736 : f32 to vector<8x128xf32>
    %740 = arith.mulf %19, %739 : vector<8x128xf32>
    %741 = vector.broadcast %737 : f32 to vector<8x128xf32>
    %742 = arith.mulf %20, %741 : vector<8x128xf32>
    %743 = arith.addf %740, %742 : vector<8x128xf32>
    %744 = vector.broadcast %738 : f32 to vector<8x128xf32>
    %745 = arith.mulf %21, %744 : vector<8x128xf32>
    %746 = arith.addf %743, %745 : vector<8x128xf32>
    %cst_336 = arith.constant 0.000000e+00 : f32
    %747 = vector.broadcast %cst_336 : f32 to vector<8x128xf32>
    %748 = arith.maximumf %746, %747 : vector<8x128xf32>
    %cst_337 = arith.constant dense<0xFF800000> : vector<128xf32>
    %749 = vector.multi_reduction <maximumf>, %748, %cst_337 [0] : vector<8x128xf32> to vector<128xf32>
    %750 = vector.shape_cast %749 : vector<128xf32> to vector<1x128xf32>
    %c0_338 = arith.constant 0 : index
    %c46 = arith.constant 46 : index
    %751 = memref.load %arg3[%c0_338, %c46] : memref<3x96xf32, #tpu.memory_space<smem>>
    %c1_339 = arith.constant 1 : index
    %c46_340 = arith.constant 46 : index
    %752 = memref.load %arg3[%c1_339, %c46_340] : memref<3x96xf32, #tpu.memory_space<smem>>
    %c2_341 = arith.constant 2 : index
    %c46_342 = arith.constant 46 : index
    %753 = memref.load %arg3[%c2_341, %c46_342] : memref<3x96xf32, #tpu.memory_space<smem>>
    %754 = vector.broadcast %751 : f32 to vector<8x128xf32>
    %755 = arith.mulf %19, %754 : vector<8x128xf32>
    %756 = vector.broadcast %752 : f32 to vector<8x128xf32>
    %757 = arith.mulf %20, %756 : vector<8x128xf32>
    %758 = arith.addf %755, %757 : vector<8x128xf32>
    %759 = vector.broadcast %753 : f32 to vector<8x128xf32>
    %760 = arith.mulf %21, %759 : vector<8x128xf32>
    %761 = arith.addf %758, %760 : vector<8x128xf32>
    %cst_343 = arith.constant 0.000000e+00 : f32
    %762 = vector.broadcast %cst_343 : f32 to vector<8x128xf32>
    %763 = arith.maximumf %761, %762 : vector<8x128xf32>
    %cst_344 = arith.constant dense<0xFF800000> : vector<128xf32>
    %764 = vector.multi_reduction <maximumf>, %763, %cst_344 [0] : vector<8x128xf32> to vector<128xf32>
    %765 = vector.shape_cast %764 : vector<128xf32> to vector<1x128xf32>
    %766 = arith.addf %750, %765 : vector<1x128xf32>
    %c0_345 = arith.constant 0 : index
    %c78 = arith.constant 78 : index
    %767 = memref.load %arg3[%c0_345, %c78] : memref<3x96xf32, #tpu.memory_space<smem>>
    %c1_346 = arith.constant 1 : index
    %c78_347 = arith.constant 78 : index
    %768 = memref.load %arg3[%c1_346, %c78_347] : memref<3x96xf32, #tpu.memory_space<smem>>
    %c2_348 = arith.constant 2 : index
    %c78_349 = arith.constant 78 : index
    %769 = memref.load %arg3[%c2_348, %c78_349] : memref<3x96xf32, #tpu.memory_space<smem>>
    %770 = vector.broadcast %767 : f32 to vector<8x128xf32>
    %771 = arith.mulf %19, %770 : vector<8x128xf32>
    %772 = vector.broadcast %768 : f32 to vector<8x128xf32>
    %773 = arith.mulf %20, %772 : vector<8x128xf32>
    %774 = arith.addf %771, %773 : vector<8x128xf32>
    %775 = vector.broadcast %769 : f32 to vector<8x128xf32>
    %776 = arith.mulf %21, %775 : vector<8x128xf32>
    %777 = arith.addf %774, %776 : vector<8x128xf32>
    %cst_350 = arith.constant 0.000000e+00 : f32
    %778 = vector.broadcast %cst_350 : f32 to vector<8x128xf32>
    %779 = arith.maximumf %777, %778 : vector<8x128xf32>
    %cst_351 = arith.constant dense<0xFF800000> : vector<128xf32>
    %780 = vector.multi_reduction <maximumf>, %779, %cst_351 [0] : vector<8x128xf32> to vector<128xf32>
    %781 = vector.shape_cast %780 : vector<128xf32> to vector<1x128xf32>
    %782 = arith.addf %766, %781 : vector<1x128xf32>
    %c0_352 = arith.constant 0 : index
    %c14_353 = arith.constant 14 : index
    %783 = arith.index_cast %1 : i32 to index
    %784 = vector.load %arg4[%c0_352, %c14_353, %783] : memref<1x32x128xf32, #tpu.memory_space<vmem>>, vector<1x1x128xf32>
    %785 = vector.shape_cast %784 : vector<1x1x128xf32> to vector<1x128xf32>
    %786 = vector.shape_cast %782 : vector<1x128xf32> to vector<1x1x128xf32>
    tpu.vector_store %arg4[%c0_352, %c14_353, %783], %786 {strides = array<i32>} : memref<1x32x128xf32, #tpu.memory_space<vmem>>, vector<1x1x128xf32>,
    %c0_354 = arith.constant 0 : index
    %c15 = arith.constant 15 : index
    %787 = memref.load %arg3[%c0_354, %c15] : memref<3x96xf32, #tpu.memory_space<smem>>
    %c1_355 = arith.constant 1 : index
    %c15_356 = arith.constant 15 : index
    %788 = memref.load %arg3[%c1_355, %c15_356] : memref<3x96xf32, #tpu.memory_space<smem>>
    %c2_357 = arith.constant 2 : index
    %c15_358 = arith.constant 15 : index
    %789 = memref.load %arg3[%c2_357, %c15_358] : memref<3x96xf32, #tpu.memory_space<smem>>
    %790 = vector.broadcast %787 : f32 to vector<8x128xf32>
    %791 = arith.mulf %19, %790 : vector<8x128xf32>
    %792 = vector.broadcast %788 : f32 to vector<8x128xf32>
    %793 = arith.mulf %20, %792 : vector<8x128xf32>
    %794 = arith.addf %791, %793 : vector<8x128xf32>
    %795 = vector.broadcast %789 : f32 to vector<8x128xf32>
    %796 = arith.mulf %21, %795 : vector<8x128xf32>
    %797 = arith.addf %794, %796 : vector<8x128xf32>
    %cst_359 = arith.constant 0.000000e+00 : f32
    %798 = vector.broadcast %cst_359 : f32 to vector<8x128xf32>
    %799 = arith.maximumf %797, %798 : vector<8x128xf32>
    %cst_360 = arith.constant dense<0xFF800000> : vector<128xf32>
    %800 = vector.multi_reduction <maximumf>, %799, %cst_360 [0] : vector<8x128xf32> to vector<128xf32>
    %801 = vector.shape_cast %800 : vector<128xf32> to vector<1x128xf32>
    %c0_361 = arith.constant 0 : index
    %c47 = arith.constant 47 : index
    %802 = memref.load %arg3[%c0_361, %c47] : memref<3x96xf32, #tpu.memory_space<smem>>
    %c1_362 = arith.constant 1 : index
    %c47_363 = arith.constant 47 : index
    %803 = memref.load %arg3[%c1_362, %c47_363] : memref<3x96xf32, #tpu.memory_space<smem>>
    %c2_364 = arith.constant 2 : index
    %c47_365 = arith.constant 47 : index
    %804 = memref.load %arg3[%c2_364, %c47_365] : memref<3x96xf32, #tpu.memory_space<smem>>
    %805 = vector.broadcast %802 : f32 to vector<8x128xf32>
    %806 = arith.mulf %19, %805 : vector<8x128xf32>
    %807 = vector.broadcast %803 : f32 to vector<8x128xf32>
    %808 = arith.mulf %20, %807 : vector<8x128xf32>
    %809 = arith.addf %806, %808 : vector<8x128xf32>
    %810 = vector.broadcast %804 : f32 to vector<8x128xf32>
    %811 = arith.mulf %21, %810 : vector<8x128xf32>
    %812 = arith.addf %809, %811 : vector<8x128xf32>
    %cst_366 = arith.constant 0.000000e+00 : f32
    %813 = vector.broadcast %cst_366 : f32 to vector<8x128xf32>
    %814 = arith.maximumf %812, %813 : vector<8x128xf32>
    %cst_367 = arith.constant dense<0xFF800000> : vector<128xf32>
    %815 = vector.multi_reduction <maximumf>, %814, %cst_367 [0] : vector<8x128xf32> to vector<128xf32>
    %816 = vector.shape_cast %815 : vector<128xf32> to vector<1x128xf32>
    %817 = arith.addf %801, %816 : vector<1x128xf32>
    %c0_368 = arith.constant 0 : index
    %c79 = arith.constant 79 : index
    %818 = memref.load %arg3[%c0_368, %c79] : memref<3x96xf32, #tpu.memory_space<smem>>
    %c1_369 = arith.constant 1 : index
    %c79_370 = arith.constant 79 : index
    %819 = memref.load %arg3[%c1_369, %c79_370] : memref<3x96xf32, #tpu.memory_space<smem>>
    %c2_371 = arith.constant 2 : index
    %c79_372 = arith.constant 79 : index
    %820 = memref.load %arg3[%c2_371, %c79_372] : memref<3x96xf32, #tpu.memory_space<smem>>
    %821 = vector.broadcast %818 : f32 to vector<8x128xf32>
    %822 = arith.mulf %19, %821 : vector<8x128xf32>
    %823 = vector.broadcast %819 : f32 to vector<8x128xf32>
    %824 = arith.mulf %20, %823 : vector<8x128xf32>
    %825 = arith.addf %822, %824 : vector<8x128xf32>
    %826 = vector.broadcast %820 : f32 to vector<8x128xf32>
    %827 = arith.mulf %21, %826 : vector<8x128xf32>
    %828 = arith.addf %825, %827 : vector<8x128xf32>
    %cst_373 = arith.constant 0.000000e+00 : f32
    %829 = vector.broadcast %cst_373 : f32 to vector<8x128xf32>
    %830 = arith.maximumf %828, %829 : vector<8x128xf32>
    %cst_374 = arith.constant dense<0xFF800000> : vector<128xf32>
    %831 = vector.multi_reduction <maximumf>, %830, %cst_374 [0] : vector<8x128xf32> to vector<128xf32>
    %832 = vector.shape_cast %831 : vector<128xf32> to vector<1x128xf32>
    %833 = arith.addf %817, %832 : vector<1x128xf32>
    %c0_375 = arith.constant 0 : index
    %c15_376 = arith.constant 15 : index
    %834 = arith.index_cast %1 : i32 to index
    %835 = vector.load %arg4[%c0_375, %c15_376, %834] : memref<1x32x128xf32, #tpu.memory_space<vmem>>, vector<1x1x128xf32>
    %836 = vector.shape_cast %835 : vector<1x1x128xf32> to vector<1x128xf32>
    %837 = vector.shape_cast %833 : vector<1x128xf32> to vector<1x1x128xf32>
    tpu.vector_store %arg4[%c0_375, %c15_376, %834], %837 {strides = array<i32>} : memref<1x32x128xf32, #tpu.memory_space<vmem>>, vector<1x1x128xf32>,
    %c0_377 = arith.constant 0 : index
    %c16 = arith.constant 16 : index
    %838 = memref.load %arg3[%c0_377, %c16] : memref<3x96xf32, #tpu.memory_space<smem>>
    %c1_378 = arith.constant 1 : index
    %c16_379 = arith.constant 16 : index
    %839 = memref.load %arg3[%c1_378, %c16_379] : memref<3x96xf32, #tpu.memory_space<smem>>
    %c2_380 = arith.constant 2 : index
    %c16_381 = arith.constant 16 : index
    %840 = memref.load %arg3[%c2_380, %c16_381] : memref<3x96xf32, #tpu.memory_space<smem>>
    %841 = vector.broadcast %838 : f32 to vector<8x128xf32>
    %842 = arith.mulf %19, %841 : vector<8x128xf32>
    %843 = vector.broadcast %839 : f32 to vector<8x128xf32>
    %844 = arith.mulf %20, %843 : vector<8x128xf32>
    %845 = arith.addf %842, %844 : vector<8x128xf32>
    %846 = vector.broadcast %840 : f32 to vector<8x128xf32>
    %847 = arith.mulf %21, %846 : vector<8x128xf32>
    %848 = arith.addf %845, %847 : vector<8x128xf32>
    %cst_382 = arith.constant 0.000000e+00 : f32
    %849 = vector.broadcast %cst_382 : f32 to vector<8x128xf32>
    %850 = arith.maximumf %848, %849 : vector<8x128xf32>
    %cst_383 = arith.constant dense<0xFF800000> : vector<128xf32>
    %851 = vector.multi_reduction <maximumf>, %850, %cst_383 [0] : vector<8x128xf32> to vector<128xf32>
    %852 = vector.shape_cast %851 : vector<128xf32> to vector<1x128xf32>
    %c0_384 = arith.constant 0 : index
    %c48 = arith.constant 48 : index
    %853 = memref.load %arg3[%c0_384, %c48] : memref<3x96xf32, #tpu.memory_space<smem>>
    %c1_385 = arith.constant 1 : index
    %c48_386 = arith.constant 48 : index
    %854 = memref.load %arg3[%c1_385, %c48_386] : memref<3x96xf32, #tpu.memory_space<smem>>
    %c2_387 = arith.constant 2 : index
    %c48_388 = arith.constant 48 : index
    %855 = memref.load %arg3[%c2_387, %c48_388] : memref<3x96xf32, #tpu.memory_space<smem>>
    %856 = vector.broadcast %853 : f32 to vector<8x128xf32>
    %857 = arith.mulf %19, %856 : vector<8x128xf32>
    %858 = vector.broadcast %854 : f32 to vector<8x128xf32>
    %859 = arith.mulf %20, %858 : vector<8x128xf32>
    %860 = arith.addf %857, %859 : vector<8x128xf32>
    %861 = vector.broadcast %855 : f32 to vector<8x128xf32>
    %862 = arith.mulf %21, %861 : vector<8x128xf32>
    %863 = arith.addf %860, %862 : vector<8x128xf32>
    %cst_389 = arith.constant 0.000000e+00 : f32
    %864 = vector.broadcast %cst_389 : f32 to vector<8x128xf32>
    %865 = arith.maximumf %863, %864 : vector<8x128xf32>
    %cst_390 = arith.constant dense<0xFF800000> : vector<128xf32>
    %866 = vector.multi_reduction <maximumf>, %865, %cst_390 [0] : vector<8x128xf32> to vector<128xf32>
    %867 = vector.shape_cast %866 : vector<128xf32> to vector<1x128xf32>
    %868 = arith.addf %852, %867 : vector<1x128xf32>
    %c0_391 = arith.constant 0 : index
    %c80 = arith.constant 80 : index
    %869 = memref.load %arg3[%c0_391, %c80] : memref<3x96xf32, #tpu.memory_space<smem>>
    %c1_392 = arith.constant 1 : index
    %c80_393 = arith.constant 80 : index
    %870 = memref.load %arg3[%c1_392, %c80_393] : memref<3x96xf32, #tpu.memory_space<smem>>
    %c2_394 = arith.constant 2 : index
    %c80_395 = arith.constant 80 : index
    %871 = memref.load %arg3[%c2_394, %c80_395] : memref<3x96xf32, #tpu.memory_space<smem>>
    %872 = vector.broadcast %869 : f32 to vector<8x128xf32>
    %873 = arith.mulf %19, %872 : vector<8x128xf32>
    %874 = vector.broadcast %870 : f32 to vector<8x128xf32>
    %875 = arith.mulf %20, %874 : vector<8x128xf32>
    %876 = arith.addf %873, %875 : vector<8x128xf32>
    %877 = vector.broadcast %871 : f32 to vector<8x128xf32>
    %878 = arith.mulf %21, %877 : vector<8x128xf32>
    %879 = arith.addf %876, %878 : vector<8x128xf32>
    %cst_396 = arith.constant 0.000000e+00 : f32
    %880 = vector.broadcast %cst_396 : f32 to vector<8x128xf32>
    %881 = arith.maximumf %879, %880 : vector<8x128xf32>
    %cst_397 = arith.constant dense<0xFF800000> : vector<128xf32>
    %882 = vector.multi_reduction <maximumf>, %881, %cst_397 [0] : vector<8x128xf32> to vector<128xf32>
    %883 = vector.shape_cast %882 : vector<128xf32> to vector<1x128xf32>
    %884 = arith.addf %868, %883 : vector<1x128xf32>
    %c0_398 = arith.constant 0 : index
    %c16_399 = arith.constant 16 : index
    %885 = arith.index_cast %1 : i32 to index
    %886 = vector.load %arg4[%c0_398, %c16_399, %885] : memref<1x32x128xf32, #tpu.memory_space<vmem>>, vector<1x1x128xf32>
    %887 = vector.shape_cast %886 : vector<1x1x128xf32> to vector<1x128xf32>
    %888 = vector.shape_cast %884 : vector<1x128xf32> to vector<1x1x128xf32>
    tpu.vector_store %arg4[%c0_398, %c16_399, %885], %888 {strides = array<i32>} : memref<1x32x128xf32, #tpu.memory_space<vmem>>, vector<1x1x128xf32>,
    %c0_400 = arith.constant 0 : index
    %c17 = arith.constant 17 : index
    %889 = memref.load %arg3[%c0_400, %c17] : memref<3x96xf32, #tpu.memory_space<smem>>
    %c1_401 = arith.constant 1 : index
    %c17_402 = arith.constant 17 : index
    %890 = memref.load %arg3[%c1_401, %c17_402] : memref<3x96xf32, #tpu.memory_space<smem>>
    %c2_403 = arith.constant 2 : index
    %c17_404 = arith.constant 17 : index
    %891 = memref.load %arg3[%c2_403, %c17_404] : memref<3x96xf32, #tpu.memory_space<smem>>
    %892 = vector.broadcast %889 : f32 to vector<8x128xf32>
    %893 = arith.mulf %19, %892 : vector<8x128xf32>
    %894 = vector.broadcast %890 : f32 to vector<8x128xf32>
    %895 = arith.mulf %20, %894 : vector<8x128xf32>
    %896 = arith.addf %893, %895 : vector<8x128xf32>
    %897 = vector.broadcast %891 : f32 to vector<8x128xf32>
    %898 = arith.mulf %21, %897 : vector<8x128xf32>
    %899 = arith.addf %896, %898 : vector<8x128xf32>
    %cst_405 = arith.constant 0.000000e+00 : f32
    %900 = vector.broadcast %cst_405 : f32 to vector<8x128xf32>
    %901 = arith.maximumf %899, %900 : vector<8x128xf32>
    %cst_406 = arith.constant dense<0xFF800000> : vector<128xf32>
    %902 = vector.multi_reduction <maximumf>, %901, %cst_406 [0] : vector<8x128xf32> to vector<128xf32>
    %903 = vector.shape_cast %902 : vector<128xf32> to vector<1x128xf32>
    %c0_407 = arith.constant 0 : index
    %c49 = arith.constant 49 : index
    %904 = memref.load %arg3[%c0_407, %c49] : memref<3x96xf32, #tpu.memory_space<smem>>
    %c1_408 = arith.constant 1 : index
    %c49_409 = arith.constant 49 : index
    %905 = memref.load %arg3[%c1_408, %c49_409] : memref<3x96xf32, #tpu.memory_space<smem>>
    %c2_410 = arith.constant 2 : index
    %c49_411 = arith.constant 49 : index
    %906 = memref.load %arg3[%c2_410, %c49_411] : memref<3x96xf32, #tpu.memory_space<smem>>
    %907 = vector.broadcast %904 : f32 to vector<8x128xf32>
    %908 = arith.mulf %19, %907 : vector<8x128xf32>
    %909 = vector.broadcast %905 : f32 to vector<8x128xf32>
    %910 = arith.mulf %20, %909 : vector<8x128xf32>
    %911 = arith.addf %908, %910 : vector<8x128xf32>
    %912 = vector.broadcast %906 : f32 to vector<8x128xf32>
    %913 = arith.mulf %21, %912 : vector<8x128xf32>
    %914 = arith.addf %911, %913 : vector<8x128xf32>
    %cst_412 = arith.constant 0.000000e+00 : f32
    %915 = vector.broadcast %cst_412 : f32 to vector<8x128xf32>
    %916 = arith.maximumf %914, %915 : vector<8x128xf32>
    %cst_413 = arith.constant dense<0xFF800000> : vector<128xf32>
    %917 = vector.multi_reduction <maximumf>, %916, %cst_413 [0] : vector<8x128xf32> to vector<128xf32>
    %918 = vector.shape_cast %917 : vector<128xf32> to vector<1x128xf32>
    %919 = arith.addf %903, %918 : vector<1x128xf32>
    %c0_414 = arith.constant 0 : index
    %c81 = arith.constant 81 : index
    %920 = memref.load %arg3[%c0_414, %c81] : memref<3x96xf32, #tpu.memory_space<smem>>
    %c1_415 = arith.constant 1 : index
    %c81_416 = arith.constant 81 : index
    %921 = memref.load %arg3[%c1_415, %c81_416] : memref<3x96xf32, #tpu.memory_space<smem>>
    %c2_417 = arith.constant 2 : index
    %c81_418 = arith.constant 81 : index
    %922 = memref.load %arg3[%c2_417, %c81_418] : memref<3x96xf32, #tpu.memory_space<smem>>
    %923 = vector.broadcast %920 : f32 to vector<8x128xf32>
    %924 = arith.mulf %19, %923 : vector<8x128xf32>
    %925 = vector.broadcast %921 : f32 to vector<8x128xf32>
    %926 = arith.mulf %20, %925 : vector<8x128xf32>
    %927 = arith.addf %924, %926 : vector<8x128xf32>
    %928 = vector.broadcast %922 : f32 to vector<8x128xf32>
    %929 = arith.mulf %21, %928 : vector<8x128xf32>
    %930 = arith.addf %927, %929 : vector<8x128xf32>
    %cst_419 = arith.constant 0.000000e+00 : f32
    %931 = vector.broadcast %cst_419 : f32 to vector<8x128xf32>
    %932 = arith.maximumf %930, %931 : vector<8x128xf32>
    %cst_420 = arith.constant dense<0xFF800000> : vector<128xf32>
    %933 = vector.multi_reduction <maximumf>, %932, %cst_420 [0] : vector<8x128xf32> to vector<128xf32>
    %934 = vector.shape_cast %933 : vector<128xf32> to vector<1x128xf32>
    %935 = arith.addf %919, %934 : vector<1x128xf32>
    %c0_421 = arith.constant 0 : index
    %c17_422 = arith.constant 17 : index
    %936 = arith.index_cast %1 : i32 to index
    %937 = vector.load %arg4[%c0_421, %c17_422, %936] : memref<1x32x128xf32, #tpu.memory_space<vmem>>, vector<1x1x128xf32>
    %938 = vector.shape_cast %937 : vector<1x1x128xf32> to vector<1x128xf32>
    %939 = vector.shape_cast %935 : vector<1x128xf32> to vector<1x1x128xf32>
    tpu.vector_store %arg4[%c0_421, %c17_422, %936], %939 {strides = array<i32>} : memref<1x32x128xf32, #tpu.memory_space<vmem>>, vector<1x1x128xf32>,
    %c0_423 = arith.constant 0 : index
    %c18 = arith.constant 18 : index
    %940 = memref.load %arg3[%c0_423, %c18] : memref<3x96xf32, #tpu.memory_space<smem>>
    %c1_424 = arith.constant 1 : index
    %c18_425 = arith.constant 18 : index
    %941 = memref.load %arg3[%c1_424, %c18_425] : memref<3x96xf32, #tpu.memory_space<smem>>
    %c2_426 = arith.constant 2 : index
    %c18_427 = arith.constant 18 : index
    %942 = memref.load %arg3[%c2_426, %c18_427] : memref<3x96xf32, #tpu.memory_space<smem>>
    %943 = vector.broadcast %940 : f32 to vector<8x128xf32>
    %944 = arith.mulf %19, %943 : vector<8x128xf32>
    %945 = vector.broadcast %941 : f32 to vector<8x128xf32>
    %946 = arith.mulf %20, %945 : vector<8x128xf32>
    %947 = arith.addf %944, %946 : vector<8x128xf32>
    %948 = vector.broadcast %942 : f32 to vector<8x128xf32>
    %949 = arith.mulf %21, %948 : vector<8x128xf32>
    %950 = arith.addf %947, %949 : vector<8x128xf32>
    %cst_428 = arith.constant 0.000000e+00 : f32
    %951 = vector.broadcast %cst_428 : f32 to vector<8x128xf32>
    %952 = arith.maximumf %950, %951 : vector<8x128xf32>
    %cst_429 = arith.constant dense<0xFF800000> : vector<128xf32>
    %953 = vector.multi_reduction <maximumf>, %952, %cst_429 [0] : vector<8x128xf32> to vector<128xf32>
    %954 = vector.shape_cast %953 : vector<128xf32> to vector<1x128xf32>
    %c0_430 = arith.constant 0 : index
    %c50 = arith.constant 50 : index
    %955 = memref.load %arg3[%c0_430, %c50] : memref<3x96xf32, #tpu.memory_space<smem>>
    %c1_431 = arith.constant 1 : index
    %c50_432 = arith.constant 50 : index
    %956 = memref.load %arg3[%c1_431, %c50_432] : memref<3x96xf32, #tpu.memory_space<smem>>
    %c2_433 = arith.constant 2 : index
    %c50_434 = arith.constant 50 : index
    %957 = memref.load %arg3[%c2_433, %c50_434] : memref<3x96xf32, #tpu.memory_space<smem>>
    %958 = vector.broadcast %955 : f32 to vector<8x128xf32>
    %959 = arith.mulf %19, %958 : vector<8x128xf32>
    %960 = vector.broadcast %956 : f32 to vector<8x128xf32>
    %961 = arith.mulf %20, %960 : vector<8x128xf32>
    %962 = arith.addf %959, %961 : vector<8x128xf32>
    %963 = vector.broadcast %957 : f32 to vector<8x128xf32>
    %964 = arith.mulf %21, %963 : vector<8x128xf32>
    %965 = arith.addf %962, %964 : vector<8x128xf32>
    %cst_435 = arith.constant 0.000000e+00 : f32
    %966 = vector.broadcast %cst_435 : f32 to vector<8x128xf32>
    %967 = arith.maximumf %965, %966 : vector<8x128xf32>
    %cst_436 = arith.constant dense<0xFF800000> : vector<128xf32>
    %968 = vector.multi_reduction <maximumf>, %967, %cst_436 [0] : vector<8x128xf32> to vector<128xf32>
    %969 = vector.shape_cast %968 : vector<128xf32> to vector<1x128xf32>
    %970 = arith.addf %954, %969 : vector<1x128xf32>
    %c0_437 = arith.constant 0 : index
    %c82 = arith.constant 82 : index
    %971 = memref.load %arg3[%c0_437, %c82] : memref<3x96xf32, #tpu.memory_space<smem>>
    %c1_438 = arith.constant 1 : index
    %c82_439 = arith.constant 82 : index
    %972 = memref.load %arg3[%c1_438, %c82_439] : memref<3x96xf32, #tpu.memory_space<smem>>
    %c2_440 = arith.constant 2 : index
    %c82_441 = arith.constant 82 : index
    %973 = memref.load %arg3[%c2_440, %c82_441] : memref<3x96xf32, #tpu.memory_space<smem>>
    %974 = vector.broadcast %971 : f32 to vector<8x128xf32>
    %975 = arith.mulf %19, %974 : vector<8x128xf32>
    %976 = vector.broadcast %972 : f32 to vector<8x128xf32>
    %977 = arith.mulf %20, %976 : vector<8x128xf32>
    %978 = arith.addf %975, %977 : vector<8x128xf32>
    %979 = vector.broadcast %973 : f32 to vector<8x128xf32>
    %980 = arith.mulf %21, %979 : vector<8x128xf32>
    %981 = arith.addf %978, %980 : vector<8x128xf32>
    %cst_442 = arith.constant 0.000000e+00 : f32
    %982 = vector.broadcast %cst_442 : f32 to vector<8x128xf32>
    %983 = arith.maximumf %981, %982 : vector<8x128xf32>
    %cst_443 = arith.constant dense<0xFF800000> : vector<128xf32>
    %984 = vector.multi_reduction <maximumf>, %983, %cst_443 [0] : vector<8x128xf32> to vector<128xf32>
    %985 = vector.shape_cast %984 : vector<128xf32> to vector<1x128xf32>
    %986 = arith.addf %970, %985 : vector<1x128xf32>
    %c0_444 = arith.constant 0 : index
    %c18_445 = arith.constant 18 : index
    %987 = arith.index_cast %1 : i32 to index
    %988 = vector.load %arg4[%c0_444, %c18_445, %987] : memref<1x32x128xf32, #tpu.memory_space<vmem>>, vector<1x1x128xf32>
    %989 = vector.shape_cast %988 : vector<1x1x128xf32> to vector<1x128xf32>
    %990 = vector.shape_cast %986 : vector<1x128xf32> to vector<1x1x128xf32>
    tpu.vector_store %arg4[%c0_444, %c18_445, %987], %990 {strides = array<i32>} : memref<1x32x128xf32, #tpu.memory_space<vmem>>, vector<1x1x128xf32>,
    %c0_446 = arith.constant 0 : index
    %c19 = arith.constant 19 : index
    %991 = memref.load %arg3[%c0_446, %c19] : memref<3x96xf32, #tpu.memory_space<smem>>
    %c1_447 = arith.constant 1 : index
    %c19_448 = arith.constant 19 : index
    %992 = memref.load %arg3[%c1_447, %c19_448] : memref<3x96xf32, #tpu.memory_space<smem>>
    %c2_449 = arith.constant 2 : index
    %c19_450 = arith.constant 19 : index
    %993 = memref.load %arg3[%c2_449, %c19_450] : memref<3x96xf32, #tpu.memory_space<smem>>
    %994 = vector.broadcast %991 : f32 to vector<8x128xf32>
    %995 = arith.mulf %19, %994 : vector<8x128xf32>
    %996 = vector.broadcast %992 : f32 to vector<8x128xf32>
    %997 = arith.mulf %20, %996 : vector<8x128xf32>
    %998 = arith.addf %995, %997 : vector<8x128xf32>
    %999 = vector.broadcast %993 : f32 to vector<8x128xf32>
    %1000 = arith.mulf %21, %999 : vector<8x128xf32>
    %1001 = arith.addf %998, %1000 : vector<8x128xf32>
    %cst_451 = arith.constant 0.000000e+00 : f32
    %1002 = vector.broadcast %cst_451 : f32 to vector<8x128xf32>
    %1003 = arith.maximumf %1001, %1002 : vector<8x128xf32>
    %cst_452 = arith.constant dense<0xFF800000> : vector<128xf32>
    %1004 = vector.multi_reduction <maximumf>, %1003, %cst_452 [0] : vector<8x128xf32> to vector<128xf32>
    %1005 = vector.shape_cast %1004 : vector<128xf32> to vector<1x128xf32>
    %c0_453 = arith.constant 0 : index
    %c51 = arith.constant 51 : index
    %1006 = memref.load %arg3[%c0_453, %c51] : memref<3x96xf32, #tpu.memory_space<smem>>
    %c1_454 = arith.constant 1 : index
    %c51_455 = arith.constant 51 : index
    %1007 = memref.load %arg3[%c1_454, %c51_455] : memref<3x96xf32, #tpu.memory_space<smem>>
    %c2_456 = arith.constant 2 : index
    %c51_457 = arith.constant 51 : index
    %1008 = memref.load %arg3[%c2_456, %c51_457] : memref<3x96xf32, #tpu.memory_space<smem>>
    %1009 = vector.broadcast %1006 : f32 to vector<8x128xf32>
    %1010 = arith.mulf %19, %1009 : vector<8x128xf32>
    %1011 = vector.broadcast %1007 : f32 to vector<8x128xf32>
    %1012 = arith.mulf %20, %1011 : vector<8x128xf32>
    %1013 = arith.addf %1010, %1012 : vector<8x128xf32>
    %1014 = vector.broadcast %1008 : f32 to vector<8x128xf32>
    %1015 = arith.mulf %21, %1014 : vector<8x128xf32>
    %1016 = arith.addf %1013, %1015 : vector<8x128xf32>
    %cst_458 = arith.constant 0.000000e+00 : f32
    %1017 = vector.broadcast %cst_458 : f32 to vector<8x128xf32>
    %1018 = arith.maximumf %1016, %1017 : vector<8x128xf32>
    %cst_459 = arith.constant dense<0xFF800000> : vector<128xf32>
    %1019 = vector.multi_reduction <maximumf>, %1018, %cst_459 [0] : vector<8x128xf32> to vector<128xf32>
    %1020 = vector.shape_cast %1019 : vector<128xf32> to vector<1x128xf32>
    %1021 = arith.addf %1005, %1020 : vector<1x128xf32>
    %c0_460 = arith.constant 0 : index
    %c83 = arith.constant 83 : index
    %1022 = memref.load %arg3[%c0_460, %c83] : memref<3x96xf32, #tpu.memory_space<smem>>
    %c1_461 = arith.constant 1 : index
    %c83_462 = arith.constant 83 : index
    %1023 = memref.load %arg3[%c1_461, %c83_462] : memref<3x96xf32, #tpu.memory_space<smem>>
    %c2_463 = arith.constant 2 : index
    %c83_464 = arith.constant 83 : index
    %1024 = memref.load %arg3[%c2_463, %c83_464] : memref<3x96xf32, #tpu.memory_space<smem>>
    %1025 = vector.broadcast %1022 : f32 to vector<8x128xf32>
    %1026 = arith.mulf %19, %1025 : vector<8x128xf32>
    %1027 = vector.broadcast %1023 : f32 to vector<8x128xf32>
    %1028 = arith.mulf %20, %1027 : vector<8x128xf32>
    %1029 = arith.addf %1026, %1028 : vector<8x128xf32>
    %1030 = vector.broadcast %1024 : f32 to vector<8x128xf32>
    %1031 = arith.mulf %21, %1030 : vector<8x128xf32>
    %1032 = arith.addf %1029, %1031 : vector<8x128xf32>
    %cst_465 = arith.constant 0.000000e+00 : f32
    %1033 = vector.broadcast %cst_465 : f32 to vector<8x128xf32>
    %1034 = arith.maximumf %1032, %1033 : vector<8x128xf32>
    %cst_466 = arith.constant dense<0xFF800000> : vector<128xf32>
    %1035 = vector.multi_reduction <maximumf>, %1034, %cst_466 [0] : vector<8x128xf32> to vector<128xf32>
    %1036 = vector.shape_cast %1035 : vector<128xf32> to vector<1x128xf32>
    %1037 = arith.addf %1021, %1036 : vector<1x128xf32>
    %c0_467 = arith.constant 0 : index
    %c19_468 = arith.constant 19 : index
    %1038 = arith.index_cast %1 : i32 to index
    %1039 = vector.load %arg4[%c0_467, %c19_468, %1038] : memref<1x32x128xf32, #tpu.memory_space<vmem>>, vector<1x1x128xf32>
    %1040 = vector.shape_cast %1039 : vector<1x1x128xf32> to vector<1x128xf32>
    %1041 = vector.shape_cast %1037 : vector<1x128xf32> to vector<1x1x128xf32>
    tpu.vector_store %arg4[%c0_467, %c19_468, %1038], %1041 {strides = array<i32>} : memref<1x32x128xf32, #tpu.memory_space<vmem>>, vector<1x1x128xf32>,
    %c0_469 = arith.constant 0 : index
    %c20 = arith.constant 20 : index
    %1042 = memref.load %arg3[%c0_469, %c20] : memref<3x96xf32, #tpu.memory_space<smem>>
    %c1_470 = arith.constant 1 : index
    %c20_471 = arith.constant 20 : index
    %1043 = memref.load %arg3[%c1_470, %c20_471] : memref<3x96xf32, #tpu.memory_space<smem>>
    %c2_472 = arith.constant 2 : index
    %c20_473 = arith.constant 20 : index
    %1044 = memref.load %arg3[%c2_472, %c20_473] : memref<3x96xf32, #tpu.memory_space<smem>>
    %1045 = vector.broadcast %1042 : f32 to vector<8x128xf32>
    %1046 = arith.mulf %19, %1045 : vector<8x128xf32>
    %1047 = vector.broadcast %1043 : f32 to vector<8x128xf32>
    %1048 = arith.mulf %20, %1047 : vector<8x128xf32>
    %1049 = arith.addf %1046, %1048 : vector<8x128xf32>
    %1050 = vector.broadcast %1044 : f32 to vector<8x128xf32>
    %1051 = arith.mulf %21, %1050 : vector<8x128xf32>
    %1052 = arith.addf %1049, %1051 : vector<8x128xf32>
    %cst_474 = arith.constant 0.000000e+00 : f32
    %1053 = vector.broadcast %cst_474 : f32 to vector<8x128xf32>
    %1054 = arith.maximumf %1052, %1053 : vector<8x128xf32>
    %cst_475 = arith.constant dense<0xFF800000> : vector<128xf32>
    %1055 = vector.multi_reduction <maximumf>, %1054, %cst_475 [0] : vector<8x128xf32> to vector<128xf32>
    %1056 = vector.shape_cast %1055 : vector<128xf32> to vector<1x128xf32>
    %c0_476 = arith.constant 0 : index
    %c52 = arith.constant 52 : index
    %1057 = memref.load %arg3[%c0_476, %c52] : memref<3x96xf32, #tpu.memory_space<smem>>
    %c1_477 = arith.constant 1 : index
    %c52_478 = arith.constant 52 : index
    %1058 = memref.load %arg3[%c1_477, %c52_478] : memref<3x96xf32, #tpu.memory_space<smem>>
    %c2_479 = arith.constant 2 : index
    %c52_480 = arith.constant 52 : index
    %1059 = memref.load %arg3[%c2_479, %c52_480] : memref<3x96xf32, #tpu.memory_space<smem>>
    %1060 = vector.broadcast %1057 : f32 to vector<8x128xf32>
    %1061 = arith.mulf %19, %1060 : vector<8x128xf32>
    %1062 = vector.broadcast %1058 : f32 to vector<8x128xf32>
    %1063 = arith.mulf %20, %1062 : vector<8x128xf32>
    %1064 = arith.addf %1061, %1063 : vector<8x128xf32>
    %1065 = vector.broadcast %1059 : f32 to vector<8x128xf32>
    %1066 = arith.mulf %21, %1065 : vector<8x128xf32>
    %1067 = arith.addf %1064, %1066 : vector<8x128xf32>
    %cst_481 = arith.constant 0.000000e+00 : f32
    %1068 = vector.broadcast %cst_481 : f32 to vector<8x128xf32>
    %1069 = arith.maximumf %1067, %1068 : vector<8x128xf32>
    %cst_482 = arith.constant dense<0xFF800000> : vector<128xf32>
    %1070 = vector.multi_reduction <maximumf>, %1069, %cst_482 [0] : vector<8x128xf32> to vector<128xf32>
    %1071 = vector.shape_cast %1070 : vector<128xf32> to vector<1x128xf32>
    %1072 = arith.addf %1056, %1071 : vector<1x128xf32>
    %c0_483 = arith.constant 0 : index
    %c84 = arith.constant 84 : index
    %1073 = memref.load %arg3[%c0_483, %c84] : memref<3x96xf32, #tpu.memory_space<smem>>
    %c1_484 = arith.constant 1 : index
    %c84_485 = arith.constant 84 : index
    %1074 = memref.load %arg3[%c1_484, %c84_485] : memref<3x96xf32, #tpu.memory_space<smem>>
    %c2_486 = arith.constant 2 : index
    %c84_487 = arith.constant 84 : index
    %1075 = memref.load %arg3[%c2_486, %c84_487] : memref<3x96xf32, #tpu.memory_space<smem>>
    %1076 = vector.broadcast %1073 : f32 to vector<8x128xf32>
    %1077 = arith.mulf %19, %1076 : vector<8x128xf32>
    %1078 = vector.broadcast %1074 : f32 to vector<8x128xf32>
    %1079 = arith.mulf %20, %1078 : vector<8x128xf32>
    %1080 = arith.addf %1077, %1079 : vector<8x128xf32>
    %1081 = vector.broadcast %1075 : f32 to vector<8x128xf32>
    %1082 = arith.mulf %21, %1081 : vector<8x128xf32>
    %1083 = arith.addf %1080, %1082 : vector<8x128xf32>
    %cst_488 = arith.constant 0.000000e+00 : f32
    %1084 = vector.broadcast %cst_488 : f32 to vector<8x128xf32>
    %1085 = arith.maximumf %1083, %1084 : vector<8x128xf32>
    %cst_489 = arith.constant dense<0xFF800000> : vector<128xf32>
    %1086 = vector.multi_reduction <maximumf>, %1085, %cst_489 [0] : vector<8x128xf32> to vector<128xf32>
    %1087 = vector.shape_cast %1086 : vector<128xf32> to vector<1x128xf32>
    %1088 = arith.addf %1072, %1087 : vector<1x128xf32>
    %c0_490 = arith.constant 0 : index
    %c20_491 = arith.constant 20 : index
    %1089 = arith.index_cast %1 : i32 to index
    %1090 = vector.load %arg4[%c0_490, %c20_491, %1089] : memref<1x32x128xf32, #tpu.memory_space<vmem>>, vector<1x1x128xf32>
    %1091 = vector.shape_cast %1090 : vector<1x1x128xf32> to vector<1x128xf32>
    %1092 = vector.shape_cast %1088 : vector<1x128xf32> to vector<1x1x128xf32>
    tpu.vector_store %arg4[%c0_490, %c20_491, %1089], %1092 {strides = array<i32>} : memref<1x32x128xf32, #tpu.memory_space<vmem>>, vector<1x1x128xf32>,
    %c0_492 = arith.constant 0 : index
    %c21 = arith.constant 21 : index
    %1093 = memref.load %arg3[%c0_492, %c21] : memref<3x96xf32, #tpu.memory_space<smem>>
    %c1_493 = arith.constant 1 : index
    %c21_494 = arith.constant 21 : index
    %1094 = memref.load %arg3[%c1_493, %c21_494] : memref<3x96xf32, #tpu.memory_space<smem>>
    %c2_495 = arith.constant 2 : index
    %c21_496 = arith.constant 21 : index
    %1095 = memref.load %arg3[%c2_495, %c21_496] : memref<3x96xf32, #tpu.memory_space<smem>>
    %1096 = vector.broadcast %1093 : f32 to vector<8x128xf32>
    %1097 = arith.mulf %19, %1096 : vector<8x128xf32>
    %1098 = vector.broadcast %1094 : f32 to vector<8x128xf32>
    %1099 = arith.mulf %20, %1098 : vector<8x128xf32>
    %1100 = arith.addf %1097, %1099 : vector<8x128xf32>
    %1101 = vector.broadcast %1095 : f32 to vector<8x128xf32>
    %1102 = arith.mulf %21, %1101 : vector<8x128xf32>
    %1103 = arith.addf %1100, %1102 : vector<8x128xf32>
    %cst_497 = arith.constant 0.000000e+00 : f32
    %1104 = vector.broadcast %cst_497 : f32 to vector<8x128xf32>
    %1105 = arith.maximumf %1103, %1104 : vector<8x128xf32>
    %cst_498 = arith.constant dense<0xFF800000> : vector<128xf32>
    %1106 = vector.multi_reduction <maximumf>, %1105, %cst_498 [0] : vector<8x128xf32> to vector<128xf32>
    %1107 = vector.shape_cast %1106 : vector<128xf32> to vector<1x128xf32>
    %c0_499 = arith.constant 0 : index
    %c53 = arith.constant 53 : index
    %1108 = memref.load %arg3[%c0_499, %c53] : memref<3x96xf32, #tpu.memory_space<smem>>
    %c1_500 = arith.constant 1 : index
    %c53_501 = arith.constant 53 : index
    %1109 = memref.load %arg3[%c1_500, %c53_501] : memref<3x96xf32, #tpu.memory_space<smem>>
    %c2_502 = arith.constant 2 : index
    %c53_503 = arith.constant 53 : index
    %1110 = memref.load %arg3[%c2_502, %c53_503] : memref<3x96xf32, #tpu.memory_space<smem>>
    %1111 = vector.broadcast %1108 : f32 to vector<8x128xf32>
    %1112 = arith.mulf %19, %1111 : vector<8x128xf32>
    %1113 = vector.broadcast %1109 : f32 to vector<8x128xf32>
    %1114 = arith.mulf %20, %1113 : vector<8x128xf32>
    %1115 = arith.addf %1112, %1114 : vector<8x128xf32>
    %1116 = vector.broadcast %1110 : f32 to vector<8x128xf32>
    %1117 = arith.mulf %21, %1116 : vector<8x128xf32>
    %1118 = arith.addf %1115, %1117 : vector<8x128xf32>
    %cst_504 = arith.constant 0.000000e+00 : f32
    %1119 = vector.broadcast %cst_504 : f32 to vector<8x128xf32>
    %1120 = arith.maximumf %1118, %1119 : vector<8x128xf32>
    %cst_505 = arith.constant dense<0xFF800000> : vector<128xf32>
    %1121 = vector.multi_reduction <maximumf>, %1120, %cst_505 [0] : vector<8x128xf32> to vector<128xf32>
    %1122 = vector.shape_cast %1121 : vector<128xf32> to vector<1x128xf32>
    %1123 = arith.addf %1107, %1122 : vector<1x128xf32>
    %c0_506 = arith.constant 0 : index
    %c85 = arith.constant 85 : index
    %1124 = memref.load %arg3[%c0_506, %c85] : memref<3x96xf32, #tpu.memory_space<smem>>
    %c1_507 = arith.constant 1 : index
    %c85_508 = arith.constant 85 : index
    %1125 = memref.load %arg3[%c1_507, %c85_508] : memref<3x96xf32, #tpu.memory_space<smem>>
    %c2_509 = arith.constant 2 : index
    %c85_510 = arith.constant 85 : index
    %1126 = memref.load %arg3[%c2_509, %c85_510] : memref<3x96xf32, #tpu.memory_space<smem>>
    %1127 = vector.broadcast %1124 : f32 to vector<8x128xf32>
    %1128 = arith.mulf %19, %1127 : vector<8x128xf32>
    %1129 = vector.broadcast %1125 : f32 to vector<8x128xf32>
    %1130 = arith.mulf %20, %1129 : vector<8x128xf32>
    %1131 = arith.addf %1128, %1130 : vector<8x128xf32>
    %1132 = vector.broadcast %1126 : f32 to vector<8x128xf32>
    %1133 = arith.mulf %21, %1132 : vector<8x128xf32>
    %1134 = arith.addf %1131, %1133 : vector<8x128xf32>
    %cst_511 = arith.constant 0.000000e+00 : f32
    %1135 = vector.broadcast %cst_511 : f32 to vector<8x128xf32>
    %1136 = arith.maximumf %1134, %1135 : vector<8x128xf32>
    %cst_512 = arith.constant dense<0xFF800000> : vector<128xf32>
    %1137 = vector.multi_reduction <maximumf>, %1136, %cst_512 [0] : vector<8x128xf32> to vector<128xf32>
    %1138 = vector.shape_cast %1137 : vector<128xf32> to vector<1x128xf32>
    %1139 = arith.addf %1123, %1138 : vector<1x128xf32>
    %c0_513 = arith.constant 0 : index
    %c21_514 = arith.constant 21 : index
    %1140 = arith.index_cast %1 : i32 to index
    %1141 = vector.load %arg4[%c0_513, %c21_514, %1140] : memref<1x32x128xf32, #tpu.memory_space<vmem>>, vector<1x1x128xf32>
    %1142 = vector.shape_cast %1141 : vector<1x1x128xf32> to vector<1x128xf32>
    %1143 = vector.shape_cast %1139 : vector<1x128xf32> to vector<1x1x128xf32>
    tpu.vector_store %arg4[%c0_513, %c21_514, %1140], %1143 {strides = array<i32>} : memref<1x32x128xf32, #tpu.memory_space<vmem>>, vector<1x1x128xf32>,
    %c0_515 = arith.constant 0 : index
    %c22 = arith.constant 22 : index
    %1144 = memref.load %arg3[%c0_515, %c22] : memref<3x96xf32, #tpu.memory_space<smem>>
    %c1_516 = arith.constant 1 : index
    %c22_517 = arith.constant 22 : index
    %1145 = memref.load %arg3[%c1_516, %c22_517] : memref<3x96xf32, #tpu.memory_space<smem>>
    %c2_518 = arith.constant 2 : index
    %c22_519 = arith.constant 22 : index
    %1146 = memref.load %arg3[%c2_518, %c22_519] : memref<3x96xf32, #tpu.memory_space<smem>>
    %1147 = vector.broadcast %1144 : f32 to vector<8x128xf32>
    %1148 = arith.mulf %19, %1147 : vector<8x128xf32>
    %1149 = vector.broadcast %1145 : f32 to vector<8x128xf32>
    %1150 = arith.mulf %20, %1149 : vector<8x128xf32>
    %1151 = arith.addf %1148, %1150 : vector<8x128xf32>
    %1152 = vector.broadcast %1146 : f32 to vector<8x128xf32>
    %1153 = arith.mulf %21, %1152 : vector<8x128xf32>
    %1154 = arith.addf %1151, %1153 : vector<8x128xf32>
    %cst_520 = arith.constant 0.000000e+00 : f32
    %1155 = vector.broadcast %cst_520 : f32 to vector<8x128xf32>
    %1156 = arith.maximumf %1154, %1155 : vector<8x128xf32>
    %cst_521 = arith.constant dense<0xFF800000> : vector<128xf32>
    %1157 = vector.multi_reduction <maximumf>, %1156, %cst_521 [0] : vector<8x128xf32> to vector<128xf32>
    %1158 = vector.shape_cast %1157 : vector<128xf32> to vector<1x128xf32>
    %c0_522 = arith.constant 0 : index
    %c54 = arith.constant 54 : index
    %1159 = memref.load %arg3[%c0_522, %c54] : memref<3x96xf32, #tpu.memory_space<smem>>
    %c1_523 = arith.constant 1 : index
    %c54_524 = arith.constant 54 : index
    %1160 = memref.load %arg3[%c1_523, %c54_524] : memref<3x96xf32, #tpu.memory_space<smem>>
    %c2_525 = arith.constant 2 : index
    %c54_526 = arith.constant 54 : index
    %1161 = memref.load %arg3[%c2_525, %c54_526] : memref<3x96xf32, #tpu.memory_space<smem>>
    %1162 = vector.broadcast %1159 : f32 to vector<8x128xf32>
    %1163 = arith.mulf %19, %1162 : vector<8x128xf32>
    %1164 = vector.broadcast %1160 : f32 to vector<8x128xf32>
    %1165 = arith.mulf %20, %1164 : vector<8x128xf32>
    %1166 = arith.addf %1163, %1165 : vector<8x128xf32>
    %1167 = vector.broadcast %1161 : f32 to vector<8x128xf32>
    %1168 = arith.mulf %21, %1167 : vector<8x128xf32>
    %1169 = arith.addf %1166, %1168 : vector<8x128xf32>
    %cst_527 = arith.constant 0.000000e+00 : f32
    %1170 = vector.broadcast %cst_527 : f32 to vector<8x128xf32>
    %1171 = arith.maximumf %1169, %1170 : vector<8x128xf32>
    %cst_528 = arith.constant dense<0xFF800000> : vector<128xf32>
    %1172 = vector.multi_reduction <maximumf>, %1171, %cst_528 [0] : vector<8x128xf32> to vector<128xf32>
    %1173 = vector.shape_cast %1172 : vector<128xf32> to vector<1x128xf32>
    %1174 = arith.addf %1158, %1173 : vector<1x128xf32>
    %c0_529 = arith.constant 0 : index
    %c86 = arith.constant 86 : index
    %1175 = memref.load %arg3[%c0_529, %c86] : memref<3x96xf32, #tpu.memory_space<smem>>
    %c1_530 = arith.constant 1 : index
    %c86_531 = arith.constant 86 : index
    %1176 = memref.load %arg3[%c1_530, %c86_531] : memref<3x96xf32, #tpu.memory_space<smem>>
    %c2_532 = arith.constant 2 : index
    %c86_533 = arith.constant 86 : index
    %1177 = memref.load %arg3[%c2_532, %c86_533] : memref<3x96xf32, #tpu.memory_space<smem>>
    %1178 = vector.broadcast %1175 : f32 to vector<8x128xf32>
    %1179 = arith.mulf %19, %1178 : vector<8x128xf32>
    %1180 = vector.broadcast %1176 : f32 to vector<8x128xf32>
    %1181 = arith.mulf %20, %1180 : vector<8x128xf32>
    %1182 = arith.addf %1179, %1181 : vector<8x128xf32>
    %1183 = vector.broadcast %1177 : f32 to vector<8x128xf32>
    %1184 = arith.mulf %21, %1183 : vector<8x128xf32>
    %1185 = arith.addf %1182, %1184 : vector<8x128xf32>
    %cst_534 = arith.constant 0.000000e+00 : f32
    %1186 = vector.broadcast %cst_534 : f32 to vector<8x128xf32>
    %1187 = arith.maximumf %1185, %1186 : vector<8x128xf32>
    %cst_535 = arith.constant dense<0xFF800000> : vector<128xf32>
    %1188 = vector.multi_reduction <maximumf>, %1187, %cst_535 [0] : vector<8x128xf32> to vector<128xf32>
    %1189 = vector.shape_cast %1188 : vector<128xf32> to vector<1x128xf32>
    %1190 = arith.addf %1174, %1189 : vector<1x128xf32>
    %c0_536 = arith.constant 0 : index
    %c22_537 = arith.constant 22 : index
    %1191 = arith.index_cast %1 : i32 to index
    %1192 = vector.load %arg4[%c0_536, %c22_537, %1191] : memref<1x32x128xf32, #tpu.memory_space<vmem>>, vector<1x1x128xf32>
    %1193 = vector.shape_cast %1192 : vector<1x1x128xf32> to vector<1x128xf32>
    %1194 = vector.shape_cast %1190 : vector<1x128xf32> to vector<1x1x128xf32>
    tpu.vector_store %arg4[%c0_536, %c22_537, %1191], %1194 {strides = array<i32>} : memref<1x32x128xf32, #tpu.memory_space<vmem>>, vector<1x1x128xf32>,
    %c0_538 = arith.constant 0 : index
    %c23 = arith.constant 23 : index
    %1195 = memref.load %arg3[%c0_538, %c23] : memref<3x96xf32, #tpu.memory_space<smem>>
    %c1_539 = arith.constant 1 : index
    %c23_540 = arith.constant 23 : index
    %1196 = memref.load %arg3[%c1_539, %c23_540] : memref<3x96xf32, #tpu.memory_space<smem>>
    %c2_541 = arith.constant 2 : index
    %c23_542 = arith.constant 23 : index
    %1197 = memref.load %arg3[%c2_541, %c23_542] : memref<3x96xf32, #tpu.memory_space<smem>>
    %1198 = vector.broadcast %1195 : f32 to vector<8x128xf32>
    %1199 = arith.mulf %19, %1198 : vector<8x128xf32>
    %1200 = vector.broadcast %1196 : f32 to vector<8x128xf32>
    %1201 = arith.mulf %20, %1200 : vector<8x128xf32>
    %1202 = arith.addf %1199, %1201 : vector<8x128xf32>
    %1203 = vector.broadcast %1197 : f32 to vector<8x128xf32>
    %1204 = arith.mulf %21, %1203 : vector<8x128xf32>
    %1205 = arith.addf %1202, %1204 : vector<8x128xf32>
    %cst_543 = arith.constant 0.000000e+00 : f32
    %1206 = vector.broadcast %cst_543 : f32 to vector<8x128xf32>
    %1207 = arith.maximumf %1205, %1206 : vector<8x128xf32>
    %cst_544 = arith.constant dense<0xFF800000> : vector<128xf32>
    %1208 = vector.multi_reduction <maximumf>, %1207, %cst_544 [0] : vector<8x128xf32> to vector<128xf32>
    %1209 = vector.shape_cast %1208 : vector<128xf32> to vector<1x128xf32>
    %c0_545 = arith.constant 0 : index
    %c55 = arith.constant 55 : index
    %1210 = memref.load %arg3[%c0_545, %c55] : memref<3x96xf32, #tpu.memory_space<smem>>
    %c1_546 = arith.constant 1 : index
    %c55_547 = arith.constant 55 : index
    %1211 = memref.load %arg3[%c1_546, %c55_547] : memref<3x96xf32, #tpu.memory_space<smem>>
    %c2_548 = arith.constant 2 : index
    %c55_549 = arith.constant 55 : index
    %1212 = memref.load %arg3[%c2_548, %c55_549] : memref<3x96xf32, #tpu.memory_space<smem>>
    %1213 = vector.broadcast %1210 : f32 to vector<8x128xf32>
    %1214 = arith.mulf %19, %1213 : vector<8x128xf32>
    %1215 = vector.broadcast %1211 : f32 to vector<8x128xf32>
    %1216 = arith.mulf %20, %1215 : vector<8x128xf32>
    %1217 = arith.addf %1214, %1216 : vector<8x128xf32>
    %1218 = vector.broadcast %1212 : f32 to vector<8x128xf32>
    %1219 = arith.mulf %21, %1218 : vector<8x128xf32>
    %1220 = arith.addf %1217, %1219 : vector<8x128xf32>
    %cst_550 = arith.constant 0.000000e+00 : f32
    %1221 = vector.broadcast %cst_550 : f32 to vector<8x128xf32>
    %1222 = arith.maximumf %1220, %1221 : vector<8x128xf32>
    %cst_551 = arith.constant dense<0xFF800000> : vector<128xf32>
    %1223 = vector.multi_reduction <maximumf>, %1222, %cst_551 [0] : vector<8x128xf32> to vector<128xf32>
    %1224 = vector.shape_cast %1223 : vector<128xf32> to vector<1x128xf32>
    %1225 = arith.addf %1209, %1224 : vector<1x128xf32>
    %c0_552 = arith.constant 0 : index
    %c87 = arith.constant 87 : index
    %1226 = memref.load %arg3[%c0_552, %c87] : memref<3x96xf32, #tpu.memory_space<smem>>
    %c1_553 = arith.constant 1 : index
    %c87_554 = arith.constant 87 : index
    %1227 = memref.load %arg3[%c1_553, %c87_554] : memref<3x96xf32, #tpu.memory_space<smem>>
    %c2_555 = arith.constant 2 : index
    %c87_556 = arith.constant 87 : index
    %1228 = memref.load %arg3[%c2_555, %c87_556] : memref<3x96xf32, #tpu.memory_space<smem>>
    %1229 = vector.broadcast %1226 : f32 to vector<8x128xf32>
    %1230 = arith.mulf %19, %1229 : vector<8x128xf32>
    %1231 = vector.broadcast %1227 : f32 to vector<8x128xf32>
    %1232 = arith.mulf %20, %1231 : vector<8x128xf32>
    %1233 = arith.addf %1230, %1232 : vector<8x128xf32>
    %1234 = vector.broadcast %1228 : f32 to vector<8x128xf32>
    %1235 = arith.mulf %21, %1234 : vector<8x128xf32>
    %1236 = arith.addf %1233, %1235 : vector<8x128xf32>
    %cst_557 = arith.constant 0.000000e+00 : f32
    %1237 = vector.broadcast %cst_557 : f32 to vector<8x128xf32>
    %1238 = arith.maximumf %1236, %1237 : vector<8x128xf32>
    %cst_558 = arith.constant dense<0xFF800000> : vector<128xf32>
    %1239 = vector.multi_reduction <maximumf>, %1238, %cst_558 [0] : vector<8x128xf32> to vector<128xf32>
    %1240 = vector.shape_cast %1239 : vector<128xf32> to vector<1x128xf32>
    %1241 = arith.addf %1225, %1240 : vector<1x128xf32>
    %c0_559 = arith.constant 0 : index
    %c23_560 = arith.constant 23 : index
    %1242 = arith.index_cast %1 : i32 to index
    %1243 = vector.load %arg4[%c0_559, %c23_560, %1242] : memref<1x32x128xf32, #tpu.memory_space<vmem>>, vector<1x1x128xf32>
    %1244 = vector.shape_cast %1243 : vector<1x1x128xf32> to vector<1x128xf32>
    %1245 = vector.shape_cast %1241 : vector<1x128xf32> to vector<1x1x128xf32>
    tpu.vector_store %arg4[%c0_559, %c23_560, %1242], %1245 {strides = array<i32>} : memref<1x32x128xf32, #tpu.memory_space<vmem>>, vector<1x1x128xf32>,
    %c0_561 = arith.constant 0 : index
    %c24 = arith.constant 24 : index
    %1246 = memref.load %arg3[%c0_561, %c24] : memref<3x96xf32, #tpu.memory_space<smem>>
    %c1_562 = arith.constant 1 : index
    %c24_563 = arith.constant 24 : index
    %1247 = memref.load %arg3[%c1_562, %c24_563] : memref<3x96xf32, #tpu.memory_space<smem>>
    %c2_564 = arith.constant 2 : index
    %c24_565 = arith.constant 24 : index
    %1248 = memref.load %arg3[%c2_564, %c24_565] : memref<3x96xf32, #tpu.memory_space<smem>>
    %1249 = vector.broadcast %1246 : f32 to vector<8x128xf32>
    %1250 = arith.mulf %19, %1249 : vector<8x128xf32>
    %1251 = vector.broadcast %1247 : f32 to vector<8x128xf32>
    %1252 = arith.mulf %20, %1251 : vector<8x128xf32>
    %1253 = arith.addf %1250, %1252 : vector<8x128xf32>
    %1254 = vector.broadcast %1248 : f32 to vector<8x128xf32>
    %1255 = arith.mulf %21, %1254 : vector<8x128xf32>
    %1256 = arith.addf %1253, %1255 : vector<8x128xf32>
    %cst_566 = arith.constant 0.000000e+00 : f32
    %1257 = vector.broadcast %cst_566 : f32 to vector<8x128xf32>
    %1258 = arith.maximumf %1256, %1257 : vector<8x128xf32>
    %cst_567 = arith.constant dense<0xFF800000> : vector<128xf32>
    %1259 = vector.multi_reduction <maximumf>, %1258, %cst_567 [0] : vector<8x128xf32> to vector<128xf32>
    %1260 = vector.shape_cast %1259 : vector<128xf32> to vector<1x128xf32>
    %c0_568 = arith.constant 0 : index
    %c56 = arith.constant 56 : index
    %1261 = memref.load %arg3[%c0_568, %c56] : memref<3x96xf32, #tpu.memory_space<smem>>
    %c1_569 = arith.constant 1 : index
    %c56_570 = arith.constant 56 : index
    %1262 = memref.load %arg3[%c1_569, %c56_570] : memref<3x96xf32, #tpu.memory_space<smem>>
    %c2_571 = arith.constant 2 : index
    %c56_572 = arith.constant 56 : index
    %1263 = memref.load %arg3[%c2_571, %c56_572] : memref<3x96xf32, #tpu.memory_space<smem>>
    %1264 = vector.broadcast %1261 : f32 to vector<8x128xf32>
    %1265 = arith.mulf %19, %1264 : vector<8x128xf32>
    %1266 = vector.broadcast %1262 : f32 to vector<8x128xf32>
    %1267 = arith.mulf %20, %1266 : vector<8x128xf32>
    %1268 = arith.addf %1265, %1267 : vector<8x128xf32>
    %1269 = vector.broadcast %1263 : f32 to vector<8x128xf32>
    %1270 = arith.mulf %21, %1269 : vector<8x128xf32>
    %1271 = arith.addf %1268, %1270 : vector<8x128xf32>
    %cst_573 = arith.constant 0.000000e+00 : f32
    %1272 = vector.broadcast %cst_573 : f32 to vector<8x128xf32>
    %1273 = arith.maximumf %1271, %1272 : vector<8x128xf32>
    %cst_574 = arith.constant dense<0xFF800000> : vector<128xf32>
    %1274 = vector.multi_reduction <maximumf>, %1273, %cst_574 [0] : vector<8x128xf32> to vector<128xf32>
    %1275 = vector.shape_cast %1274 : vector<128xf32> to vector<1x128xf32>
    %1276 = arith.addf %1260, %1275 : vector<1x128xf32>
    %c0_575 = arith.constant 0 : index
    %c88 = arith.constant 88 : index
    %1277 = memref.load %arg3[%c0_575, %c88] : memref<3x96xf32, #tpu.memory_space<smem>>
    %c1_576 = arith.constant 1 : index
    %c88_577 = arith.constant 88 : index
    %1278 = memref.load %arg3[%c1_576, %c88_577] : memref<3x96xf32, #tpu.memory_space<smem>>
    %c2_578 = arith.constant 2 : index
    %c88_579 = arith.constant 88 : index
    %1279 = memref.load %arg3[%c2_578, %c88_579] : memref<3x96xf32, #tpu.memory_space<smem>>
    %1280 = vector.broadcast %1277 : f32 to vector<8x128xf32>
    %1281 = arith.mulf %19, %1280 : vector<8x128xf32>
    %1282 = vector.broadcast %1278 : f32 to vector<8x128xf32>
    %1283 = arith.mulf %20, %1282 : vector<8x128xf32>
    %1284 = arith.addf %1281, %1283 : vector<8x128xf32>
    %1285 = vector.broadcast %1279 : f32 to vector<8x128xf32>
    %1286 = arith.mulf %21, %1285 : vector<8x128xf32>
    %1287 = arith.addf %1284, %1286 : vector<8x128xf32>
    %cst_580 = arith.constant 0.000000e+00 : f32
    %1288 = vector.broadcast %cst_580 : f32 to vector<8x128xf32>
    %1289 = arith.maximumf %1287, %1288 : vector<8x128xf32>
    %cst_581 = arith.constant dense<0xFF800000> : vector<128xf32>
    %1290 = vector.multi_reduction <maximumf>, %1289, %cst_581 [0] : vector<8x128xf32> to vector<128xf32>
    %1291 = vector.shape_cast %1290 : vector<128xf32> to vector<1x128xf32>
    %1292 = arith.addf %1276, %1291 : vector<1x128xf32>
    %c0_582 = arith.constant 0 : index
    %c24_583 = arith.constant 24 : index
    %1293 = arith.index_cast %1 : i32 to index
    %1294 = vector.load %arg4[%c0_582, %c24_583, %1293] : memref<1x32x128xf32, #tpu.memory_space<vmem>>, vector<1x1x128xf32>
    %1295 = vector.shape_cast %1294 : vector<1x1x128xf32> to vector<1x128xf32>
    %1296 = vector.shape_cast %1292 : vector<1x128xf32> to vector<1x1x128xf32>
    tpu.vector_store %arg4[%c0_582, %c24_583, %1293], %1296 {strides = array<i32>} : memref<1x32x128xf32, #tpu.memory_space<vmem>>, vector<1x1x128xf32>,
    %c0_584 = arith.constant 0 : index
    %c25 = arith.constant 25 : index
    %1297 = memref.load %arg3[%c0_584, %c25] : memref<3x96xf32, #tpu.memory_space<smem>>
    %c1_585 = arith.constant 1 : index
    %c25_586 = arith.constant 25 : index
    %1298 = memref.load %arg3[%c1_585, %c25_586] : memref<3x96xf32, #tpu.memory_space<smem>>
    %c2_587 = arith.constant 2 : index
    %c25_588 = arith.constant 25 : index
    %1299 = memref.load %arg3[%c2_587, %c25_588] : memref<3x96xf32, #tpu.memory_space<smem>>
    %1300 = vector.broadcast %1297 : f32 to vector<8x128xf32>
    %1301 = arith.mulf %19, %1300 : vector<8x128xf32>
    %1302 = vector.broadcast %1298 : f32 to vector<8x128xf32>
    %1303 = arith.mulf %20, %1302 : vector<8x128xf32>
    %1304 = arith.addf %1301, %1303 : vector<8x128xf32>
    %1305 = vector.broadcast %1299 : f32 to vector<8x128xf32>
    %1306 = arith.mulf %21, %1305 : vector<8x128xf32>
    %1307 = arith.addf %1304, %1306 : vector<8x128xf32>
    %cst_589 = arith.constant 0.000000e+00 : f32
    %1308 = vector.broadcast %cst_589 : f32 to vector<8x128xf32>
    %1309 = arith.maximumf %1307, %1308 : vector<8x128xf32>
    %cst_590 = arith.constant dense<0xFF800000> : vector<128xf32>
    %1310 = vector.multi_reduction <maximumf>, %1309, %cst_590 [0] : vector<8x128xf32> to vector<128xf32>
    %1311 = vector.shape_cast %1310 : vector<128xf32> to vector<1x128xf32>
    %c0_591 = arith.constant 0 : index
    %c57 = arith.constant 57 : index
    %1312 = memref.load %arg3[%c0_591, %c57] : memref<3x96xf32, #tpu.memory_space<smem>>
    %c1_592 = arith.constant 1 : index
    %c57_593 = arith.constant 57 : index
    %1313 = memref.load %arg3[%c1_592, %c57_593] : memref<3x96xf32, #tpu.memory_space<smem>>
    %c2_594 = arith.constant 2 : index
    %c57_595 = arith.constant 57 : index
    %1314 = memref.load %arg3[%c2_594, %c57_595] : memref<3x96xf32, #tpu.memory_space<smem>>
    %1315 = vector.broadcast %1312 : f32 to vector<8x128xf32>
    %1316 = arith.mulf %19, %1315 : vector<8x128xf32>
    %1317 = vector.broadcast %1313 : f32 to vector<8x128xf32>
    %1318 = arith.mulf %20, %1317 : vector<8x128xf32>
    %1319 = arith.addf %1316, %1318 : vector<8x128xf32>
    %1320 = vector.broadcast %1314 : f32 to vector<8x128xf32>
    %1321 = arith.mulf %21, %1320 : vector<8x128xf32>
    %1322 = arith.addf %1319, %1321 : vector<8x128xf32>
    %cst_596 = arith.constant 0.000000e+00 : f32
    %1323 = vector.broadcast %cst_596 : f32 to vector<8x128xf32>
    %1324 = arith.maximumf %1322, %1323 : vector<8x128xf32>
    %cst_597 = arith.constant dense<0xFF800000> : vector<128xf32>
    %1325 = vector.multi_reduction <maximumf>, %1324, %cst_597 [0] : vector<8x128xf32> to vector<128xf32>
    %1326 = vector.shape_cast %1325 : vector<128xf32> to vector<1x128xf32>
    %1327 = arith.addf %1311, %1326 : vector<1x128xf32>
    %c0_598 = arith.constant 0 : index
    %c89 = arith.constant 89 : index
    %1328 = memref.load %arg3[%c0_598, %c89] : memref<3x96xf32, #tpu.memory_space<smem>>
    %c1_599 = arith.constant 1 : index
    %c89_600 = arith.constant 89 : index
    %1329 = memref.load %arg3[%c1_599, %c89_600] : memref<3x96xf32, #tpu.memory_space<smem>>
    %c2_601 = arith.constant 2 : index
    %c89_602 = arith.constant 89 : index
    %1330 = memref.load %arg3[%c2_601, %c89_602] : memref<3x96xf32, #tpu.memory_space<smem>>
    %1331 = vector.broadcast %1328 : f32 to vector<8x128xf32>
    %1332 = arith.mulf %19, %1331 : vector<8x128xf32>
    %1333 = vector.broadcast %1329 : f32 to vector<8x128xf32>
    %1334 = arith.mulf %20, %1333 : vector<8x128xf32>
    %1335 = arith.addf %1332, %1334 : vector<8x128xf32>
    %1336 = vector.broadcast %1330 : f32 to vector<8x128xf32>
    %1337 = arith.mulf %21, %1336 : vector<8x128xf32>
    %1338 = arith.addf %1335, %1337 : vector<8x128xf32>
    %cst_603 = arith.constant 0.000000e+00 : f32
    %1339 = vector.broadcast %cst_603 : f32 to vector<8x128xf32>
    %1340 = arith.maximumf %1338, %1339 : vector<8x128xf32>
    %cst_604 = arith.constant dense<0xFF800000> : vector<128xf32>
    %1341 = vector.multi_reduction <maximumf>, %1340, %cst_604 [0] : vector<8x128xf32> to vector<128xf32>
    %1342 = vector.shape_cast %1341 : vector<128xf32> to vector<1x128xf32>
    %1343 = arith.addf %1327, %1342 : vector<1x128xf32>
    %c0_605 = arith.constant 0 : index
    %c25_606 = arith.constant 25 : index
    %1344 = arith.index_cast %1 : i32 to index
    %1345 = vector.load %arg4[%c0_605, %c25_606, %1344] : memref<1x32x128xf32, #tpu.memory_space<vmem>>, vector<1x1x128xf32>
    %1346 = vector.shape_cast %1345 : vector<1x1x128xf32> to vector<1x128xf32>
    %1347 = vector.shape_cast %1343 : vector<1x128xf32> to vector<1x1x128xf32>
    tpu.vector_store %arg4[%c0_605, %c25_606, %1344], %1347 {strides = array<i32>} : memref<1x32x128xf32, #tpu.memory_space<vmem>>, vector<1x1x128xf32>,
    %c0_607 = arith.constant 0 : index
    %c26 = arith.constant 26 : index
    %1348 = memref.load %arg3[%c0_607, %c26] : memref<3x96xf32, #tpu.memory_space<smem>>
    %c1_608 = arith.constant 1 : index
    %c26_609 = arith.constant 26 : index
    %1349 = memref.load %arg3[%c1_608, %c26_609] : memref<3x96xf32, #tpu.memory_space<smem>>
    %c2_610 = arith.constant 2 : index
    %c26_611 = arith.constant 26 : index
    %1350 = memref.load %arg3[%c2_610, %c26_611] : memref<3x96xf32, #tpu.memory_space<smem>>
    %1351 = vector.broadcast %1348 : f32 to vector<8x128xf32>
    %1352 = arith.mulf %19, %1351 : vector<8x128xf32>
    %1353 = vector.broadcast %1349 : f32 to vector<8x128xf32>
    %1354 = arith.mulf %20, %1353 : vector<8x128xf32>
    %1355 = arith.addf %1352, %1354 : vector<8x128xf32>
    %1356 = vector.broadcast %1350 : f32 to vector<8x128xf32>
    %1357 = arith.mulf %21, %1356 : vector<8x128xf32>
    %1358 = arith.addf %1355, %1357 : vector<8x128xf32>
    %cst_612 = arith.constant 0.000000e+00 : f32
    %1359 = vector.broadcast %cst_612 : f32 to vector<8x128xf32>
    %1360 = arith.maximumf %1358, %1359 : vector<8x128xf32>
    %cst_613 = arith.constant dense<0xFF800000> : vector<128xf32>
    %1361 = vector.multi_reduction <maximumf>, %1360, %cst_613 [0] : vector<8x128xf32> to vector<128xf32>
    %1362 = vector.shape_cast %1361 : vector<128xf32> to vector<1x128xf32>
    %c0_614 = arith.constant 0 : index
    %c58 = arith.constant 58 : index
    %1363 = memref.load %arg3[%c0_614, %c58] : memref<3x96xf32, #tpu.memory_space<smem>>
    %c1_615 = arith.constant 1 : index
    %c58_616 = arith.constant 58 : index
    %1364 = memref.load %arg3[%c1_615, %c58_616] : memref<3x96xf32, #tpu.memory_space<smem>>
    %c2_617 = arith.constant 2 : index
    %c58_618 = arith.constant 58 : index
    %1365 = memref.load %arg3[%c2_617, %c58_618] : memref<3x96xf32, #tpu.memory_space<smem>>
    %1366 = vector.broadcast %1363 : f32 to vector<8x128xf32>
    %1367 = arith.mulf %19, %1366 : vector<8x128xf32>
    %1368 = vector.broadcast %1364 : f32 to vector<8x128xf32>
    %1369 = arith.mulf %20, %1368 : vector<8x128xf32>
    %1370 = arith.addf %1367, %1369 : vector<8x128xf32>
    %1371 = vector.broadcast %1365 : f32 to vector<8x128xf32>
    %1372 = arith.mulf %21, %1371 : vector<8x128xf32>
    %1373 = arith.addf %1370, %1372 : vector<8x128xf32>
    %cst_619 = arith.constant 0.000000e+00 : f32
    %1374 = vector.broadcast %cst_619 : f32 to vector<8x128xf32>
    %1375 = arith.maximumf %1373, %1374 : vector<8x128xf32>
    %cst_620 = arith.constant dense<0xFF800000> : vector<128xf32>
    %1376 = vector.multi_reduction <maximumf>, %1375, %cst_620 [0] : vector<8x128xf32> to vector<128xf32>
    %1377 = vector.shape_cast %1376 : vector<128xf32> to vector<1x128xf32>
    %1378 = arith.addf %1362, %1377 : vector<1x128xf32>
    %c0_621 = arith.constant 0 : index
    %c90 = arith.constant 90 : index
    %1379 = memref.load %arg3[%c0_621, %c90] : memref<3x96xf32, #tpu.memory_space<smem>>
    %c1_622 = arith.constant 1 : index
    %c90_623 = arith.constant 90 : index
    %1380 = memref.load %arg3[%c1_622, %c90_623] : memref<3x96xf32, #tpu.memory_space<smem>>
    %c2_624 = arith.constant 2 : index
    %c90_625 = arith.constant 90 : index
    %1381 = memref.load %arg3[%c2_624, %c90_625] : memref<3x96xf32, #tpu.memory_space<smem>>
    %1382 = vector.broadcast %1379 : f32 to vector<8x128xf32>
    %1383 = arith.mulf %19, %1382 : vector<8x128xf32>
    %1384 = vector.broadcast %1380 : f32 to vector<8x128xf32>
    %1385 = arith.mulf %20, %1384 : vector<8x128xf32>
    %1386 = arith.addf %1383, %1385 : vector<8x128xf32>
    %1387 = vector.broadcast %1381 : f32 to vector<8x128xf32>
    %1388 = arith.mulf %21, %1387 : vector<8x128xf32>
    %1389 = arith.addf %1386, %1388 : vector<8x128xf32>
    %cst_626 = arith.constant 0.000000e+00 : f32
    %1390 = vector.broadcast %cst_626 : f32 to vector<8x128xf32>
    %1391 = arith.maximumf %1389, %1390 : vector<8x128xf32>
    %cst_627 = arith.constant dense<0xFF800000> : vector<128xf32>
    %1392 = vector.multi_reduction <maximumf>, %1391, %cst_627 [0] : vector<8x128xf32> to vector<128xf32>
    %1393 = vector.shape_cast %1392 : vector<128xf32> to vector<1x128xf32>
    %1394 = arith.addf %1378, %1393 : vector<1x128xf32>
    %c0_628 = arith.constant 0 : index
    %c26_629 = arith.constant 26 : index
    %1395 = arith.index_cast %1 : i32 to index
    %1396 = vector.load %arg4[%c0_628, %c26_629, %1395] : memref<1x32x128xf32, #tpu.memory_space<vmem>>, vector<1x1x128xf32>
    %1397 = vector.shape_cast %1396 : vector<1x1x128xf32> to vector<1x128xf32>
    %1398 = vector.shape_cast %1394 : vector<1x128xf32> to vector<1x1x128xf32>
    tpu.vector_store %arg4[%c0_628, %c26_629, %1395], %1398 {strides = array<i32>} : memref<1x32x128xf32, #tpu.memory_space<vmem>>, vector<1x1x128xf32>,
    %c0_630 = arith.constant 0 : index
    %c27 = arith.constant 27 : index
    %1399 = memref.load %arg3[%c0_630, %c27] : memref<3x96xf32, #tpu.memory_space<smem>>
    %c1_631 = arith.constant 1 : index
    %c27_632 = arith.constant 27 : index
    %1400 = memref.load %arg3[%c1_631, %c27_632] : memref<3x96xf32, #tpu.memory_space<smem>>
    %c2_633 = arith.constant 2 : index
    %c27_634 = arith.constant 27 : index
    %1401 = memref.load %arg3[%c2_633, %c27_634] : memref<3x96xf32, #tpu.memory_space<smem>>
    %1402 = vector.broadcast %1399 : f32 to vector<8x128xf32>
    %1403 = arith.mulf %19, %1402 : vector<8x128xf32>
    %1404 = vector.broadcast %1400 : f32 to vector<8x128xf32>
    %1405 = arith.mulf %20, %1404 : vector<8x128xf32>
    %1406 = arith.addf %1403, %1405 : vector<8x128xf32>
    %1407 = vector.broadcast %1401 : f32 to vector<8x128xf32>
    %1408 = arith.mulf %21, %1407 : vector<8x128xf32>
    %1409 = arith.addf %1406, %1408 : vector<8x128xf32>
    %cst_635 = arith.constant 0.000000e+00 : f32
    %1410 = vector.broadcast %cst_635 : f32 to vector<8x128xf32>
    %1411 = arith.maximumf %1409, %1410 : vector<8x128xf32>
    %cst_636 = arith.constant dense<0xFF800000> : vector<128xf32>
    %1412 = vector.multi_reduction <maximumf>, %1411, %cst_636 [0] : vector<8x128xf32> to vector<128xf32>
    %1413 = vector.shape_cast %1412 : vector<128xf32> to vector<1x128xf32>
    %c0_637 = arith.constant 0 : index
    %c59 = arith.constant 59 : index
    %1414 = memref.load %arg3[%c0_637, %c59] : memref<3x96xf32, #tpu.memory_space<smem>>
    %c1_638 = arith.constant 1 : index
    %c59_639 = arith.constant 59 : index
    %1415 = memref.load %arg3[%c1_638, %c59_639] : memref<3x96xf32, #tpu.memory_space<smem>>
    %c2_640 = arith.constant 2 : index
    %c59_641 = arith.constant 59 : index
    %1416 = memref.load %arg3[%c2_640, %c59_641] : memref<3x96xf32, #tpu.memory_space<smem>>
    %1417 = vector.broadcast %1414 : f32 to vector<8x128xf32>
    %1418 = arith.mulf %19, %1417 : vector<8x128xf32>
    %1419 = vector.broadcast %1415 : f32 to vector<8x128xf32>
    %1420 = arith.mulf %20, %1419 : vector<8x128xf32>
    %1421 = arith.addf %1418, %1420 : vector<8x128xf32>
    %1422 = vector.broadcast %1416 : f32 to vector<8x128xf32>
    %1423 = arith.mulf %21, %1422 : vector<8x128xf32>
    %1424 = arith.addf %1421, %1423 : vector<8x128xf32>
    %cst_642 = arith.constant 0.000000e+00 : f32
    %1425 = vector.broadcast %cst_642 : f32 to vector<8x128xf32>
    %1426 = arith.maximumf %1424, %1425 : vector<8x128xf32>
    %cst_643 = arith.constant dense<0xFF800000> : vector<128xf32>
    %1427 = vector.multi_reduction <maximumf>, %1426, %cst_643 [0] : vector<8x128xf32> to vector<128xf32>
    %1428 = vector.shape_cast %1427 : vector<128xf32> to vector<1x128xf32>
    %1429 = arith.addf %1413, %1428 : vector<1x128xf32>
    %c0_644 = arith.constant 0 : index
    %c91 = arith.constant 91 : index
    %1430 = memref.load %arg3[%c0_644, %c91] : memref<3x96xf32, #tpu.memory_space<smem>>
    %c1_645 = arith.constant 1 : index
    %c91_646 = arith.constant 91 : index
    %1431 = memref.load %arg3[%c1_645, %c91_646] : memref<3x96xf32, #tpu.memory_space<smem>>
    %c2_647 = arith.constant 2 : index
    %c91_648 = arith.constant 91 : index
    %1432 = memref.load %arg3[%c2_647, %c91_648] : memref<3x96xf32, #tpu.memory_space<smem>>
    %1433 = vector.broadcast %1430 : f32 to vector<8x128xf32>
    %1434 = arith.mulf %19, %1433 : vector<8x128xf32>
    %1435 = vector.broadcast %1431 : f32 to vector<8x128xf32>
    %1436 = arith.mulf %20, %1435 : vector<8x128xf32>
    %1437 = arith.addf %1434, %1436 : vector<8x128xf32>
    %1438 = vector.broadcast %1432 : f32 to vector<8x128xf32>
    %1439 = arith.mulf %21, %1438 : vector<8x128xf32>
    %1440 = arith.addf %1437, %1439 : vector<8x128xf32>
    %cst_649 = arith.constant 0.000000e+00 : f32
    %1441 = vector.broadcast %cst_649 : f32 to vector<8x128xf32>
    %1442 = arith.maximumf %1440, %1441 : vector<8x128xf32>
    %cst_650 = arith.constant dense<0xFF800000> : vector<128xf32>
    %1443 = vector.multi_reduction <maximumf>, %1442, %cst_650 [0] : vector<8x128xf32> to vector<128xf32>
    %1444 = vector.shape_cast %1443 : vector<128xf32> to vector<1x128xf32>
    %1445 = arith.addf %1429, %1444 : vector<1x128xf32>
    %c0_651 = arith.constant 0 : index
    %c27_652 = arith.constant 27 : index
    %1446 = arith.index_cast %1 : i32 to index
    %1447 = vector.load %arg4[%c0_651, %c27_652, %1446] : memref<1x32x128xf32, #tpu.memory_space<vmem>>, vector<1x1x128xf32>
    %1448 = vector.shape_cast %1447 : vector<1x1x128xf32> to vector<1x128xf32>
    %1449 = vector.shape_cast %1445 : vector<1x128xf32> to vector<1x1x128xf32>
    tpu.vector_store %arg4[%c0_651, %c27_652, %1446], %1449 {strides = array<i32>} : memref<1x32x128xf32, #tpu.memory_space<vmem>>, vector<1x1x128xf32>,
    %c0_653 = arith.constant 0 : index
    %c28 = arith.constant 28 : index
    %1450 = memref.load %arg3[%c0_653, %c28] : memref<3x96xf32, #tpu.memory_space<smem>>
    %c1_654 = arith.constant 1 : index
    %c28_655 = arith.constant 28 : index
    %1451 = memref.load %arg3[%c1_654, %c28_655] : memref<3x96xf32, #tpu.memory_space<smem>>
    %c2_656 = arith.constant 2 : index
    %c28_657 = arith.constant 28 : index
    %1452 = memref.load %arg3[%c2_656, %c28_657] : memref<3x96xf32, #tpu.memory_space<smem>>
    %1453 = vector.broadcast %1450 : f32 to vector<8x128xf32>
    %1454 = arith.mulf %19, %1453 : vector<8x128xf32>
    %1455 = vector.broadcast %1451 : f32 to vector<8x128xf32>
    %1456 = arith.mulf %20, %1455 : vector<8x128xf32>
    %1457 = arith.addf %1454, %1456 : vector<8x128xf32>
    %1458 = vector.broadcast %1452 : f32 to vector<8x128xf32>
    %1459 = arith.mulf %21, %1458 : vector<8x128xf32>
    %1460 = arith.addf %1457, %1459 : vector<8x128xf32>
    %cst_658 = arith.constant 0.000000e+00 : f32
    %1461 = vector.broadcast %cst_658 : f32 to vector<8x128xf32>
    %1462 = arith.maximumf %1460, %1461 : vector<8x128xf32>
    %cst_659 = arith.constant dense<0xFF800000> : vector<128xf32>
    %1463 = vector.multi_reduction <maximumf>, %1462, %cst_659 [0] : vector<8x128xf32> to vector<128xf32>
    %1464 = vector.shape_cast %1463 : vector<128xf32> to vector<1x128xf32>
    %c0_660 = arith.constant 0 : index
    %c60 = arith.constant 60 : index
    %1465 = memref.load %arg3[%c0_660, %c60] : memref<3x96xf32, #tpu.memory_space<smem>>
    %c1_661 = arith.constant 1 : index
    %c60_662 = arith.constant 60 : index
    %1466 = memref.load %arg3[%c1_661, %c60_662] : memref<3x96xf32, #tpu.memory_space<smem>>
    %c2_663 = arith.constant 2 : index
    %c60_664 = arith.constant 60 : index
    %1467 = memref.load %arg3[%c2_663, %c60_664] : memref<3x96xf32, #tpu.memory_space<smem>>
    %1468 = vector.broadcast %1465 : f32 to vector<8x128xf32>
    %1469 = arith.mulf %19, %1468 : vector<8x128xf32>
    %1470 = vector.broadcast %1466 : f32 to vector<8x128xf32>
    %1471 = arith.mulf %20, %1470 : vector<8x128xf32>
    %1472 = arith.addf %1469, %1471 : vector<8x128xf32>
    %1473 = vector.broadcast %1467 : f32 to vector<8x128xf32>
    %1474 = arith.mulf %21, %1473 : vector<8x128xf32>
    %1475 = arith.addf %1472, %1474 : vector<8x128xf32>
    %cst_665 = arith.constant 0.000000e+00 : f32
    %1476 = vector.broadcast %cst_665 : f32 to vector<8x128xf32>
    %1477 = arith.maximumf %1475, %1476 : vector<8x128xf32>
    %cst_666 = arith.constant dense<0xFF800000> : vector<128xf32>
    %1478 = vector.multi_reduction <maximumf>, %1477, %cst_666 [0] : vector<8x128xf32> to vector<128xf32>
    %1479 = vector.shape_cast %1478 : vector<128xf32> to vector<1x128xf32>
    %1480 = arith.addf %1464, %1479 : vector<1x128xf32>
    %c0_667 = arith.constant 0 : index
    %c92 = arith.constant 92 : index
    %1481 = memref.load %arg3[%c0_667, %c92] : memref<3x96xf32, #tpu.memory_space<smem>>
    %c1_668 = arith.constant 1 : index
    %c92_669 = arith.constant 92 : index
    %1482 = memref.load %arg3[%c1_668, %c92_669] : memref<3x96xf32, #tpu.memory_space<smem>>
    %c2_670 = arith.constant 2 : index
    %c92_671 = arith.constant 92 : index
    %1483 = memref.load %arg3[%c2_670, %c92_671] : memref<3x96xf32, #tpu.memory_space<smem>>
    %1484 = vector.broadcast %1481 : f32 to vector<8x128xf32>
    %1485 = arith.mulf %19, %1484 : vector<8x128xf32>
    %1486 = vector.broadcast %1482 : f32 to vector<8x128xf32>
    %1487 = arith.mulf %20, %1486 : vector<8x128xf32>
    %1488 = arith.addf %1485, %1487 : vector<8x128xf32>
    %1489 = vector.broadcast %1483 : f32 to vector<8x128xf32>
    %1490 = arith.mulf %21, %1489 : vector<8x128xf32>
    %1491 = arith.addf %1488, %1490 : vector<8x128xf32>
    %cst_672 = arith.constant 0.000000e+00 : f32
    %1492 = vector.broadcast %cst_672 : f32 to vector<8x128xf32>
    %1493 = arith.maximumf %1491, %1492 : vector<8x128xf32>
    %cst_673 = arith.constant dense<0xFF800000> : vector<128xf32>
    %1494 = vector.multi_reduction <maximumf>, %1493, %cst_673 [0] : vector<8x128xf32> to vector<128xf32>
    %1495 = vector.shape_cast %1494 : vector<128xf32> to vector<1x128xf32>
    %1496 = arith.addf %1480, %1495 : vector<1x128xf32>
    %c0_674 = arith.constant 0 : index
    %c28_675 = arith.constant 28 : index
    %1497 = arith.index_cast %1 : i32 to index
    %1498 = vector.load %arg4[%c0_674, %c28_675, %1497] : memref<1x32x128xf32, #tpu.memory_space<vmem>>, vector<1x1x128xf32>
    %1499 = vector.shape_cast %1498 : vector<1x1x128xf32> to vector<1x128xf32>
    %1500 = vector.shape_cast %1496 : vector<1x128xf32> to vector<1x1x128xf32>
    tpu.vector_store %arg4[%c0_674, %c28_675, %1497], %1500 {strides = array<i32>} : memref<1x32x128xf32, #tpu.memory_space<vmem>>, vector<1x1x128xf32>,
    %c0_676 = arith.constant 0 : index
    %c29 = arith.constant 29 : index
    %1501 = memref.load %arg3[%c0_676, %c29] : memref<3x96xf32, #tpu.memory_space<smem>>
    %c1_677 = arith.constant 1 : index
    %c29_678 = arith.constant 29 : index
    %1502 = memref.load %arg3[%c1_677, %c29_678] : memref<3x96xf32, #tpu.memory_space<smem>>
    %c2_679 = arith.constant 2 : index
    %c29_680 = arith.constant 29 : index
    %1503 = memref.load %arg3[%c2_679, %c29_680] : memref<3x96xf32, #tpu.memory_space<smem>>
    %1504 = vector.broadcast %1501 : f32 to vector<8x128xf32>
    %1505 = arith.mulf %19, %1504 : vector<8x128xf32>
    %1506 = vector.broadcast %1502 : f32 to vector<8x128xf32>
    %1507 = arith.mulf %20, %1506 : vector<8x128xf32>
    %1508 = arith.addf %1505, %1507 : vector<8x128xf32>
    %1509 = vector.broadcast %1503 : f32 to vector<8x128xf32>
    %1510 = arith.mulf %21, %1509 : vector<8x128xf32>
    %1511 = arith.addf %1508, %1510 : vector<8x128xf32>
    %cst_681 = arith.constant 0.000000e+00 : f32
    %1512 = vector.broadcast %cst_681 : f32 to vector<8x128xf32>
    %1513 = arith.maximumf %1511, %1512 : vector<8x128xf32>
    %cst_682 = arith.constant dense<0xFF800000> : vector<128xf32>
    %1514 = vector.multi_reduction <maximumf>, %1513, %cst_682 [0] : vector<8x128xf32> to vector<128xf32>
    %1515 = vector.shape_cast %1514 : vector<128xf32> to vector<1x128xf32>
    %c0_683 = arith.constant 0 : index
    %c61 = arith.constant 61 : index
    %1516 = memref.load %arg3[%c0_683, %c61] : memref<3x96xf32, #tpu.memory_space<smem>>
    %c1_684 = arith.constant 1 : index
    %c61_685 = arith.constant 61 : index
    %1517 = memref.load %arg3[%c1_684, %c61_685] : memref<3x96xf32, #tpu.memory_space<smem>>
    %c2_686 = arith.constant 2 : index
    %c61_687 = arith.constant 61 : index
    %1518 = memref.load %arg3[%c2_686, %c61_687] : memref<3x96xf32, #tpu.memory_space<smem>>
    %1519 = vector.broadcast %1516 : f32 to vector<8x128xf32>
    %1520 = arith.mulf %19, %1519 : vector<8x128xf32>
    %1521 = vector.broadcast %1517 : f32 to vector<8x128xf32>
    %1522 = arith.mulf %20, %1521 : vector<8x128xf32>
    %1523 = arith.addf %1520, %1522 : vector<8x128xf32>
    %1524 = vector.broadcast %1518 : f32 to vector<8x128xf32>
    %1525 = arith.mulf %21, %1524 : vector<8x128xf32>
    %1526 = arith.addf %1523, %1525 : vector<8x128xf32>
    %cst_688 = arith.constant 0.000000e+00 : f32
    %1527 = vector.broadcast %cst_688 : f32 to vector<8x128xf32>
    %1528 = arith.maximumf %1526, %1527 : vector<8x128xf32>
    %cst_689 = arith.constant dense<0xFF800000> : vector<128xf32>
    %1529 = vector.multi_reduction <maximumf>, %1528, %cst_689 [0] : vector<8x128xf32> to vector<128xf32>
    %1530 = vector.shape_cast %1529 : vector<128xf32> to vector<1x128xf32>
    %1531 = arith.addf %1515, %1530 : vector<1x128xf32>
    %c0_690 = arith.constant 0 : index
    %c93 = arith.constant 93 : index
    %1532 = memref.load %arg3[%c0_690, %c93] : memref<3x96xf32, #tpu.memory_space<smem>>
    %c1_691 = arith.constant 1 : index
    %c93_692 = arith.constant 93 : index
    %1533 = memref.load %arg3[%c1_691, %c93_692] : memref<3x96xf32, #tpu.memory_space<smem>>
    %c2_693 = arith.constant 2 : index
    %c93_694 = arith.constant 93 : index
    %1534 = memref.load %arg3[%c2_693, %c93_694] : memref<3x96xf32, #tpu.memory_space<smem>>
    %1535 = vector.broadcast %1532 : f32 to vector<8x128xf32>
    %1536 = arith.mulf %19, %1535 : vector<8x128xf32>
    %1537 = vector.broadcast %1533 : f32 to vector<8x128xf32>
    %1538 = arith.mulf %20, %1537 : vector<8x128xf32>
    %1539 = arith.addf %1536, %1538 : vector<8x128xf32>
    %1540 = vector.broadcast %1534 : f32 to vector<8x128xf32>
    %1541 = arith.mulf %21, %1540 : vector<8x128xf32>
    %1542 = arith.addf %1539, %1541 : vector<8x128xf32>
    %cst_695 = arith.constant 0.000000e+00 : f32
    %1543 = vector.broadcast %cst_695 : f32 to vector<8x128xf32>
    %1544 = arith.maximumf %1542, %1543 : vector<8x128xf32>
    %cst_696 = arith.constant dense<0xFF800000> : vector<128xf32>
    %1545 = vector.multi_reduction <maximumf>, %1544, %cst_696 [0] : vector<8x128xf32> to vector<128xf32>
    %1546 = vector.shape_cast %1545 : vector<128xf32> to vector<1x128xf32>
    %1547 = arith.addf %1531, %1546 : vector<1x128xf32>
    %c0_697 = arith.constant 0 : index
    %c29_698 = arith.constant 29 : index
    %1548 = arith.index_cast %1 : i32 to index
    %1549 = vector.load %arg4[%c0_697, %c29_698, %1548] : memref<1x32x128xf32, #tpu.memory_space<vmem>>, vector<1x1x128xf32>
    %1550 = vector.shape_cast %1549 : vector<1x1x128xf32> to vector<1x128xf32>
    %1551 = vector.shape_cast %1547 : vector<1x128xf32> to vector<1x1x128xf32>
    tpu.vector_store %arg4[%c0_697, %c29_698, %1548], %1551 {strides = array<i32>} : memref<1x32x128xf32, #tpu.memory_space<vmem>>, vector<1x1x128xf32>,
    %c0_699 = arith.constant 0 : index
    %c30 = arith.constant 30 : index
    %1552 = memref.load %arg3[%c0_699, %c30] : memref<3x96xf32, #tpu.memory_space<smem>>
    %c1_700 = arith.constant 1 : index
    %c30_701 = arith.constant 30 : index
    %1553 = memref.load %arg3[%c1_700, %c30_701] : memref<3x96xf32, #tpu.memory_space<smem>>
    %c2_702 = arith.constant 2 : index
    %c30_703 = arith.constant 30 : index
    %1554 = memref.load %arg3[%c2_702, %c30_703] : memref<3x96xf32, #tpu.memory_space<smem>>
    %1555 = vector.broadcast %1552 : f32 to vector<8x128xf32>
    %1556 = arith.mulf %19, %1555 : vector<8x128xf32>
    %1557 = vector.broadcast %1553 : f32 to vector<8x128xf32>
    %1558 = arith.mulf %20, %1557 : vector<8x128xf32>
    %1559 = arith.addf %1556, %1558 : vector<8x128xf32>
    %1560 = vector.broadcast %1554 : f32 to vector<8x128xf32>
    %1561 = arith.mulf %21, %1560 : vector<8x128xf32>
    %1562 = arith.addf %1559, %1561 : vector<8x128xf32>
    %cst_704 = arith.constant 0.000000e+00 : f32
    %1563 = vector.broadcast %cst_704 : f32 to vector<8x128xf32>
    %1564 = arith.maximumf %1562, %1563 : vector<8x128xf32>
    %cst_705 = arith.constant dense<0xFF800000> : vector<128xf32>
    %1565 = vector.multi_reduction <maximumf>, %1564, %cst_705 [0] : vector<8x128xf32> to vector<128xf32>
    %1566 = vector.shape_cast %1565 : vector<128xf32> to vector<1x128xf32>
    %c0_706 = arith.constant 0 : index
    %c62 = arith.constant 62 : index
    %1567 = memref.load %arg3[%c0_706, %c62] : memref<3x96xf32, #tpu.memory_space<smem>>
    %c1_707 = arith.constant 1 : index
    %c62_708 = arith.constant 62 : index
    %1568 = memref.load %arg3[%c1_707, %c62_708] : memref<3x96xf32, #tpu.memory_space<smem>>
    %c2_709 = arith.constant 2 : index
    %c62_710 = arith.constant 62 : index
    %1569 = memref.load %arg3[%c2_709, %c62_710] : memref<3x96xf32, #tpu.memory_space<smem>>
    %1570 = vector.broadcast %1567 : f32 to vector<8x128xf32>
    %1571 = arith.mulf %19, %1570 : vector<8x128xf32>
    %1572 = vector.broadcast %1568 : f32 to vector<8x128xf32>
    %1573 = arith.mulf %20, %1572 : vector<8x128xf32>
    %1574 = arith.addf %1571, %1573 : vector<8x128xf32>
    %1575 = vector.broadcast %1569 : f32 to vector<8x128xf32>
    %1576 = arith.mulf %21, %1575 : vector<8x128xf32>
    %1577 = arith.addf %1574, %1576 : vector<8x128xf32>
    %cst_711 = arith.constant 0.000000e+00 : f32
    %1578 = vector.broadcast %cst_711 : f32 to vector<8x128xf32>
    %1579 = arith.maximumf %1577, %1578 : vector<8x128xf32>
    %cst_712 = arith.constant dense<0xFF800000> : vector<128xf32>
    %1580 = vector.multi_reduction <maximumf>, %1579, %cst_712 [0] : vector<8x128xf32> to vector<128xf32>
    %1581 = vector.shape_cast %1580 : vector<128xf32> to vector<1x128xf32>
    %1582 = arith.addf %1566, %1581 : vector<1x128xf32>
    %c0_713 = arith.constant 0 : index
    %c94 = arith.constant 94 : index
    %1583 = memref.load %arg3[%c0_713, %c94] : memref<3x96xf32, #tpu.memory_space<smem>>
    %c1_714 = arith.constant 1 : index
    %c94_715 = arith.constant 94 : index
    %1584 = memref.load %arg3[%c1_714, %c94_715] : memref<3x96xf32, #tpu.memory_space<smem>>
    %c2_716 = arith.constant 2 : index
    %c94_717 = arith.constant 94 : index
    %1585 = memref.load %arg3[%c2_716, %c94_717] : memref<3x96xf32, #tpu.memory_space<smem>>
    %1586 = vector.broadcast %1583 : f32 to vector<8x128xf32>
    %1587 = arith.mulf %19, %1586 : vector<8x128xf32>
    %1588 = vector.broadcast %1584 : f32 to vector<8x128xf32>
    %1589 = arith.mulf %20, %1588 : vector<8x128xf32>
    %1590 = arith.addf %1587, %1589 : vector<8x128xf32>
    %1591 = vector.broadcast %1585 : f32 to vector<8x128xf32>
    %1592 = arith.mulf %21, %1591 : vector<8x128xf32>
    %1593 = arith.addf %1590, %1592 : vector<8x128xf32>
    %cst_718 = arith.constant 0.000000e+00 : f32
    %1594 = vector.broadcast %cst_718 : f32 to vector<8x128xf32>
    %1595 = arith.maximumf %1593, %1594 : vector<8x128xf32>
    %cst_719 = arith.constant dense<0xFF800000> : vector<128xf32>
    %1596 = vector.multi_reduction <maximumf>, %1595, %cst_719 [0] : vector<8x128xf32> to vector<128xf32>
    %1597 = vector.shape_cast %1596 : vector<128xf32> to vector<1x128xf32>
    %1598 = arith.addf %1582, %1597 : vector<1x128xf32>
    %c0_720 = arith.constant 0 : index
    %c30_721 = arith.constant 30 : index
    %1599 = arith.index_cast %1 : i32 to index
    %1600 = vector.load %arg4[%c0_720, %c30_721, %1599] : memref<1x32x128xf32, #tpu.memory_space<vmem>>, vector<1x1x128xf32>
    %1601 = vector.shape_cast %1600 : vector<1x1x128xf32> to vector<1x128xf32>
    %1602 = vector.shape_cast %1598 : vector<1x128xf32> to vector<1x1x128xf32>
    tpu.vector_store %arg4[%c0_720, %c30_721, %1599], %1602 {strides = array<i32>} : memref<1x32x128xf32, #tpu.memory_space<vmem>>, vector<1x1x128xf32>,
    %c0_722 = arith.constant 0 : index
    %c31 = arith.constant 31 : index
    %1603 = memref.load %arg3[%c0_722, %c31] : memref<3x96xf32, #tpu.memory_space<smem>>
    %c1_723 = arith.constant 1 : index
    %c31_724 = arith.constant 31 : index
    %1604 = memref.load %arg3[%c1_723, %c31_724] : memref<3x96xf32, #tpu.memory_space<smem>>
    %c2_725 = arith.constant 2 : index
    %c31_726 = arith.constant 31 : index
    %1605 = memref.load %arg3[%c2_725, %c31_726] : memref<3x96xf32, #tpu.memory_space<smem>>
    %1606 = vector.broadcast %1603 : f32 to vector<8x128xf32>
    %1607 = arith.mulf %19, %1606 : vector<8x128xf32>
    %1608 = vector.broadcast %1604 : f32 to vector<8x128xf32>
    %1609 = arith.mulf %20, %1608 : vector<8x128xf32>
    %1610 = arith.addf %1607, %1609 : vector<8x128xf32>
    %1611 = vector.broadcast %1605 : f32 to vector<8x128xf32>
    %1612 = arith.mulf %21, %1611 : vector<8x128xf32>
    %1613 = arith.addf %1610, %1612 : vector<8x128xf32>
    %cst_727 = arith.constant 0.000000e+00 : f32
    %1614 = vector.broadcast %cst_727 : f32 to vector<8x128xf32>
    %1615 = arith.maximumf %1613, %1614 : vector<8x128xf32>
    %cst_728 = arith.constant dense<0xFF800000> : vector<128xf32>
    %1616 = vector.multi_reduction <maximumf>, %1615, %cst_728 [0] : vector<8x128xf32> to vector<128xf32>
    %1617 = vector.shape_cast %1616 : vector<128xf32> to vector<1x128xf32>
    %c0_729 = arith.constant 0 : index
    %c63 = arith.constant 63 : index
    %1618 = memref.load %arg3[%c0_729, %c63] : memref<3x96xf32, #tpu.memory_space<smem>>
    %c1_730 = arith.constant 1 : index
    %c63_731 = arith.constant 63 : index
    %1619 = memref.load %arg3[%c1_730, %c63_731] : memref<3x96xf32, #tpu.memory_space<smem>>
    %c2_732 = arith.constant 2 : index
    %c63_733 = arith.constant 63 : index
    %1620 = memref.load %arg3[%c2_732, %c63_733] : memref<3x96xf32, #tpu.memory_space<smem>>
    %1621 = vector.broadcast %1618 : f32 to vector<8x128xf32>
    %1622 = arith.mulf %19, %1621 : vector<8x128xf32>
    %1623 = vector.broadcast %1619 : f32 to vector<8x128xf32>
    %1624 = arith.mulf %20, %1623 : vector<8x128xf32>
    %1625 = arith.addf %1622, %1624 : vector<8x128xf32>
    %1626 = vector.broadcast %1620 : f32 to vector<8x128xf32>
    %1627 = arith.mulf %21, %1626 : vector<8x128xf32>
    %1628 = arith.addf %1625, %1627 : vector<8x128xf32>
    %cst_734 = arith.constant 0.000000e+00 : f32
    %1629 = vector.broadcast %cst_734 : f32 to vector<8x128xf32>
    %1630 = arith.maximumf %1628, %1629 : vector<8x128xf32>
    %cst_735 = arith.constant dense<0xFF800000> : vector<128xf32>
    %1631 = vector.multi_reduction <maximumf>, %1630, %cst_735 [0] : vector<8x128xf32> to vector<128xf32>
    %1632 = vector.shape_cast %1631 : vector<128xf32> to vector<1x128xf32>
    %1633 = arith.addf %1617, %1632 : vector<1x128xf32>
    %c0_736 = arith.constant 0 : index
    %c95 = arith.constant 95 : index
    %1634 = memref.load %arg3[%c0_736, %c95] : memref<3x96xf32, #tpu.memory_space<smem>>
    %c1_737 = arith.constant 1 : index
    %c95_738 = arith.constant 95 : index
    %1635 = memref.load %arg3[%c1_737, %c95_738] : memref<3x96xf32, #tpu.memory_space<smem>>
    %c2_739 = arith.constant 2 : index
    %c95_740 = arith.constant 95 : index
    %1636 = memref.load %arg3[%c2_739, %c95_740] : memref<3x96xf32, #tpu.memory_space<smem>>
    %1637 = vector.broadcast %1634 : f32 to vector<8x128xf32>
    %1638 = arith.mulf %19, %1637 : vector<8x128xf32>
    %1639 = vector.broadcast %1635 : f32 to vector<8x128xf32>
    %1640 = arith.mulf %20, %1639 : vector<8x128xf32>
    %1641 = arith.addf %1638, %1640 : vector<8x128xf32>
    %1642 = vector.broadcast %1636 : f32 to vector<8x128xf32>
    %1643 = arith.mulf %21, %1642 : vector<8x128xf32>
    %1644 = arith.addf %1641, %1643 : vector<8x128xf32>
    %cst_741 = arith.constant 0.000000e+00 : f32
    %1645 = vector.broadcast %cst_741 : f32 to vector<8x128xf32>
    %1646 = arith.maximumf %1644, %1645 : vector<8x128xf32>
    %cst_742 = arith.constant dense<0xFF800000> : vector<128xf32>
    %1647 = vector.multi_reduction <maximumf>, %1646, %cst_742 [0] : vector<8x128xf32> to vector<128xf32>
    %1648 = vector.shape_cast %1647 : vector<128xf32> to vector<1x128xf32>
    %1649 = arith.addf %1633, %1648 : vector<1x128xf32>
    %c0_743 = arith.constant 0 : index
    %c31_744 = arith.constant 31 : index
    %1650 = arith.index_cast %1 : i32 to index
    %1651 = vector.load %arg4[%c0_743, %c31_744, %1650] : memref<1x32x128xf32, #tpu.memory_space<vmem>>, vector<1x1x128xf32>
    %1652 = vector.shape_cast %1651 : vector<1x1x128xf32> to vector<1x128xf32>
    %1653 = vector.shape_cast %1649 : vector<1x128xf32> to vector<1x1x128xf32>
    tpu.vector_store %arg4[%c0_743, %c31_744, %1650], %1653 {strides = array<i32>} : memref<1x32x128xf32, #tpu.memory_space<vmem>>, vector<1x1x128xf32>,
    %c1_i32 = arith.constant 1 : i32
    return
  }
  func.func @transform_0(%arg0: i32, %arg1: i32) -> (i32, i32, i32, i32) {
    %c0_i32 = arith.constant 0 : i32
    %c0_i32_0 = arith.constant 0 : i32
    %c0_i32_1 = arith.constant 0 : i32
    return %arg0, %c0_i32, %c0_i32_0, %arg1 : i32, i32, i32, i32
  }
  func.func @transform_1(%arg0: i32, %arg1: i32) -> (i32, i32) {
    %c0_i32 = arith.constant 0 : i32
    %c0_i32_0 = arith.constant 0 : i32
    %c0_i32_1 = arith.constant 0 : i32
    return %c0_i32, %c0_i32_0 : i32, i32
  }
  func.func @transform_2(%arg0: i32, %arg1: i32) -> (i32, i32, i32) {
    %c0_i32 = arith.constant 0 : i32
    %c0_i32_0 = arith.constant 0 : i32
    return %arg0, %c0_i32, %arg1 : i32, i32, i32
  }
}

</mosaic_0001>

<llo_original>
// kernel: tpu_custom_call.1
$region0: #{tpu_custom_call.1}
  #allocation0 [shape = 'u32[]', space=smem, size = 0x4, offset = 0x4, fixed_abs, tag = 'smem constant byte address 0x4 - core index']
  #allocation1 [shape = 'u32[144,128]{1,0:T(1,128)}', space=vmem, size = 0x12000, scoped, tag = 'internal scratch']
  %s0 = inlined_call_operand.hbm [shape: f32[2,3,8,256], index: 0, kind: input, shape index: {}]
  %s1 = inlined_call_operand.hbm [shape: f32[3,96], index: 1, kind: input, shape index: {}]
  %s2 = inlined_call_operand.hbm [shape: f32[2,32,256], index: 2, kind: output, shape index: {}]
  %s3 = sld [smem:[#allocation0]]
  $region49: #{tpu_custom_call.1} parent=0
    _
  %s5 = ssub.s32 1, %s3
  %s6 = scalar_select 0, %s5, %s3
  $region1: #{tpu_custom_call.1} parent=0
    #allocation2 [shape = 'u8[24576]{0}', space=vmem, size = 0x6000, scoped, tag = 'input window, operand 0']
    #allocation3 [shape = 's32[2]{0}', space=sflag, size = 0x8, scoped, tag = 'scoped memory for tpu_custom_call.1']
    #allocation4 [shape = 's32[2]{0}', space=sflag, size = 0x8, scoped, tag = 'scoped memory for tpu_custom_call.1']
    #allocation5 [shape = 's32[2]{0}', space=sflag, size = 0x8, scoped, tag = 'scoped memory for tpu_custom_call.1']
    #allocation6 [shape = 'u8[2048]{0}', space=smem, size = 0x800, scoped, tag = 'input window, operand 1, single buffered']
    #allocation7 [shape = 'u8[32768]{0}', space=vmem, size = 0x8000, scoped, tag = 'output window, operand 0']
    %7 = vsyncpa [#allocation3], 0
    %s8 = scalar_lea.sflag [#allocation3], 1
    %9 = vsyncpa %s8, 0
    %10 = vsyncpa [#allocation5], 0
    %11 = vsyncpa [#allocation4], 0
    %s12 = scalar_lea.sflag [#allocation4], 1
    %13 = vsyncpa %s12, 0
    loop: start=0, step=1, limit=6
    $region2: #{tpu_custom_call.1} parent=1 // loop_pre_header
      _
    $region3: #{tpu_custom_call.1} parent=1 // loop_header
      %s15 = sphi 0, %s19
      %p16 = scmp.ge.s32.totalorder %s15, 6
      %s22 = sphi 0, %s34
      %s23 = sphi 0, %s30
      %s24 = sphi 0, %s22
      %s25 = sphi 0, %s23
      %s26 = sphi 0, %s24
      %s27 = sphi 0, %s25
      %s39 = sphi 0, %s41
      %s42 = sphi 0, %s39
      %s43 = sphi 0, %s42
      %s59 = sphi 0, %s43
      %s63 = sphi 0, %s63
      %s65 = sphi 0, %s63
      %s66 = sphi 0, %s65
      %s80 = sphi 0, %s66
      %s88 = sphi 0, %s90
      %s91 = sphi 0, %s88
      %s92 = sphi 0, %s91
      %s108 = sphi 0, %s92
    $region4: #{tpu_custom_call.1} parent=1 // loop_header_branch
      %18 = sbr.rel (%p16) target = $region8
    $region5: #{tpu_custom_call.1} parent=1 // loop_body
      %s20 = ssub.s32 %s15, 1
      %s21 = ssub.s32 %s15, 2
      %s28 = sadd.s32 1, %s23
      %p29 = scmp.ge.s32.totalorder %s28, 2
      %s30 = scalar_select %p29, 0, %s28
      %s31 = sadd.s32 1, %s22
      %s32 = scalar_select %p29, %s31, %s22
      %p33 = scmp.ge.s32.totalorder %s32, 2
      %s34 = scalar_select %p33, 0, %s32
      %s35 = ssub.s32 %s22, %s34
      %s36 = ssub.s32 %s23, %s30
      %s37 = sor.u32 %s35, %s36
      %p38 = scmp.eq.s32.totalorder %s37, 0
      %s40 = sadd.s32 %s39, 1
      %s41 = scalar_select %p38, %s39, %s40
      %p44 = pneg %p38
      %p45 = scmp.eq.s32.totalorder %s15, 3
      %p46 = por %p44, %p45
      %p47 = scmp.ne.s32.totalorder %s39, %s42
      %p48 = scmp.eq.s32.totalorder %s15, 0
      %p49 = por %p47, %p48
      %p50 = scmp.ne.s32.totalorder %s39, %s42
      %p51 = scmp.eq.s32.totalorder %s20, 3
      %p52 = por %p50, %p51
      %p53 = scmp.ne.s32.totalorder %s42, %s43
      %p54 = scmp.eq.s32.totalorder %s20, 0
      %p55 = por %p53, %p54
      %p56 = scmp.ne.s32.totalorder %s42, %s43
      %p57 = scmp.eq.s32.totalorder %s21, 3
      %p58 = por %p56, %p57
      %p60 = scmp.ne.s32.totalorder %s43, %s59
      %p61 = scmp.eq.s32.totalorder %s21, 0
      %p62 = por %p60, %p61
      %s64 = sadd.s32 %s63, 1
      %p67 = scmp.eq.s32.totalorder %s15, 3
      %p68 = scmp.ne.s32.totalorder %s63, %s65
      %p69 = scmp.eq.s32.totalorder %s15, 0
      %p70 = por %p68, %p69
      %p71 = scmp.ne.s32.totalorder %s63, %s65
      %p72 = scmp.eq.s32.totalorder %s20, 3
      %p73 = por %p71, %p72
      %p74 = scmp.ne.s32.totalorder %s65, %s66
      %p75 = scmp.eq.s32.totalorder %s20, 0
      %p76 = por %p74, %p75
      %p77 = scmp.ne.s32.totalorder %s65, %s66
      %p78 = scmp.eq.s32.totalorder %s21, 3
      %p79 = por %p77, %p78
      %p81 = scmp.ne.s32.totalorder %s66, %s80
      %p82 = scmp.eq.s32.totalorder %s21, 0
      %p83 = por %p81, %p82
      %s84 = ssub.s32 %s22, %s34
      %s85 = ssub.s32 %s23, %s30
      %s86 = sor.u32 %s84, %s85
      %p87 = scmp.eq.s32.totalorder %s86, 0
      %s89 = sadd.s32 %s88, 1
      %s90 = scalar_select %p87, %s88, %s89
      %p93 = pneg %p87
      %p94 = scmp.eq.s32.totalorder %s15, 3
      %p95 = por %p93, %p94
      %p96 = scmp.ne.s32.totalorder %s88, %s91
      %p97 = scmp.eq.s32.totalorder %s15, 0
      %p98 = por %p96, %p97
      %p99 = scmp.ne.s32.totalorder %s88, %s91
      %p100 = scmp.eq.s32.totalorder %s20, 3
      %p101 = por %p99, %p100
      %p102 = scmp.ne.s32.totalorder %s91, %s92
      %p103 = scmp.eq.s32.totalorder %s20, 0
      %p104 = por %p102, %p103
      %p105 = scmp.ne.s32.totalorder %s91, %s92
      %p106 = scmp.eq.s32.totalorder %s21, 3
      %p107 = por %p105, %p106
      %p109 = scmp.ne.s32.totalorder %s92, %s108
      %p110 = scmp.eq.s32.totalorder %s21, 0
      %p111 = por %p109, %p110
      %p112 = scmp.le.s32.totalorder 1, %s15
      %p113 = scmp.lt.s32.totalorder %s15, 5
      %p114 = pnand %p112, %p113
      %p115 = pneg %p114
      // Predicated region
      $region9: #{tpu_custom_call.1} parent=5 // pred_check
        _
      $region10: #{tpu_custom_call.1} parent=5 // pred_check_branch
        %117 = sbr.rel (%p114) target = $region12
      $region11: #{tpu_custom_call.1} parent=5 // pred_region
        %s118 = ssub.s32 %s15, 1
        // Predicated region
        $region13: #{tpu_custom_call.1} parent=11 // pred_check
          %p119 = pneg %p76
        $region14: #{tpu_custom_call.1} parent=11 // pred_check_branch
          %121 = sbr.rel (%p119) target = $region16
        $region15: #{tpu_custom_call.1} parent=11 // pred_region
          %s123 = ssub.s32 64, 64
          %124 = vsyncadd [#allocation5], %s123
          %127 = dma.hbm_to_smem %s1, 64, [#allocation6], [#allocation5]
        $region16: #{tpu_custom_call.1} parent=11 // pred_fallthru
          _
      $region12: #{tpu_custom_call.1} parent=5 // pred_fallthru
        _
      %p128 = scmp.lt.s32.totalorder %s15, 4
      // Predicated region
      $region17: #{tpu_custom_call.1} parent=5 // pred_check
        %p129 = pneg %p128
      $region18: #{tpu_custom_call.1} parent=5 // pred_check_branch
        %131 = sbr.rel (%p129) target = $region20
      $region19: #{tpu_custom_call.1} parent=5 // pred_region
        // Predicated region
        $region21: #{tpu_custom_call.1} parent=19 // pred_check
          %p132 = pneg %p49
        $region22: #{tpu_custom_call.1} parent=19 // pred_check_branch
          %134 = sbr.rel (%p132) target = $region24
        $region23: #{tpu_custom_call.1} parent=19 // pred_region
          %s135 = sand.u32 %s39, 1
          %s136 = scalar_lea.sflag [#allocation3], %s135
          %s137 = sand.u32 %s39, 1
          %s138 = smul.addr %s137, 24
          %s139 = scalar_lea.vmem [#allocation2], %s138
          %s141 = ssub.s32 384, 384
          %142 = vsyncadd %s136, %s141
          %s143 = smul.addr %s22, 6
          %s144 = sadd.s32 %s23, %s143
          %s145 = smul.addr %s144, 128
          %s146 = scalar_lea.hbm %s0, %s145
          %s147 = sshll.u32 %s139, 4
          %s148 = int_to_ptr.vmem [resolvable:$true] %s147
          %153 = dma.hbm_to_vmem [thread:$0]  %s146, 384, %s148, %s136, 256, 128, 8
        $region24: #{tpu_custom_call.1} parent=19 // pred_fallthru
          _
      $region20: #{tpu_custom_call.1} parent=5 // pred_fallthru
        _
      %p154 = scmp.le.s32.totalorder 1, %s15
      %p155 = scmp.lt.s32.totalorder %s15, 5
      %p156 = pnand %p154, %p155
      %p157 = pneg %p156
      // Predicated region
      $region25: #{tpu_custom_call.1} parent=5 // pred_check
        _
      $region26: #{tpu_custom_call.1} parent=5 // pred_check_branch
        %159 = sbr.rel (%p156) target = $region28
      $region27: #{tpu_custom_call.1} parent=5 // pred_region
        %s160 = ssub.s32 %s15, 1
        %s161 = sand.u32 %s42, 1
        %s162 = scalar_lea.sflag [#allocation3], %s161
        %s163 = sand.u32 %s42, 1
        %s164 = smul.addr %s163, 24
        %s165 = scalar_lea.vmem [#allocation2], %s164
        // Predicated region
        $region29: #{tpu_custom_call.1} parent=27 // pred_check
          %p166 = pneg %p55
        $region30: #{tpu_custom_call.1} parent=27 // pred_check_branch
          %168 = sbr.rel (%p166) target = $region32
        $region31: #{tpu_custom_call.1} parent=27 // pred_region
          %169 = dma.done %s162, 384
        $region32: #{tpu_custom_call.1} parent=27 // pred_fallthru
          _
        // Predicated region
        $region33: #{tpu_custom_call.1} parent=27 // pred_check
          %p170 = pneg %p76
        $region34: #{tpu_custom_call.1} parent=27 // pred_check_branch
          %172 = sbr.rel (%p170) target = $region36
        $region35: #{tpu_custom_call.1} parent=27 // pred_region
          %173 = dma.done [#allocation5], 64
        $region36: #{tpu_custom_call.1} parent=27 // pred_fallthru
          _
        %174 = sfence
        %s175 = sand.u32 %s42, 1
        %s176 = scalar_lea.sflag [#allocation3], %s175
        %s177 = sand.u32 %s42, 1
        %s178 = smul.addr %s177, 24
        %s179 = scalar_lea.vmem [#allocation2], %s178
        %p180 = pneg %p55
        %p181 = pneg %p52
        %p182 = pneg %p76
        %p183 = pneg %p73
        %p184 = pneg %p104
        %p185 = pneg %p101
        %s186 = sand.u32 %s91, 1
        %s187 = scalar_lea.sflag [#allocation4], %s186
        %s188 = sand.u32 %s91, 1
        %s189 = smul.addr %s188, 32
        %s190 = scalar_lea.vmem [#allocation7], %s189
        %v191 = vld [vmem:[%s165] sm:$0xff]
        %s192 = sadd.s32 0, 8
        %s193 = scalar_lea.vmem %s165, %s192 [#allocation2]
        %v194 = vld [vmem:[%s193] sm:$0xff]
        %s195 = sadd.s32 0, 16
        %s196 = scalar_lea.vmem %s165, %s195 [#allocation2]
        %v197 = vld [vmem:[%s196] sm:$0xff]
        %v198 = vmul.f32 %v191, %v191
        %v199 = vmul.f32 %v194, %v194
        %v200 = vadd.f32 %v198, %v199
        %v201 = vmul.f32 %v197, %v197
        %v202 = vadd.f32 %v200, %v201
        %v203 = vmax.f32 %v202, 1e-24
        %v204 = vrsqrt.pop %v203
        %v205 = vmul.f32 %v191, %v204
        %v206 = vmul.f32 %v194, %v204
        %v207 = vmul.f32 %v197, %v204
        %s208 = sld [smem:[#allocation6]]
        %s209 = sld [smem:[#allocation6 + $0x80]]
        %s210 = sld [smem:[#allocation6 + $0x100]]
        %v211 = vstv %s208
        %v212 = vmul.f32 %v205, %v211
        %v213 = vstv %s209
        %v214 = vmul.f32 %v206, %v213
        %v215 = vadd.f32 %v212, %v214
        %v216 = vstv %s210
        %v217 = vmul.f32 %v207, %v216
        %v218 = vadd.f32 %v215, %v217
        %v219 = vmax.f32 %v218, 0.0
        %v220 = vrot.slane %v219, 4
        %v221 = vmax.f32 %v219, %v220
        %v222 = vrot.slane %v221, 2
        %v223 = vmax.f32 %v221, %v222
        %v224 = vrot.slane %v223, 1
        %v225 = vmax.f32 %v223, %v224
        %s226 = sld [smem:[#allocation6 + $0x20]]
        %s227 = sld [smem:[#allocation6 + $0xa0]]
        %s228 = sld [smem:[#allocation6 + $0x120]]
        %v229 = vstv %s226
        %v230 = vmul.f32 %v205, %v229
        %v231 = vstv %s227
        %v232 = vmul.f32 %v206, %v231
        %v233 = vadd.f32 %v230, %v232
        %v234 = vstv %s228
        %v235 = vmul.f32 %v207, %v234
        %v236 = vadd.f32 %v233, %v235
        %v237 = vmax.f32 %v236, 0.0
        %v238 = vrot.slane %v237, 4
        %v239 = vmax.f32 %v237, %v238
        %v240 = vrot.slane %v239, 2
        %v241 = vmax.f32 %v239, %v240
        %v242 = vrot.slane %v241, 1
        %v243 = vmax.f32 %v241, %v242
        %v244 = vadd.f32 %v225, %v243
        %s245 = sld [smem:[#allocation6 + $0x40]]
        %s246 = sld [smem:[#allocation6 + $0xc0]]
        %s247 = sld [smem:[#allocation6 + $0x140]]
        %v248 = vstv %s245
        %v249 = vmul.f32 %v205, %v248
        %v250 = vstv %s246
        %v251 = vmul.f32 %v206, %v250
        %v252 = vadd.f32 %v249, %v251
        %v253 = vstv %s247
        %v254 = vmul.f32 %v207, %v253
        %v255 = vadd.f32 %v252, %v254
        %v256 = vmax.f32 %v255, 0.0
        %v257 = vrot.slane %v256, 4
        %v258 = vmax.f32 %v256, %v257
        %v259 = vrot.slane %v258, 2
        %v260 = vmax.f32 %v258, %v259
        %v261 = vrot.slane %v260, 1
        %v262 = vmax.f32 %v260, %v261
        %v263 = vadd.f32 %v244, %v262
        %264 = vst [vmem:[%s190] sm:$0x1] %v263
        %s265 = sld [smem:[#allocation6 + $0x1]]
        %s266 = sld [smem:[#allocation6 + $0x81]]
        %s267 = sld [smem:[#allocation6 + $0x101]]
        %v268 = vstv %s265
        %v269 = vmul.f32 %v205, %v268
        %v270 = vstv %s266
        %v271 = vmul.f32 %v206, %v270
        %v272 = vadd.f32 %v269, %v271
        %v273 = vstv %s267
        %v274 = vmul.f32 %v207, %v273
        %v275 = vadd.f32 %v272, %v274
        %v276 = vmax.f32 %v275, 0.0
        %v277 = vrot.slane %v276, 4
        %v278 = vmax.f32 %v276, %v277
        %v279 = vrot.slane %v278, 2
        %v280 = vmax.f32 %v278, %v279
        %v281 = vrot.slane %v280, 1
        %v282 = vmax.f32 %v280, %v281
        %s283 = sld [smem:[#allocation6 + $0x21]]
        %s284 = sld [smem:[#allocation6 + $0xa1]]
        %s285 = sld [smem:[#allocation6 + $0x121]]
        %v286 = vstv %s283
        %v287 = vmul.f32 %v205, %v286
        %v288 = vstv %s284
        %v289 = vmul.f32 %v206, %v288
        %v290 = vadd.f32 %v287, %v289
        %v291 = vstv %s285
        %v292 = vmul.f32 %v207, %v291
        %v293 = vadd.f32 %v290, %v292
        %v294 = vmax.f32 %v293, 0.0
        %v295 = vrot.slane %v294, 4
        %v296 = vmax.f32 %v294, %v295
        %v297 = vrot.slane %v296, 2
        %v298 = vmax.f32 %v296, %v297
        %v299 = vrot.slane %v298, 1
        %v300 = vmax.f32 %v298, %v299
        %v301 = vadd.f32 %v282, %v300
        %s302 = sld [smem:[#allocation6 + $0x41]]
        %s303 = sld [smem:[#allocation6 + $0xc1]]
        %s304 = sld [smem:[#allocation6 + $0x141]]
        %v305 = vstv %s302
        %v306 = vmul.f32 %v205, %v305
        %v307 = vstv %s303
        %v308 = vmul.f32 %v206, %v307
        %v309 = vadd.f32 %v306, %v308
        %v310 = vstv %s304
        %v311 = vmul.f32 %v207, %v310
        %v312 = vadd.f32 %v309, %v311
        %v313 = vmax.f32 %v312, 0.0
        %v314 = vrot.slane %v313, 4
        %v315 = vmax.f32 %v313, %v314
        %v316 = vrot.slane %v315, 2
        %v317 = vmax.f32 %v315, %v316
        %v318 = vrot.slane %v317, 1
        %v319 = vmax.f32 %v317, %v318
        %v320 = vadd.f32 %v301, %v319
        %321 = vst [vmem:[%s190 + $0x1] sm:$0x1] %v320
        %s322 = sld [smem:[#allocation6 + $0x2]]
        %s323 = sld [smem:[#allocation6 + $0x82]]
        %s324 = sld [smem:[#allocation6 + $0x102]]
        %v325 = vstv %s322
        %v326 = vmul.f32 %v205, %v325
        %v327 = vstv %s323
        %v328 = vmul.f32 %v206, %v327
        %v329 = vadd.f32 %v326, %v328
        %v330 = vstv %s324
        %v331 = vmul.f32 %v207, %v330
        %v332 = vadd.f32 %v329, %v331
        %v333 = vmax.f32 %v332, 0.0
        %v334 = vrot.slane %v333, 4
        %v335 = vmax.f32 %v333, %v334
        %v336 = vrot.slane %v335, 2
        %v337 = vmax.f32 %v335, %v336
        %v338 = vrot.slane %v337, 1
        %v339 = vmax.f32 %v337, %v338
        %s340 = sld [smem:[#allocation6 + $0x22]]
        %s341 = sld [smem:[#allocation6 + $0xa2]]
        %s342 = sld [smem:[#allocation6 + $0x122]]
        %v343 = vstv %s340
        %v344 = vmul.f32 %v205, %v343
        %v345 = vstv %s341
        %v346 = vmul.f32 %v206, %v345
        %v347 = vadd.f32 %v344, %v346
        %v348 = vstv %s342
        %v349 = vmul.f32 %v207, %v348
        %v350 = vadd.f32 %v347, %v349
        %v351 = vmax.f32 %v350, 0.0
        %v352 = vrot.slane %v351, 4
        %v353 = vmax.f32 %v351, %v352
        %v354 = vrot.slane %v353, 2
        %v355 = vmax.f32 %v353, %v354
        %v356 = vrot.slane %v355, 1
        %v357 = vmax.f32 %v355, %v356
        %v358 = vadd.f32 %v339, %v357
        %s359 = sld [smem:[#allocation6 + $0x42]]
        %s360 = sld [smem:[#allocation6 + $0xc2]]
        %s361 = sld [smem:[#allocation6 + $0x142]]
        %v362 = vstv %s359
        %v363 = vmul.f32 %v205, %v362
        %v364 = vstv %s360
        %v365 = vmul.f32 %v206, %v364
        %v366 = vadd.f32 %v363, %v365
        %v367 = vstv %s361
        %v368 = vmul.f32 %v207, %v367
        %v369 = vadd.f32 %v366, %v368
        %v370 = vmax.f32 %v369, 0.0
        %v371 = vrot.slane %v370, 4
        %v372 = vmax.f32 %v370, %v371
        %v373 = vrot.slane %v372, 2
        %v374 = vmax.f32 %v372, %v373
        %v375 = vrot.slane %v374, 1
        %v376 = vmax.f32 %v374, %v375
        %v377 = vadd.f32 %v358, %v376
        %378 = vst [vmem:[%s190 + $0x2] sm:$0x1] %v377
        %s379 = sld [smem:[#allocation6 + $0x3]]
        %s380 = sld [smem:[#allocation6 + $0x83]]
        %s381 = sld [smem:[#allocation6 + $0x103]]
        %v382 = vstv %s379
        %v383 = vmul.f32 %v205, %v382
        %v384 = vstv %s380
        %v385 = vmul.f32 %v206, %v384
        %v386 = vadd.f32 %v383, %v385
        %v387 = vstv %s381
        %v388 = vmul.f32 %v207, %v387
        %v389 = vadd.f32 %v386, %v388
        %v390 = vmax.f32 %v389, 0.0
        %v391 = vrot.slane %v390, 4
        %v392 = vmax.f32 %v390, %v391
        %v393 = vrot.slane %v392, 2
        %v394 = vmax.f32 %v392, %v393
        %v395 = vrot.slane %v394, 1
        %v396 = vmax.f32 %v394, %v395
        %s397 = sld [smem:[#allocation6 + $0x23]]
        %s398 = sld [smem:[#allocation6 + $0xa3]]
        %s399 = sld [smem:[#allocation6 + $0x123]]
        %v400 = vstv %s397
        %v401 = vmul.f32 %v205, %v400
        %v402 = vstv %s398
        %v403 = vmul.f32 %v206, %v402
        %v404 = vadd.f32 %v401, %v403
        %v405 = vstv %s399
        %v406 = vmul.f32 %v207, %v405
        %v407 = vadd.f32 %v404, %v406
        %v408 = vmax.f32 %v407, 0.0
        %v409 = vrot.slane %v408, 4
        %v410 = vmax.f32 %v408, %v409
        %v411 = vrot.slane %v410, 2
        %v412 = vmax.f32 %v410, %v411
        %v413 = vrot.slane %v412, 1
        %v414 = vmax.f32 %v412, %v413
        %v415 = vadd.f32 %v396, %v414
        %s416 = sld [smem:[#allocation6 + $0x43]]
        %s417 = sld [smem:[#allocation6 + $0xc3]]
        %s418 = sld [smem:[#allocation6 + $0x143]]
        %v419 = vstv %s416
        %v420 = vmul.f32 %v205, %v419
        %v421 = vstv %s417
        %v422 = vmul.f32 %v206, %v421
        %v423 = vadd.f32 %v420, %v422
        %v424 = vstv %s418
        %v425 = vmul.f32 %v207, %v424
        %v426 = vadd.f32 %v423, %v425
        %v427 = vmax.f32 %v426, 0.0
        %v428 = vrot.slane %v427, 4
        %v429 = vmax.f32 %v427, %v428
        %v430 = vrot.slane %v429, 2
        %v431 = vmax.f32 %v429, %v430
        %v432 = vrot.slane %v431, 1
        %v433 = vmax.f32 %v431, %v432
        %v434 = vadd.f32 %v415, %v433
        %435 = vst [vmem:[%s190 + $0x3] sm:$0x1] %v434
        %s436 = sld [smem:[#allocation6 + $0x4]]
        %s437 = sld [smem:[#allocation6 + $0x84]]
        %s438 = sld [smem:[#allocation6 + $0x104]]
        %v439 = vstv %s436
        %v440 = vmul.f32 %v205, %v439
        %v441 = vstv %s437
        %v442 = vmul.f32 %v206, %v441
        %v443 = vadd.f32 %v440, %v442
        %v444 = vstv %s438
        %v445 = vmul.f32 %v207, %v444
        %v446 = vadd.f32 %v443, %v445
        %v447 = vmax.f32 %v446, 0.0
        %v448 = vrot.slane %v447, 4
        %v449 = vmax.f32 %v447, %v448
        %v450 = vrot.slane %v449, 2
        %v451 = vmax.f32 %v449, %v450
        %v452 = vrot.slane %v451, 1
        %v453 = vmax.f32 %v451, %v452
        %s454 = sld [smem:[#allocation6 + $0x24]]
        %s455 = sld [smem:[#allocation6 + $0xa4]]
        %s456 = sld [smem:[#allocation6 + $0x124]]
        %v457 = vstv %s454
        %v458 = vmul.f32 %v205, %v457
        %v459 = vstv %s455
        %v460 = vmul.f32 %v206, %v459
        %v461 = vadd.f32 %v458, %v460
        %v462 = vstv %s456
        %v463 = vmul.f32 %v207, %v462
        %v464 = vadd.f32 %v461, %v463
        %v465 = vmax.f32 %v464, 0.0
        %v466 = vrot.slane %v465, 4
        %v467 = vmax.f32 %v465, %v466
        %v468 = vrot.slane %v467, 2
        %v469 = vmax.f32 %v467, %v468
        %v470 = vrot.slane %v469, 1
        %v471 = vmax.f32 %v469, %v470
        %v472 = vadd.f32 %v453, %v471
        %s473 = sld [smem:[#allocation6 + $0x44]]
        %s474 = sld [smem:[#allocation6 + $0xc4]]
        %s475 = sld [smem:[#allocation6 + $0x144]]
        %v476 = vstv %s473
        %v477 = vmul.f32 %v205, %v476
        %v478 = vstv %s474
        %v479 = vmul.f32 %v206, %v478
        %v480 = vadd.f32 %v477, %v479
        %v481 = vstv %s475
        %v482 = vmul.f32 %v207, %v481
        %v483 = vadd.f32 %v480, %v482
        %v484 = vmax.f32 %v483, 0.0
        %v485 = vrot.slane %v484, 4
        %v486 = vmax.f32 %v484, %v485
        %v487 = vrot.slane %v486, 2
        %v488 = vmax.f32 %v486, %v487
        %v489 = vrot.slane %v488, 1
        %v490 = vmax.f32 %v488, %v489
        %v491 = vadd.f32 %v472, %v490
        %492 = vst [vmem:[%s190 + $0x4] sm:$0x1] %v491
        %s493 = sld [smem:[#allocation6 + $0x5]]
        %s494 = sld [smem:[#allocation6 + $0x85]]
        %s495 = sld [smem:[#allocation6 + $0x105]]
        %v496 = vstv %s493
        %v497 = vmul.f32 %v205, %v496
        %v498 = vstv %s494
        %v499 = vmul.f32 %v206, %v498
        %v500 = vadd.f32 %v497, %v499
        %v501 = vstv %s495
        %v502 = vmul.f32 %v207, %v501
        %v503 = vadd.f32 %v500, %v502
        %v504 = vmax.f32 %v503, 0.0
        %v505 = vrot.slane %v504, 4
        %v506 = vmax.f32 %v504, %v505
        %v507 = vrot.slane %v506, 2
        %v508 = vmax.f32 %v506, %v507
        %v509 = vrot.slane %v508, 1
        %v510 = vmax.f32 %v508, %v509
        %s511 = sld [smem:[#allocation6 + $0x25]]
        %s512 = sld [smem:[#allocation6 + $0xa5]]
        %s513 = sld [smem:[#allocation6 + $0x125]]
        %v514 = vstv %s511
        %v515 = vmul.f32 %v205, %v514
        %v516 = vstv %s512
        %v517 = vmul.f32 %v206, %v516
        %v518 = vadd.f32 %v515, %v517
        %v519 = vstv %s513
        %v520 = vmul.f32 %v207, %v519
        %v521 = vadd.f32 %v518, %v520
        %v522 = vmax.f32 %v521, 0.0
        %v523 = vrot.slane %v522, 4
        %v524 = vmax.f32 %v522, %v523
        %v525 = vrot.slane %v524, 2
        %v526 = vmax.f32 %v524, %v525
        %v527 = vrot.slane %v526, 1
        %v528 = vmax.f32 %v526, %v527
        %v529 = vadd.f32 %v510, %v528
        %s530 = sld [smem:[#allocation6 + $0x45]]
        %s531 = sld [smem:[#allocation6 + $0xc5]]
        %s532 = sld [smem:[#allocation6 + $0x145]]
        %v533 = vstv %s530
        %v534 = vmul.f32 %v205, %v533
        %v535 = vstv %s531
        %v536 = vmul.f32 %v206, %v535
        %v537 = vadd.f32 %v534, %v536
        %v538 = vstv %s532
        %v539 = vmul.f32 %v207, %v538
        %v540 = vadd.f32 %v537, %v539
        %v541 = vmax.f32 %v540, 0.0
        %v542 = vrot.slane %v541, 4
        %v543 = vmax.f32 %v541, %v542
        %v544 = vrot.slane %v543, 2
        %v545 = vmax.f32 %v543, %v544
        %v546 = vrot.slane %v545, 1
        %v547 = vmax.f32 %v545, %v546
        %v548 = vadd.f32 %v529, %v547
        %549 = vst [vmem:[%s190 + $0x5] sm:$0x1] %v548
        %s550 = sld [smem:[#allocation6 + $0x6]]
        %s551 = sld [smem:[#allocation6 + $0x86]]
        %s552 = sld [smem:[#allocation6 + $0x106]]
        %v553 = vstv %s550
        %v554 = vmul.f32 %v205, %v553
        %v555 = vstv %s551
        %v556 = vmul.f32 %v206, %v555
        %v557 = vadd.f32 %v554, %v556
        %v558 = vstv %s552
        %v559 = vmul.f32 %v207, %v558
        %v560 = vadd.f32 %v557, %v559
        %v561 = vmax.f32 %v560, 0.0
        %v562 = vrot.slane %v561, 4
        %v563 = vmax.f32 %v561, %v562
        %v564 = vrot.slane %v563, 2
        %v565 = vmax.f32 %v563, %v564
        %v566 = vrot.slane %v565, 1
        %v567 = vmax.f32 %v565, %v566
        %s568 = sld [smem:[#allocation6 + $0x26]]
        %s569 = sld [smem:[#allocation6 + $0xa6]]
        %s570 = sld [smem:[#allocation6 + $0x126]]
        %v571 = vstv %s568
        %v572 = vmul.f32 %v205, %v571
        %v573 = vstv %s569
        %v574 = vmul.f32 %v206, %v573
        %v575 = vadd.f32 %v572, %v574
        %v576 = vstv %s570
        %v577 = vmul.f32 %v207, %v576
        %v578 = vadd.f32 %v575, %v577
        %v579 = vmax.f32 %v578, 0.0
        %v580 = vrot.slane %v579, 4
        %v581 = vmax.f32 %v579, %v580
        %v582 = vrot.slane %v581, 2
        %v583 = vmax.f32 %v581, %v582
        %v584 = vrot.slane %v583, 1
        %v585 = vmax.f32 %v583, %v584
        %v586 = vadd.f32 %v567, %v585
        %s587 = sld [smem:[#allocation6 + $0x46]]
        %s588 = sld [smem:[#allocation6 + $0xc6]]
        %s589 = sld [smem:[#allocation6 + $0x146]]
        %v590 = vstv %s587
        %v591 = vmul.f32 %v205, %v590
        %v592 = vstv %s588
        %v593 = vmul.f32 %v206, %v592
        %v594 = vadd.f32 %v591, %v593
        %v595 = vstv %s589
        %v596 = vmul.f32 %v207, %v595
        %v597 = vadd.f32 %v594, %v596
        %v598 = vmax.f32 %v597, 0.0
        %v599 = vrot.slane %v598, 4
        %v600 = vmax.f32 %v598, %v599
        %v601 = vrot.slane %v600, 2
        %v602 = vmax.f32 %v600, %v601
        %v603 = vrot.slane %v602, 1
        %v604 = vmax.f32 %v602, %v603
        %v605 = vadd.f32 %v586, %v604
        %606 = vst [vmem:[%s190 + $0x6] sm:$0x1] %v605
        %s607 = sld [smem:[#allocation6 + $0x7]]
        %s608 = sld [smem:[#allocation6 + $0x87]]
        %s609 = sld [smem:[#allocation6 + $0x107]]
        %v610 = vstv %s607
        %v611 = vmul.f32 %v205, %v610
        %v612 = vstv %s608
        %v613 = vmul.f32 %v206, %v612
        %v614 = vadd.f32 %v611, %v613
        %v615 = vstv %s609
        %v616 = vmul.f32 %v207, %v615
        %v617 = vadd.f32 %v614, %v616
        %v618 = vmax.f32 %v617, 0.0
        %v619 = vrot.slane %v618, 4
        %v620 = vmax.f32 %v618, %v619
        %v621 = vrot.slane %v620, 2
        %v622 = vmax.f32 %v620, %v621
        %v623 = vrot.slane %v622, 1
        %v624 = vmax.f32 %v622, %v623
        %s625 = sld [smem:[#allocation6 + $0x27]]
        %s626 = sld [smem:[#allocation6 + $0xa7]]
        %s627 = sld [smem:[#allocation6 + $0x127]]
        %v628 = vstv %s625
        %v629 = vmul.f32 %v205, %v628
        %v630 = vstv %s626
        %v631 = vmul.f32 %v206, %v630
        %v632 = vadd.f32 %v629, %v631
        %v633 = vstv %s627
        %v634 = vmul.f32 %v207, %v633
        %v635 = vadd.f32 %v632, %v634
        %v636 = vmax.f32 %v635, 0.0
        %v637 = vrot.slane %v636, 4
        %v638 = vmax.f32 %v636, %v637
        %v639 = vrot.slane %v638, 2
        %v640 = vmax.f32 %v638, %v639
        %v641 = vrot.slane %v640, 1
        %v642 = vmax.f32 %v640, %v641
        %v643 = vadd.f32 %v624, %v642
        %s644 = sld [smem:[#allocation6 + $0x47]]
        %s645 = sld [smem:[#allocation6 + $0xc7]]
        %s646 = sld [smem:[#allocation6 + $0x147]]
        %v647 = vstv %s644
        %v648 = vmul.f32 %v205, %v647
        %v649 = vstv %s645
        %v650 = vmul.f32 %v206, %v649
        %v651 = vadd.f32 %v648, %v650
        %v652 = vstv %s646
        %v653 = vmul.f32 %v207, %v652
        %v654 = vadd.f32 %v651, %v653
        %v655 = vmax.f32 %v654, 0.0
        %v656 = vrot.slane %v655, 4
        %v657 = vmax.f32 %v655, %v656
        %v658 = vrot.slane %v657, 2
        %v659 = vmax.f32 %v657, %v658
        %v660 = vrot.slane %v659, 1
        %v661 = vmax.f32 %v659, %v660
        %v662 = vadd.f32 %v643, %v661
        %663 = vst [vmem:[%s190 + $0x7] sm:$0x1] %v662
        %s664 = sld [smem:[#allocation6 + $0x8]]
        %s665 = sld [smem:[#allocation6 + $0x88]]
        %s666 = sld [smem:[#allocation6 + $0x108]]
        %v667 = vstv %s664
        %v668 = vmul.f32 %v205, %v667
        %v669 = vstv %s665
        %v670 = vmul.f32 %v206, %v669
        %v671 = vadd.f32 %v668, %v670
        %v672 = vstv %s666
        %v673 = vmul.f32 %v207, %v672
        %v674 = vadd.f32 %v671, %v673
        %v675 = vmax.f32 %v674, 0.0
        %v676 = vrot.slane %v675, 4
        %v677 = vmax.f32 %v675, %v676
        %v678 = vrot.slane %v677, 2
        %v679 = vmax.f32 %v677, %v678
        %v680 = vrot.slane %v679, 1
        %v681 = vmax.f32 %v679, %v680
        %s682 = sld [smem:[#allocation6 + $0x28]]
        %s683 = sld [smem:[#allocation6 + $0xa8]]
        %s684 = sld [smem:[#allocation6 + $0x128]]
        %v685 = vstv %s682
        %v686 = vmul.f32 %v205, %v685
        %v687 = vstv %s683
        %v688 = vmul.f32 %v206, %v687
        %v689 = vadd.f32 %v686, %v688
        %v690 = vstv %s684
        %v691 = vmul.f32 %v207, %v690
        %v692 = vadd.f32 %v689, %v691
        %v693 = vmax.f32 %v692, 0.0
        %v694 = vrot.slane %v693, 4
        %v695 = vmax.f32 %v693, %v694
        %v696 = vrot.slane %v695, 2
        %v697 = vmax.f32 %v695, %v696
        %v698 = vrot.slane %v697, 1
        %v699 = vmax.f32 %v697, %v698
        %v700 = vadd.f32 %v681, %v699
        %s701 = sld [smem:[#allocation6 + $0x48]]
        %s702 = sld [smem:[#allocation6 + $0xc8]]
        %s703 = sld [smem:[#allocation6 + $0x148]]
        %v704 = vstv %s701
        %v705 = vmul.f32 %v205, %v704
        %v706 = vstv %s702
        %v707 = vmul.f32 %v206, %v706
        %v708 = vadd.f32 %v705, %v707
        %v709 = vstv %s703
        %v710 = vmul.f32 %v207, %v709
        %v711 = vadd.f32 %v708, %v710
        %v712 = vmax.f32 %v711, 0.0
        %v713 = vrot.slane %v712, 4
        %v714 = vmax.f32 %v712, %v713
        %v715 = vrot.slane %v714, 2
        %v716 = vmax.f32 %v714, %v715
        %v717 = vrot.slane %v716, 1
        %v718 = vmax.f32 %v716, %v717
        %v719 = vadd.f32 %v700, %v718
        %720 = vst [vmem:[%s190 + $0x8] sm:$0x1] %v719
        %s721 = sld [smem:[#allocation6 + $0x9]]
        %s722 = sld [smem:[#allocation6 + $0x89]]
        %s723 = sld [smem:[#allocation6 + $0x109]]
        %v724 = vstv %s721
        %v725 = vmul.f32 %v205, %v724
        %v726 = vstv %s722
        %v727 = vmul.f32 %v206, %v726
        %v728 = vadd.f32 %v725, %v727
        %v729 = vstv %s723
        %v730 = vmul.f32 %v207, %v729
        %v731 = vadd.f32 %v728, %v730
        %v732 = vmax.f32 %v731, 0.0
        %v733 = vrot.slane %v732, 4
        %v734 = vmax.f32 %v732, %v733
        %v735 = vrot.slane %v734, 2
        %v736 = vmax.f32 %v734, %v735
        %v737 = vrot.slane %v736, 1
        %v738 = vmax.f32 %v736, %v737
        %s739 = sld [smem:[#allocation6 + $0x29]]
        %s740 = sld [smem:[#allocation6 + $0xa9]]
        %s741 = sld [smem:[#allocation6 + $0x129]]
        %v742 = vstv %s739
        %v743 = vmul.f32 %v205, %v742
        %v744 = vstv %s740
        %v745 = vmul.f32 %v206, %v744
        %v746 = vadd.f32 %v743, %v745
        %v747 = vstv %s741
        %v748 = vmul.f32 %v207, %v747
        %v749 = vadd.f32 %v746, %v748
        %v750 = vmax.f32 %v749, 0.0
        %v751 = vrot.slane %v750, 4
        %v752 = vmax.f32 %v750, %v751
        %v753 = vrot.slane %v752, 2
        %v754 = vmax.f32 %v752, %v753
        %v755 = vrot.slane %v754, 1
        %v756 = vmax.f32 %v754, %v755
        %v757 = vadd.f32 %v738, %v756
        %s758 = sld [smem:[#allocation6 + $0x49]]
        %s759 = sld [smem:[#allocation6 + $0xc9]]
        %s760 = sld [smem:[#allocation6 + $0x149]]
        %v761 = vstv %s758
        %v762 = vmul.f32 %v205, %v761
        %v763 = vstv %s759
        %v764 = vmul.f32 %v206, %v763
        %v765 = vadd.f32 %v762, %v764
        %v766 = vstv %s760
        %v767 = vmul.f32 %v207, %v766
        %v768 = vadd.f32 %v765, %v767
        %v769 = vmax.f32 %v768, 0.0
        %v770 = vrot.slane %v769, 4
        %v771 = vmax.f32 %v769, %v770
        %v772 = vrot.slane %v771, 2
        %v773 = vmax.f32 %v771, %v772
        %v774 = vrot.slane %v773, 1
        %v775 = vmax.f32 %v773, %v774
        %v776 = vadd.f32 %v757, %v775
        %777 = vst [vmem:[%s190 + $0x9] sm:$0x1] %v776
        %s778 = sld [smem:[#allocation6 + $0xa]]
        %s779 = sld [smem:[#allocation6 + $0x8a]]
        %s780 = sld [smem:[#allocation6 + $0x10a]]
        %v781 = vstv %s778
        %v782 = vmul.f32 %v205, %v781
        %v783 = vstv %s779
        %v784 = vmul.f32 %v206, %v783
        %v785 = vadd.f32 %v782, %v784
        %v786 = vstv %s780
        %v787 = vmul.f32 %v207, %v786
        %v788 = vadd.f32 %v785, %v787
        %v789 = vmax.f32 %v788, 0.0
        %v790 = vrot.slane %v789, 4
        %v791 = vmax.f32 %v789, %v790
        %v792 = vrot.slane %v791, 2
        %v793 = vmax.f32 %v791, %v792
        %v794 = vrot.slane %v793, 1
        %v795 = vmax.f32 %v793, %v794
        %s796 = sld [smem:[#allocation6 + $0x2a]]
        %s797 = sld [smem:[#allocation6 + $0xaa]]
        %s798 = sld [smem:[#allocation6 + $0x12a]]
        %v799 = vstv %s796
        %v800 = vmul.f32 %v205, %v799
        %v801 = vstv %s797
        %v802 = vmul.f32 %v206, %v801
        %v803 = vadd.f32 %v800, %v802
        %v804 = vstv %s798
        %v805 = vmul.f32 %v207, %v804
        %v806 = vadd.f32 %v803, %v805
        %v807 = vmax.f32 %v806, 0.0
        %v808 = vrot.slane %v807, 4
        %v809 = vmax.f32 %v807, %v808
        %v810 = vrot.slane %v809, 2
        %v811 = vmax.f32 %v809, %v810
        %v812 = vrot.slane %v811, 1
        %v813 = vmax.f32 %v811, %v812
        %v814 = vadd.f32 %v795, %v813
        %s815 = sld [smem:[#allocation6 + $0x4a]]
        %s816 = sld [smem:[#allocation6 + $0xca]]
        %s817 = sld [smem:[#allocation6 + $0x14a]]
        %v818 = vstv %s815
        %v819 = vmul.f32 %v205, %v818
        %v820 = vstv %s816
        %v821 = vmul.f32 %v206, %v820
        %v822 = vadd.f32 %v819, %v821
        %v823 = vstv %s817
        %v824 = vmul.f32 %v207, %v823
        %v825 = vadd.f32 %v822, %v824
        %v826 = vmax.f32 %v825, 0.0
        %v827 = vrot.slane %v826, 4
        %v828 = vmax.f32 %v826, %v827
        %v829 = vrot.slane %v828, 2
        %v830 = vmax.f32 %v828, %v829
        %v831 = vrot.slane %v830, 1
        %v832 = vmax.f32 %v830, %v831
        %v833 = vadd.f32 %v814, %v832
        %834 = vst [vmem:[%s190 + $0xa] sm:$0x1] %v833
        %s835 = sld [smem:[#allocation6 + $0xb]]
        %s836 = sld [smem:[#allocation6 + $0x8b]]
        %s837 = sld [smem:[#allocation6 + $0x10b]]
        %v838 = vstv %s835
        %v839 = vmul.f32 %v205, %v838
        %v840 = vstv %s836
        %v841 = vmul.f32 %v206, %v840
        %v842 = vadd.f32 %v839, %v841
        %v843 = vstv %s837
        %v844 = vmul.f32 %v207, %v843
        %v845 = vadd.f32 %v842, %v844
        %v846 = vmax.f32 %v845, 0.0
        %v847 = vrot.slane %v846, 4
        %v848 = vmax.f32 %v846, %v847
        %v849 = vrot.slane %v848, 2
        %v850 = vmax.f32 %v848, %v849
        %v851 = vrot.slane %v850, 1
        %v852 = vmax.f32 %v850, %v851
        %s853 = sld [smem:[#allocation6 + $0x2b]]
        %s854 = sld [smem:[#allocation6 + $0xab]]
        %s855 = sld [smem:[#allocation6 + $0x12b]]
        %v856 = vstv %s853
        %v857 = vmul.f32 %v205, %v856
        %v858 = vstv %s854
        %v859 = vmul.f32 %v206, %v858
        %v860 = vadd.f32 %v857, %v859
        %v861 = vstv %s855
        %v862 = vmul.f32 %v207, %v861
        %v863 = vadd.f32 %v860, %v862
        %v864 = vmax.f32 %v863, 0.0
        %v865 = vrot.slane %v864, 4
        %v866 = vmax.f32 %v864, %v865
        %v867 = vrot.slane %v866, 2
        %v868 = vmax.f32 %v866, %v867
        %v869 = vrot.slane %v868, 1
        %v870 = vmax.f32 %v868, %v869
        %v871 = vadd.f32 %v852, %v870
        %s872 = sld [smem:[#allocation6 + $0x4b]]
        %s873 = sld [smem:[#allocation6 + $0xcb]]
        %s874 = sld [smem:[#allocation6 + $0x14b]]
        %v875 = vstv %s872
        %v876 = vmul.f32 %v205, %v875
        %v877 = vstv %s873
        %v878 = vmul.f32 %v206, %v877
        %v879 = vadd.f32 %v876, %v878
        %v880 = vstv %s874
        %v881 = vmul.f32 %v207, %v880
        %v882 = vadd.f32 %v879, %v881
        %v883 = vmax.f32 %v882, 0.0
        %v884 = vrot.slane %v883, 4
        %v885 = vmax.f32 %v883, %v884
        %v886 = vrot.slane %v885, 2
        %v887 = vmax.f32 %v885, %v886
        %v888 = vrot.slane %v887, 1
        %v889 = vmax.f32 %v887, %v888
        %v890 = vadd.f32 %v871, %v889
        %891 = vst [vmem:[%s190 + $0xb] sm:$0x1] %v890
        %s892 = sld [smem:[#allocation6 + $0xc]]
        %s893 = sld [smem:[#allocation6 + $0x8c]]
        %s894 = sld [smem:[#allocation6 + $0x10c]]
        %v895 = vstv %s892
        %v896 = vmul.f32 %v205, %v895
        %v897 = vstv %s893
        %v898 = vmul.f32 %v206, %v897
        %v899 = vadd.f32 %v896, %v898
        %v900 = vstv %s894
        %v901 = vmul.f32 %v207, %v900
        %v902 = vadd.f32 %v899, %v901
        %v903 = vmax.f32 %v902, 0.0
        %v904 = vrot.slane %v903, 4
        %v905 = vmax.f32 %v903, %v904
        %v906 = vrot.slane %v905, 2
        %v907 = vmax.f32 %v905, %v906
        %v908 = vrot.slane %v907, 1
        %v909 = vmax.f32 %v907, %v908
        %s910 = sld [smem:[#allocation6 + $0x2c]]
        %s911 = sld [smem:[#allocation6 + $0xac]]
        %s912 = sld [smem:[#allocation6 + $0x12c]]
        %v913 = vstv %s910
        %v914 = vmul.f32 %v205, %v913
        %v915 = vstv %s911
        %v916 = vmul.f32 %v206, %v915
        %v917 = vadd.f32 %v914, %v916
        %v918 = vstv %s912
        %v919 = vmul.f32 %v207, %v918
        %v920 = vadd.f32 %v917, %v919
        %v921 = vmax.f32 %v920, 0.0
        %v922 = vrot.slane %v921, 4
        %v923 = vmax.f32 %v921, %v922
        %v924 = vrot.slane %v923, 2
        %v925 = vmax.f32 %v923, %v924
        %v926 = vrot.slane %v925, 1
        %v927 = vmax.f32 %v925, %v926
        %v928 = vadd.f32 %v909, %v927
        %s929 = sld [smem:[#allocation6 + $0x4c]]
        %s930 = sld [smem:[#allocation6 + $0xcc]]
        %s931 = sld [smem:[#allocation6 + $0x14c]]
        %v932 = vstv %s929
        %v933 = vmul.f32 %v205, %v932
        %v934 = vstv %s930
        %v935 = vmul.f32 %v206, %v934
        %v936 = vadd.f32 %v933, %v935
        %v937 = vstv %s931
        %v938 = vmul.f32 %v207, %v937
        %v939 = vadd.f32 %v936, %v938
        %v940 = vmax.f32 %v939, 0.0
        %v941 = vrot.slane %v940, 4
        %v942 = vmax.f32 %v940, %v941
        %v943 = vrot.slane %v942, 2
        %v944 = vmax.f32 %v942, %v943
        %v945 = vrot.slane %v944, 1
        %v946 = vmax.f32 %v944, %v945
        %v947 = vadd.f32 %v928, %v946
        %948 = vst [vmem:[%s190 + $0xc] sm:$0x1] %v947
        %s949 = sld [smem:[#allocation6 + $0xd]]
        %s950 = sld [smem:[#allocation6 + $0x8d]]
        %s951 = sld [smem:[#allocation6 + $0x10d]]
        %v952 = vstv %s949
        %v953 = vmul.f32 %v205, %v952
        %v954 = vstv %s950
        %v955 = vmul.f32 %v206, %v954
        %v956 = vadd.f32 %v953, %v955
        %v957 = vstv %s951
        %v958 = vmul.f32 %v207, %v957
        %v959 = vadd.f32 %v956, %v958
        %v960 = vmax.f32 %v959, 0.0
        %v961 = vrot.slane %v960, 4
        %v962 = vmax.f32 %v960, %v961
        %v963 = vrot.slane %v962, 2
        %v964 = vmax.f32 %v962, %v963
        %v965 = vrot.slane %v964, 1
        %v966 = vmax.f32 %v964, %v965
        %s967 = sld [smem:[#allocation6 + $0x2d]]
        %s968 = sld [smem:[#allocation6 + $0xad]]
        %s969 = sld [smem:[#allocation6 + $0x12d]]
        %v970 = vstv %s967
        %v971 = vmul.f32 %v205, %v970
        %v972 = vstv %s968
        %v973 = vmul.f32 %v206, %v972
        %v974 = vadd.f32 %v971, %v973
        %v975 = vstv %s969
        %v976 = vmul.f32 %v207, %v975
        %v977 = vadd.f32 %v974, %v976
        %v978 = vmax.f32 %v977, 0.0
        %v979 = vrot.slane %v978, 4
        %v980 = vmax.f32 %v978, %v979
        %v981 = vrot.slane %v980, 2
        %v982 = vmax.f32 %v980, %v981
        %v983 = vrot.slane %v982, 1
        %v984 = vmax.f32 %v982, %v983
        %v985 = vadd.f32 %v966, %v984
        %s986 = sld [smem:[#allocation6 + $0x4d]]
        %s987 = sld [smem:[#allocation6 + $0xcd]]
        %s988 = sld [smem:[#allocation6 + $0x14d]]
        %v989 = vstv %s986
        %v990 = vmul.f32 %v205, %v989
        %v991 = vstv %s987
        %v992 = vmul.f32 %v206, %v991
        %v993 = vadd.f32 %v990, %v992
        %v994 = vstv %s988
        %v995 = vmul.f32 %v207, %v994
        %v996 = vadd.f32 %v993, %v995
        %v997 = vmax.f32 %v996, 0.0
        %v998 = vrot.slane %v997, 4
        %v999 = vmax.f32 %v997, %v998
        %v1000 = vrot.slane %v999, 2
        %v1001 = vmax.f32 %v999, %v1000
        %v1002 = vrot.slane %v1001, 1
        %v1003 = vmax.f32 %v1001, %v1002
        %v1004 = vadd.f32 %v985, %v1003
        %1005 = vst [vmem:[%s190 + $0xd] sm:$0x1] %v1004
        %s1006 = sld [smem:[#allocation6 + $0xe]]
        %s1007 = sld [smem:[#allocation6 + $0x8e]]
        %s1008 = sld [smem:[#allocation6 + $0x10e]]
        %v1009 = vstv %s1006
        %v1010 = vmul.f32 %v205, %v1009
        %v1011 = vstv %s1007
        %v1012 = vmul.f32 %v206, %v1011
        %v1013 = vadd.f32 %v1010, %v1012
        %v1014 = vstv %s1008
        %v1015 = vmul.f32 %v207, %v1014
        %v1016 = vadd.f32 %v1013, %v1015
        %v1017 = vmax.f32 %v1016, 0.0
        %v1018 = vrot.slane %v1017, 4
        %v1019 = vmax.f32 %v1017, %v1018
        %v1020 = vrot.slane %v1019, 2
        %v1021 = vmax.f32 %v1019, %v1020
        %v1022 = vrot.slane %v1021, 1
        %v1023 = vmax.f32 %v1021, %v1022
        %s1024 = sld [smem:[#allocation6 + $0x2e]]
        %s1025 = sld [smem:[#allocation6 + $0xae]]
        %s1026 = sld [smem:[#allocation6 + $0x12e]]
        %v1027 = vstv %s1024
        %v1028 = vmul.f32 %v205, %v1027
        %v1029 = vstv %s1025
        %v1030 = vmul.f32 %v206, %v1029
        %v1031 = vadd.f32 %v1028, %v1030
        %v1032 = vstv %s1026
        %v1033 = vmul.f32 %v207, %v1032
        %v1034 = vadd.f32 %v1031, %v1033
        %v1035 = vmax.f32 %v1034, 0.0
        %v1036 = vrot.slane %v1035, 4
        %v1037 = vmax.f32 %v1035, %v1036
        %v1038 = vrot.slane %v1037, 2
        %v1039 = vmax.f32 %v1037, %v1038
        %v1040 = vrot.slane %v1039, 1
        %v1041 = vmax.f32 %v1039, %v1040
        %v1042 = vadd.f32 %v1023, %v1041
        %s1043 = sld [smem:[#allocation6 + $0x4e]]
        %s1044 = sld [smem:[#allocation6 + $0xce]]
        %s1045 = sld [smem:[#allocation6 + $0x14e]]
        %v1046 = vstv %s1043
        %v1047 = vmul.f32 %v205, %v1046
        %v1048 = vstv %s1044
        %v1049 = vmul.f32 %v206, %v1048
        %v1050 = vadd.f32 %v1047, %v1049
        %v1051 = vstv %s1045
        %v1052 = vmul.f32 %v207, %v1051
        %v1053 = vadd.f32 %v1050, %v1052
        %v1054 = vmax.f32 %v1053, 0.0
        %v1055 = vrot.slane %v1054, 4
        %v1056 = vmax.f32 %v1054, %v1055
        %v1057 = vrot.slane %v1056, 2
        %v1058 = vmax.f32 %v1056, %v1057
        %v1059 = vrot.slane %v1058, 1
        %v1060 = vmax.f32 %v1058, %v1059
        %v1061 = vadd.f32 %v1042, %v1060
        %1062 = vst [vmem:[%s190 + $0xe] sm:$0x1] %v1061
        %s1063 = sld [smem:[#allocation6 + $0xf]]
        %s1064 = sld [smem:[#allocation6 + $0x8f]]
        %s1065 = sld [smem:[#allocation6 + $0x10f]]
        %v1066 = vstv %s1063
        %v1067 = vmul.f32 %v205, %v1066
        %v1068 = vstv %s1064
        %v1069 = vmul.f32 %v206, %v1068
        %v1070 = vadd.f32 %v1067, %v1069
        %v1071 = vstv %s1065
        %v1072 = vmul.f32 %v207, %v1071
        %v1073 = vadd.f32 %v1070, %v1072
        %v1074 = vmax.f32 %v1073, 0.0
        %v1075 = vrot.slane %v1074, 4
        %v1076 = vmax.f32 %v1074, %v1075
        %v1077 = vrot.slane %v1076, 2
        %v1078 = vmax.f32 %v1076, %v1077
        %v1079 = vrot.slane %v1078, 1
        %v1080 = vmax.f32 %v1078, %v1079
        %s1081 = sld [smem:[#allocation6 + $0x2f]]
        %s1082 = sld [smem:[#allocation6 + $0xaf]]
        %s1083 = sld [smem:[#allocation6 + $0x12f]]
        %v1084 = vstv %s1081
        %v1085 = vmul.f32 %v205, %v1084
        %v1086 = vstv %s1082
        %v1087 = vmul.f32 %v206, %v1086
        %v1088 = vadd.f32 %v1085, %v1087
        %v1089 = vstv %s1083
        %v1090 = vmul.f32 %v207, %v1089
        %v1091 = vadd.f32 %v1088, %v1090
        %v1092 = vmax.f32 %v1091, 0.0
        %v1093 = vrot.slane %v1092, 4
        %v1094 = vmax.f32 %v1092, %v1093
        %v1095 = vrot.slane %v1094, 2
        %v1096 = vmax.f32 %v1094, %v1095
        %v1097 = vrot.slane %v1096, 1
        %v1098 = vmax.f32 %v1096, %v1097
        %v1099 = vadd.f32 %v1080, %v1098
        %s1100 = sld [smem:[#allocation6 + $0x4f]]
        %s1101 = sld [smem:[#allocation6 + $0xcf]]
        %s1102 = sld [smem:[#allocation6 + $0x14f]]
        %v1103 = vstv %s1100
        %v1104 = vmul.f32 %v205, %v1103
        %v1105 = vstv %s1101
        %v1106 = vmul.f32 %v206, %v1105
        %v1107 = vadd.f32 %v1104, %v1106
        %v1108 = vstv %s1102
        %v1109 = vmul.f32 %v207, %v1108
        %v1110 = vadd.f32 %v1107, %v1109
        %v1111 = vmax.f32 %v1110, 0.0
        %v1112 = vrot.slane %v1111, 4
        %v1113 = vmax.f32 %v1111, %v1112
        %v1114 = vrot.slane %v1113, 2
        %v1115 = vmax.f32 %v1113, %v1114
        %v1116 = vrot.slane %v1115, 1
        %v1117 = vmax.f32 %v1115, %v1116
        %v1118 = vadd.f32 %v1099, %v1117
        %1119 = vst [vmem:[%s190 + $0xf] sm:$0x1] %v1118
        %s1120 = sld [smem:[#allocation6 + $0x10]]
        %s1121 = sld [smem:[#allocation6 + $0x90]]
        %s1122 = sld [smem:[#allocation6 + $0x110]]
        %v1123 = vstv %s1120
        %v1124 = vmul.f32 %v205, %v1123
        %v1125 = vstv %s1121
        %v1126 = vmul.f32 %v206, %v1125
        %v1127 = vadd.f32 %v1124, %v1126
        %v1128 = vstv %s1122
        %v1129 = vmul.f32 %v207, %v1128
        %v1130 = vadd.f32 %v1127, %v1129
        %v1131 = vmax.f32 %v1130, 0.0
        %v1132 = vrot.slane %v1131, 4
        %v1133 = vmax.f32 %v1131, %v1132
        %v1134 = vrot.slane %v1133, 2
        %v1135 = vmax.f32 %v1133, %v1134
        %v1136 = vrot.slane %v1135, 1
        %v1137 = vmax.f32 %v1135, %v1136
        %s1138 = sld [smem:[#allocation6 + $0x30]]
        %s1139 = sld [smem:[#allocation6 + $0xb0]]
        %s1140 = sld [smem:[#allocation6 + $0x130]]
        %v1141 = vstv %s1138
        %v1142 = vmul.f32 %v205, %v1141
        %v1143 = vstv %s1139
        %v1144 = vmul.f32 %v206, %v1143
        %v1145 = vadd.f32 %v1142, %v1144
        %v1146 = vstv %s1140
        %v1147 = vmul.f32 %v207, %v1146
        %v1148 = vadd.f32 %v1145, %v1147
        %v1149 = vmax.f32 %v1148, 0.0
        %v1150 = vrot.slane %v1149, 4
        %v1151 = vmax.f32 %v1149, %v1150
        %v1152 = vrot.slane %v1151, 2
        %v1153 = vmax.f32 %v1151, %v1152
        %v1154 = vrot.slane %v1153, 1
        %v1155 = vmax.f32 %v1153, %v1154
        %v1156 = vadd.f32 %v1137, %v1155
        %s1157 = sld [smem:[#allocation6 + $0x50]]
        %s1158 = sld [smem:[#allocation6 + $0xd0]]
        %s1159 = sld [smem:[#allocation6 + $0x150]]
        %v1160 = vstv %s1157
        %v1161 = vmul.f32 %v205, %v1160
        %v1162 = vstv %s1158
        %v1163 = vmul.f32 %v206, %v1162
        %v1164 = vadd.f32 %v1161, %v1163
        %v1165 = vstv %s1159
        %v1166 = vmul.f32 %v207, %v1165
        %v1167 = vadd.f32 %v1164, %v1166
        %v1168 = vmax.f32 %v1167, 0.0
        %v1169 = vrot.slane %v1168, 4
        %v1170 = vmax.f32 %v1168, %v1169
        %v1171 = vrot.slane %v1170, 2
        %v1172 = vmax.f32 %v1170, %v1171
        %v1173 = vrot.slane %v1172, 1
        %v1174 = vmax.f32 %v1172, %v1173
        %v1175 = vadd.f32 %v1156, %v1174
        %1176 = vst [vmem:[%s190 + $0x10] sm:$0x1] %v1175
        %s1177 = sld [smem:[#allocation6 + $0x11]]
        %s1178 = sld [smem:[#allocation6 + $0x91]]
        %s1179 = sld [smem:[#allocation6 + $0x111]]
        %v1180 = vstv %s1177
        %v1181 = vmul.f32 %v205, %v1180
        %v1182 = vstv %s1178
        %v1183 = vmul.f32 %v206, %v1182
        %v1184 = vadd.f32 %v1181, %v1183
        %v1185 = vstv %s1179
        %v1186 = vmul.f32 %v207, %v1185
        %v1187 = vadd.f32 %v1184, %v1186
        %v1188 = vmax.f32 %v1187, 0.0
        %v1189 = vrot.slane %v1188, 4
        %v1190 = vmax.f32 %v1188, %v1189
        %v1191 = vrot.slane %v1190, 2
        %v1192 = vmax.f32 %v1190, %v1191
        %v1193 = vrot.slane %v1192, 1
        %v1194 = vmax.f32 %v1192, %v1193
        %s1195 = sld [smem:[#allocation6 + $0x31]]
        %s1196 = sld [smem:[#allocation6 + $0xb1]]
        %s1197 = sld [smem:[#allocation6 + $0x131]]
        %v1198 = vstv %s1195
        %v1199 = vmul.f32 %v205, %v1198
        %v1200 = vstv %s1196
        %v1201 = vmul.f32 %v206, %v1200
        %v1202 = vadd.f32 %v1199, %v1201
        %v1203 = vstv %s1197
        %v1204 = vmul.f32 %v207, %v1203
        %v1205 = vadd.f32 %v1202, %v1204
        %v1206 = vmax.f32 %v1205, 0.0
        %v1207 = vrot.slane %v1206, 4
        %v1208 = vmax.f32 %v1206, %v1207
        %v1209 = vrot.slane %v1208, 2
        %v1210 = vmax.f32 %v1208, %v1209
        %v1211 = vrot.slane %v1210, 1
        %v1212 = vmax.f32 %v1210, %v1211
        %v1213 = vadd.f32 %v1194, %v1212
        %s1214 = sld [smem:[#allocation6 + $0x51]]
        %s1215 = sld [smem:[#allocation6 + $0xd1]]
        %s1216 = sld [smem:[#allocation6 + $0x151]]
        %v1217 = vstv %s1214
        %v1218 = vmul.f32 %v205, %v1217
        %v1219 = vstv %s1215
        %v1220 = vmul.f32 %v206, %v1219
        %v1221 = vadd.f32 %v1218, %v1220
        %v1222 = vstv %s1216
        %v1223 = vmul.f32 %v207, %v1222
        %v1224 = vadd.f32 %v1221, %v1223
        %v1225 = vmax.f32 %v1224, 0.0
        %v1226 = vrot.slane %v1225, 4
        %v1227 = vmax.f32 %v1225, %v1226
        %v1228 = vrot.slane %v1227, 2
        %v1229 = vmax.f32 %v1227, %v1228
        %v1230 = vrot.slane %v1229, 1
        %v1231 = vmax.f32 %v1229, %v1230
        %v1232 = vadd.f32 %v1213, %v1231
        %1233 = vst [vmem:[%s190 + $0x11] sm:$0x1] %v1232
        %s1234 = sld [smem:[#allocation6 + $0x12]]
        %s1235 = sld [smem:[#allocation6 + $0x92]]
        %s1236 = sld [smem:[#allocation6 + $0x112]]
        %v1237 = vstv %s1234
        %v1238 = vmul.f32 %v205, %v1237
        %v1239 = vstv %s1235
        %v1240 = vmul.f32 %v206, %v1239
        %v1241 = vadd.f32 %v1238, %v1240
        %v1242 = vstv %s1236
        %v1243 = vmul.f32 %v207, %v1242
        %v1244 = vadd.f32 %v1241, %v1243
        %v1245 = vmax.f32 %v1244, 0.0
        %v1246 = vrot.slane %v1245, 4
        %v1247 = vmax.f32 %v1245, %v1246
        %v1248 = vrot.slane %v1247, 2
        %v1249 = vmax.f32 %v1247, %v1248
        %v1250 = vrot.slane %v1249, 1
        %v1251 = vmax.f32 %v1249, %v1250
        %s1252 = sld [smem:[#allocation6 + $0x32]]
        %s1253 = sld [smem:[#allocation6 + $0xb2]]
        %s1254 = sld [smem:[#allocation6 + $0x132]]
        %v1255 = vstv %s1252
        %v1256 = vmul.f32 %v205, %v1255
        %v1257 = vstv %s1253
        %v1258 = vmul.f32 %v206, %v1257
        %v1259 = vadd.f32 %v1256, %v1258
        %v1260 = vstv %s1254
        %v1261 = vmul.f32 %v207, %v1260
        %v1262 = vadd.f32 %v1259, %v1261
        %v1263 = vmax.f32 %v1262, 0.0
        %v1264 = vrot.slane %v1263, 4
        %v1265 = vmax.f32 %v1263, %v1264
        %v1266 = vrot.slane %v1265, 2
        %v1267 = vmax.f32 %v1265, %v1266
        %v1268 = vrot.slane %v1267, 1
        %v1269 = vmax.f32 %v1267, %v1268
        %v1270 = vadd.f32 %v1251, %v1269
        %s1271 = sld [smem:[#allocation6 + $0x52]]
        %s1272 = sld [smem:[#allocation6 + $0xd2]]
        %s1273 = sld [smem:[#allocation6 + $0x152]]
        %v1274 = vstv %s1271
        %v1275 = vmul.f32 %v205, %v1274
        %v1276 = vstv %s1272
        %v1277 = vmul.f32 %v206, %v1276
        %v1278 = vadd.f32 %v1275, %v1277
        %v1279 = vstv %s1273
        %v1280 = vmul.f32 %v207, %v1279
        %v1281 = vadd.f32 %v1278, %v1280
        %v1282 = vmax.f32 %v1281, 0.0
        %v1283 = vrot.slane %v1282, 4
        %v1284 = vmax.f32 %v1282, %v1283
        %v1285 = vrot.slane %v1284, 2
        %v1286 = vmax.f32 %v1284, %v1285
        %v1287 = vrot.slane %v1286, 1
        %v1288 = vmax.f32 %v1286, %v1287
        %v1289 = vadd.f32 %v1270, %v1288
        %1290 = vst [vmem:[%s190 + $0x12] sm:$0x1] %v1289
        %s1291 = sld [smem:[#allocation6 + $0x13]]
        %s1292 = sld [smem:[#allocation6 + $0x93]]
        %s1293 = sld [smem:[#allocation6 + $0x113]]
        %v1294 = vstv %s1291
        %v1295 = vmul.f32 %v205, %v1294
        %v1296 = vstv %s1292
        %v1297 = vmul.f32 %v206, %v1296
        %v1298 = vadd.f32 %v1295, %v1297
        %v1299 = vstv %s1293
        %v1300 = vmul.f32 %v207, %v1299
        %v1301 = vadd.f32 %v1298, %v1300
        %v1302 = vmax.f32 %v1301, 0.0
        %v1303 = vrot.slane %v1302, 4
        %v1304 = vmax.f32 %v1302, %v1303
        %v1305 = vrot.slane %v1304, 2
        %v1306 = vmax.f32 %v1304, %v1305
        %v1307 = vrot.slane %v1306, 1
        %v1308 = vmax.f32 %v1306, %v1307
        %s1309 = sld [smem:[#allocation6 + $0x33]]
        %s1310 = sld [smem:[#allocation6 + $0xb3]]
        %s1311 = sld [smem:[#allocation6 + $0x133]]
        %v1312 = vstv %s1309
        %v1313 = vmul.f32 %v205, %v1312
        %v1314 = vstv %s1310
        %v1315 = vmul.f32 %v206, %v1314
        %v1316 = vadd.f32 %v1313, %v1315
        %v1317 = vstv %s1311
        %v1318 = vmul.f32 %v207, %v1317
        %v1319 = vadd.f32 %v1316, %v1318
        %v1320 = vmax.f32 %v1319, 0.0
        %v1321 = vrot.slane %v1320, 4
        %v1322 = vmax.f32 %v1320, %v1321
        %v1323 = vrot.slane %v1322, 2
        %v1324 = vmax.f32 %v1322, %v1323
        %v1325 = vrot.slane %v1324, 1
        %v1326 = vmax.f32 %v1324, %v1325
        %v1327 = vadd.f32 %v1308, %v1326
        %s1328 = sld [smem:[#allocation6 + $0x53]]
        %s1329 = sld [smem:[#allocation6 + $0xd3]]
        %s1330 = sld [smem:[#allocation6 + $0x153]]
        %v1331 = vstv %s1328
        %v1332 = vmul.f32 %v205, %v1331
        %v1333 = vstv %s1329
        %v1334 = vmul.f32 %v206, %v1333
        %v1335 = vadd.f32 %v1332, %v1334
        %v1336 = vstv %s1330
        %v1337 = vmul.f32 %v207, %v1336
        %v1338 = vadd.f32 %v1335, %v1337
        %v1339 = vmax.f32 %v1338, 0.0
        %v1340 = vrot.slane %v1339, 4
        %v1341 = vmax.f32 %v1339, %v1340
        %v1342 = vrot.slane %v1341, 2
        %v1343 = vmax.f32 %v1341, %v1342
        %v1344 = vrot.slane %v1343, 1
        %v1345 = vmax.f32 %v1343, %v1344
        %v1346 = vadd.f32 %v1327, %v1345
        %1347 = vst [vmem:[%s190 + $0x13] sm:$0x1] %v1346
        %s1348 = sld [smem:[#allocation6 + $0x14]]
        %s1349 = sld [smem:[#allocation6 + $0x94]]
        %s1350 = sld [smem:[#allocation6 + $0x114]]
        %v1351 = vstv %s1348
        %v1352 = vmul.f32 %v205, %v1351
        %v1353 = vstv %s1349
        %v1354 = vmul.f32 %v206, %v1353
        %v1355 = vadd.f32 %v1352, %v1354
        %v1356 = vstv %s1350
        %v1357 = vmul.f32 %v207, %v1356
        %v1358 = vadd.f32 %v1355, %v1357
        %v1359 = vmax.f32 %v1358, 0.0
        %v1360 = vrot.slane %v1359, 4
        %v1361 = vmax.f32 %v1359, %v1360
        %v1362 = vrot.slane %v1361, 2
        %v1363 = vmax.f32 %v1361, %v1362
        %v1364 = vrot.slane %v1363, 1
        %v1365 = vmax.f32 %v1363, %v1364
        %s1366 = sld [smem:[#allocation6 + $0x34]]
        %s1367 = sld [smem:[#allocation6 + $0xb4]]
        %s1368 = sld [smem:[#allocation6 + $0x134]]
        %v1369 = vstv %s1366
        %v1370 = vmul.f32 %v205, %v1369
        %v1371 = vstv %s1367
        %v1372 = vmul.f32 %v206, %v1371
        %v1373 = vadd.f32 %v1370, %v1372
        %v1374 = vstv %s1368
        %v1375 = vmul.f32 %v207, %v1374
        %v1376 = vadd.f32 %v1373, %v1375
        %v1377 = vmax.f32 %v1376, 0.0
        %v1378 = vrot.slane %v1377, 4
        %v1379 = vmax.f32 %v1377, %v1378
        %v1380 = vrot.slane %v1379, 2
        %v1381 = vmax.f32 %v1379, %v1380
        %v1382 = vrot.slane %v1381, 1
        %v1383 = vmax.f32 %v1381, %v1382
        %v1384 = vadd.f32 %v1365, %v1383
        %s1385 = sld [smem:[#allocation6 + $0x54]]
        %s1386 = sld [smem:[#allocation6 + $0xd4]]
        %s1387 = sld [smem:[#allocation6 + $0x154]]
        %v1388 = vstv %s1385
        %v1389 = vmul.f32 %v205, %v1388
        %v1390 = vstv %s1386
        %v1391 = vmul.f32 %v206, %v1390
        %v1392 = vadd.f32 %v1389, %v1391
        %v1393 = vstv %s1387
        %v1394 = vmul.f32 %v207, %v1393
        %v1395 = vadd.f32 %v1392, %v1394
        %v1396 = vmax.f32 %v1395, 0.0
        %v1397 = vrot.slane %v1396, 4
        %v1398 = vmax.f32 %v1396, %v1397
        %v1399 = vrot.slane %v1398, 2
        %v1400 = vmax.f32 %v1398, %v1399
        %v1401 = vrot.slane %v1400, 1
        %v1402 = vmax.f32 %v1400, %v1401
        %v1403 = vadd.f32 %v1384, %v1402
        %1404 = vst [vmem:[%s190 + $0x14] sm:$0x1] %v1403
        %s1405 = sld [smem:[#allocation6 + $0x15]]
        %s1406 = sld [smem:[#allocation6 + $0x95]]
        %s1407 = sld [smem:[#allocation6 + $0x115]]
        %v1408 = vstv %s1405
        %v1409 = vmul.f32 %v205, %v1408
        %v1410 = vstv %s1406
        %v1411 = vmul.f32 %v206, %v1410
        %v1412 = vadd.f32 %v1409, %v1411
        %v1413 = vstv %s1407
        %v1414 = vmul.f32 %v207, %v1413
        %v1415 = vadd.f32 %v1412, %v1414
        %v1416 = vmax.f32 %v1415, 0.0
        %v1417 = vrot.slane %v1416, 4
        %v1418 = vmax.f32 %v1416, %v1417
        %v1419 = vrot.slane %v1418, 2
        %v1420 = vmax.f32 %v1418, %v1419
        %v1421 = vrot.slane %v1420, 1
        %v1422 = vmax.f32 %v1420, %v1421
        %s1423 = sld [smem:[#allocation6 + $0x35]]
        %s1424 = sld [smem:[#allocation6 + $0xb5]]
        %s1425 = sld [smem:[#allocation6 + $0x135]]
        %v1426 = vstv %s1423
        %v1427 = vmul.f32 %v205, %v1426
        %v1428 = vstv %s1424
        %v1429 = vmul.f32 %v206, %v1428
        %v1430 = vadd.f32 %v1427, %v1429
        %v1431 = vstv %s1425
        %v1432 = vmul.f32 %v207, %v1431
        %v1433 = vadd.f32 %v1430, %v1432
        %v1434 = vmax.f32 %v1433, 0.0
        %v1435 = vrot.slane %v1434, 4
        %v1436 = vmax.f32 %v1434, %v1435
        %v1437 = vrot.slane %v1436, 2
        %v1438 = vmax.f32 %v1436, %v1437
        %v1439 = vrot.slane %v1438, 1
        %v1440 = vmax.f32 %v1438, %v1439
        %v1441 = vadd.f32 %v1422, %v1440
        %s1442 = sld [smem:[#allocation6 + $0x55]]
        %s1443 = sld [smem:[#allocation6 + $0xd5]]
        %s1444 = sld [smem:[#allocation6 + $0x155]]
        %v1445 = vstv %s1442
        %v1446 = vmul.f32 %v205, %v1445
        %v1447 = vstv %s1443
        %v1448 = vmul.f32 %v206, %v1447
        %v1449 = vadd.f32 %v1446, %v1448
        %v1450 = vstv %s1444
        %v1451 = vmul.f32 %v207, %v1450
        %v1452 = vadd.f32 %v1449, %v1451
        %v1453 = vmax.f32 %v1452, 0.0
        %v1454 = vrot.slane %v1453, 4
        %v1455 = vmax.f32 %v1453, %v1454
        %v1456 = vrot.slane %v1455, 2
        %v1457 = vmax.f32 %v1455, %v1456
        %v1458 = vrot.slane %v1457, 1
        %v1459 = vmax.f32 %v1457, %v1458
        %v1460 = vadd.f32 %v1441, %v1459
        %1461 = vst [vmem:[%s190 + $0x15] sm:$0x1] %v1460
        %s1462 = sld [smem:[#allocation6 + $0x16]]
        %s1463 = sld [smem:[#allocation6 + $0x96]]
        %s1464 = sld [smem:[#allocation6 + $0x116]]
        %v1465 = vstv %s1462
        %v1466 = vmul.f32 %v205, %v1465
        %v1467 = vstv %s1463
        %v1468 = vmul.f32 %v206, %v1467
        %v1469 = vadd.f32 %v1466, %v1468
        %v1470 = vstv %s1464
        %v1471 = vmul.f32 %v207, %v1470
        %v1472 = vadd.f32 %v1469, %v1471
        %v1473 = vmax.f32 %v1472, 0.0
        %v1474 = vrot.slane %v1473, 4
        %v1475 = vmax.f32 %v1473, %v1474
        %v1476 = vrot.slane %v1475, 2
        %v1477 = vmax.f32 %v1475, %v1476
        %v1478 = vrot.slane %v1477, 1
        %v1479 = vmax.f32 %v1477, %v1478
        %s1480 = sld [smem:[#allocation6 + $0x36]]
        %s1481 = sld [smem:[#allocation6 + $0xb6]]
        %s1482 = sld [smem:[#allocation6 + $0x136]]
        %v1483 = vstv %s1480
        %v1484 = vmul.f32 %v205, %v1483
        %v1485 = vstv %s1481
        %v1486 = vmul.f32 %v206, %v1485
        %v1487 = vadd.f32 %v1484, %v1486
        %v1488 = vstv %s1482
        %v1489 = vmul.f32 %v207, %v1488
        %v1490 = vadd.f32 %v1487, %v1489
        %v1491 = vmax.f32 %v1490, 0.0
        %v1492 = vrot.slane %v1491, 4
        %v1493 = vmax.f32 %v1491, %v1492
        %v1494 = vrot.slane %v1493, 2
        %v1495 = vmax.f32 %v1493, %v1494
        %v1496 = vrot.slane %v1495, 1
        %v1497 = vmax.f32 %v1495, %v1496
        %v1498 = vadd.f32 %v1479, %v1497
        %s1499 = sld [smem:[#allocation6 + $0x56]]
        %s1500 = sld [smem:[#allocation6 + $0xd6]]
        %s1501 = sld [smem:[#allocation6 + $0x156]]
        %v1502 = vstv %s1499
        %v1503 = vmul.f32 %v205, %v1502
        %v1504 = vstv %s1500
        %v1505 = vmul.f32 %v206, %v1504
        %v1506 = vadd.f32 %v1503, %v1505
        %v1507 = vstv %s1501
        %v1508 = vmul.f32 %v207, %v1507
        %v1509 = vadd.f32 %v1506, %v1508
        %v1510 = vmax.f32 %v1509, 0.0
        %v1511 = vrot.slane %v1510, 4
        %v1512 = vmax.f32 %v1510, %v1511
        %v1513 = vrot.slane %v1512, 2
        %v1514 = vmax.f32 %v1512, %v1513
        %v1515 = vrot.slane %v1514, 1
        %v1516 = vmax.f32 %v1514, %v1515
        %v1517 = vadd.f32 %v1498, %v1516
        %1518 = vst [vmem:[%s190 + $0x16] sm:$0x1] %v1517
        %s1519 = sld [smem:[#allocation6 + $0x17]]
        %s1520 = sld [smem:[#allocation6 + $0x97]]
        %s1521 = sld [smem:[#allocation6 + $0x117]]
        %v1522 = vstv %s1519
        %v1523 = vmul.f32 %v205, %v1522
        %v1524 = vstv %s1520
        %v1525 = vmul.f32 %v206, %v1524
        %v1526 = vadd.f32 %v1523, %v1525
        %v1527 = vstv %s1521
        %v1528 = vmul.f32 %v207, %v1527
        %v1529 = vadd.f32 %v1526, %v1528
        %v1530 = vmax.f32 %v1529, 0.0
        %v1531 = vrot.slane %v1530, 4
        %v1532 = vmax.f32 %v1530, %v1531
        %v1533 = vrot.slane %v1532, 2
        %v1534 = vmax.f32 %v1532, %v1533
        %v1535 = vrot.slane %v1534, 1
        %v1536 = vmax.f32 %v1534, %v1535
        %s1537 = sld [smem:[#allocation6 + $0x37]]
        %s1538 = sld [smem:[#allocation6 + $0xb7]]
        %s1539 = sld [smem:[#allocation6 + $0x137]]
        %v1540 = vstv %s1537
        %v1541 = vmul.f32 %v205, %v1540
        %v1542 = vstv %s1538
        %v1543 = vmul.f32 %v206, %v1542
        %v1544 = vadd.f32 %v1541, %v1543
        %v1545 = vstv %s1539
        %v1546 = vmul.f32 %v207, %v1545
        %v1547 = vadd.f32 %v1544, %v1546
        %v1548 = vmax.f32 %v1547, 0.0
        %v1549 = vrot.slane %v1548, 4
        %v1550 = vmax.f32 %v1548, %v1549
        %v1551 = vrot.slane %v1550, 2
        %v1552 = vmax.f32 %v1550, %v1551
        %v1553 = vrot.slane %v1552, 1
        %v1554 = vmax.f32 %v1552, %v1553
        %v1555 = vadd.f32 %v1536, %v1554
        %s1556 = sld [smem:[#allocation6 + $0x57]]
        %s1557 = sld [smem:[#allocation6 + $0xd7]]
        %s1558 = sld [smem:[#allocation6 + $0x157]]
        %v1559 = vstv %s1556
        %v1560 = vmul.f32 %v205, %v1559
        %v1561 = vstv %s1557
        %v1562 = vmul.f32 %v206, %v1561
        %v1563 = vadd.f32 %v1560, %v1562
        %v1564 = vstv %s1558
        %v1565 = vmul.f32 %v207, %v1564
        %v1566 = vadd.f32 %v1563, %v1565
        %v1567 = vmax.f32 %v1566, 0.0
        %v1568 = vrot.slane %v1567, 4
        %v1569 = vmax.f32 %v1567, %v1568
        %v1570 = vrot.slane %v1569, 2
        %v1571 = vmax.f32 %v1569, %v1570
        %v1572 = vrot.slane %v1571, 1
        %v1573 = vmax.f32 %v1571, %v1572
        %v1574 = vadd.f32 %v1555, %v1573
        %1575 = vst [vmem:[%s190 + $0x17] sm:$0x1] %v1574
        %s1576 = sld [smem:[#allocation6 + $0x18]]
        %s1577 = sld [smem:[#allocation6 + $0x98]]
        %s1578 = sld [smem:[#allocation6 + $0x118]]
        %v1579 = vstv %s1576
        %v1580 = vmul.f32 %v205, %v1579
        %v1581 = vstv %s1577
        %v1582 = vmul.f32 %v206, %v1581
        %v1583 = vadd.f32 %v1580, %v1582
        %v1584 = vstv %s1578
        %v1585 = vmul.f32 %v207, %v1584
        %v1586 = vadd.f32 %v1583, %v1585
        %v1587 = vmax.f32 %v1586, 0.0
        %v1588 = vrot.slane %v1587, 4
        %v1589 = vmax.f32 %v1587, %v1588
        %v1590 = vrot.slane %v1589, 2
        %v1591 = vmax.f32 %v1589, %v1590
        %v1592 = vrot.slane %v1591, 1
        %v1593 = vmax.f32 %v1591, %v1592
        %s1594 = sld [smem:[#allocation6 + $0x38]]
        %s1595 = sld [smem:[#allocation6 + $0xb8]]
        %s1596 = sld [smem:[#allocation6 + $0x138]]
        %v1597 = vstv %s1594
        %v1598 = vmul.f32 %v205, %v1597
        %v1599 = vstv %s1595
        %v1600 = vmul.f32 %v206, %v1599
        %v1601 = vadd.f32 %v1598, %v1600
        %v1602 = vstv %s1596
        %v1603 = vmul.f32 %v207, %v1602
        %v1604 = vadd.f32 %v1601, %v1603
        %v1605 = vmax.f32 %v1604, 0.0
        %v1606 = vrot.slane %v1605, 4
        %v1607 = vmax.f32 %v1605, %v1606
        %v1608 = vrot.slane %v1607, 2
        %v1609 = vmax.f32 %v1607, %v1608
        %v1610 = vrot.slane %v1609, 1
        %v1611 = vmax.f32 %v1609, %v1610
        %v1612 = vadd.f32 %v1593, %v1611
        %s1613 = sld [smem:[#allocation6 + $0x58]]
        %s1614 = sld [smem:[#allocation6 + $0xd8]]
        %s1615 = sld [smem:[#allocation6 + $0x158]]
        %v1616 = vstv %s1613
        %v1617 = vmul.f32 %v205, %v1616
        %v1618 = vstv %s1614
        %v1619 = vmul.f32 %v206, %v1618
        %v1620 = vadd.f32 %v1617, %v1619
        %v1621 = vstv %s1615
        %v1622 = vmul.f32 %v207, %v1621
        %v1623 = vadd.f32 %v1620, %v1622
        %v1624 = vmax.f32 %v1623, 0.0
        %v1625 = vrot.slane %v1624, 4
        %v1626 = vmax.f32 %v1624, %v1625
        %v1627 = vrot.slane %v1626, 2
        %v1628 = vmax.f32 %v1626, %v1627
        %v1629 = vrot.slane %v1628, 1
        %v1630 = vmax.f32 %v1628, %v1629
        %v1631 = vadd.f32 %v1612, %v1630
        %1632 = vst [vmem:[%s190 + $0x18] sm:$0x1] %v1631
        %s1633 = sld [smem:[#allocation6 + $0x19]]
        %s1634 = sld [smem:[#allocation6 + $0x99]]
        %s1635 = sld [smem:[#allocation6 + $0x119]]
        %v1636 = vstv %s1633
        %v1637 = vmul.f32 %v205, %v1636
        %v1638 = vstv %s1634
        %v1639 = vmul.f32 %v206, %v1638
        %v1640 = vadd.f32 %v1637, %v1639
        %v1641 = vstv %s1635
        %v1642 = vmul.f32 %v207, %v1641
        %v1643 = vadd.f32 %v1640, %v1642
        %v1644 = vmax.f32 %v1643, 0.0
        %v1645 = vrot.slane %v1644, 4
        %v1646 = vmax.f32 %v1644, %v1645
        %v1647 = vrot.slane %v1646, 2
        %v1648 = vmax.f32 %v1646, %v1647
        %v1649 = vrot.slane %v1648, 1
        %v1650 = vmax.f32 %v1648, %v1649
        %s1651 = sld [smem:[#allocation6 + $0x39]]
        %s1652 = sld [smem:[#allocation6 + $0xb9]]
        %s1653 = sld [smem:[#allocation6 + $0x139]]
        %v1654 = vstv %s1651
        %v1655 = vmul.f32 %v205, %v1654
        %v1656 = vstv %s1652
        %v1657 = vmul.f32 %v206, %v1656
        %v1658 = vadd.f32 %v1655, %v1657
        %v1659 = vstv %s1653
        %v1660 = vmul.f32 %v207, %v1659
        %v1661 = vadd.f32 %v1658, %v1660
        %v1662 = vmax.f32 %v1661, 0.0
        %v1663 = vrot.slane %v1662, 4
        %v1664 = vmax.f32 %v1662, %v1663
        %v1665 = vrot.slane %v1664, 2
        %v1666 = vmax.f32 %v1664, %v1665
        %v1667 = vrot.slane %v1666, 1
        %v1668 = vmax.f32 %v1666, %v1667
        %v1669 = vadd.f32 %v1650, %v1668
        %s1670 = sld [smem:[#allocation6 + $0x59]]
        %s1671 = sld [smem:[#allocation6 + $0xd9]]
        %s1672 = sld [smem:[#allocation6 + $0x159]]
        %v1673 = vstv %s1670
        %v1674 = vmul.f32 %v205, %v1673
        %v1675 = vstv %s1671
        %v1676 = vmul.f32 %v206, %v1675
        %v1677 = vadd.f32 %v1674, %v1676
        %v1678 = vstv %s1672
        %v1679 = vmul.f32 %v207, %v1678
        %v1680 = vadd.f32 %v1677, %v1679
        %v1681 = vmax.f32 %v1680, 0.0
        %v1682 = vrot.slane %v1681, 4
        %v1683 = vmax.f32 %v1681, %v1682
        %v1684 = vrot.slane %v1683, 2
        %v1685 = vmax.f32 %v1683, %v1684
        %v1686 = vrot.slane %v1685, 1
        %v1687 = vmax.f32 %v1685, %v1686
        %v1688 = vadd.f32 %v1669, %v1687
        %1689 = vst [vmem:[%s190 + $0x19] sm:$0x1] %v1688
        %s1690 = sld [smem:[#allocation6 + $0x1a]]
        %s1691 = sld [smem:[#allocation6 + $0x9a]]
        %s1692 = sld [smem:[#allocation6 + $0x11a]]
        %v1693 = vstv %s1690
        %v1694 = vmul.f32 %v205, %v1693
        %v1695 = vstv %s1691
        %v1696 = vmul.f32 %v206, %v1695
        %v1697 = vadd.f32 %v1694, %v1696
        %v1698 = vstv %s1692
        %v1699 = vmul.f32 %v207, %v1698
        %v1700 = vadd.f32 %v1697, %v1699
        %v1701 = vmax.f32 %v1700, 0.0
        %v1702 = vrot.slane %v1701, 4
        %v1703 = vmax.f32 %v1701, %v1702
        %v1704 = vrot.slane %v1703, 2
        %v1705 = vmax.f32 %v1703, %v1704
        %v1706 = vrot.slane %v1705, 1
        %v1707 = vmax.f32 %v1705, %v1706
        %s1708 = sld [smem:[#allocation6 + $0x3a]]
        %s1709 = sld [smem:[#allocation6 + $0xba]]
        %s1710 = sld [smem:[#allocation6 + $0x13a]]
        %v1711 = vstv %s1708
        %v1712 = vmul.f32 %v205, %v1711
        %v1713 = vstv %s1709
        %v1714 = vmul.f32 %v206, %v1713
        %v1715 = vadd.f32 %v1712, %v1714
        %v1716 = vstv %s1710
        %v1717 = vmul.f32 %v207, %v1716
        %v1718 = vadd.f32 %v1715, %v1717
        %v1719 = vmax.f32 %v1718, 0.0
        %v1720 = vrot.slane %v1719, 4
        %v1721 = vmax.f32 %v1719, %v1720
        %v1722 = vrot.slane %v1721, 2
        %v1723 = vmax.f32 %v1721, %v1722
        %v1724 = vrot.slane %v1723, 1
        %v1725 = vmax.f32 %v1723, %v1724
        %v1726 = vadd.f32 %v1707, %v1725
        %s1727 = sld [smem:[#allocation6 + $0x5a]]
        %s1728 = sld [smem:[#allocation6 + $0xda]]
        %s1729 = sld [smem:[#allocation6 + $0x15a]]
        %v1730 = vstv %s1727
        %v1731 = vmul.f32 %v205, %v1730
        %v1732 = vstv %s1728
        %v1733 = vmul.f32 %v206, %v1732
        %v1734 = vadd.f32 %v1731, %v1733
        %v1735 = vstv %s1729
        %v1736 = vmul.f32 %v207, %v1735
        %v1737 = vadd.f32 %v1734, %v1736
        %v1738 = vmax.f32 %v1737, 0.0
        %v1739 = vrot.slane %v1738, 4
        %v1740 = vmax.f32 %v1738, %v1739
        %v1741 = vrot.slane %v1740, 2
        %v1742 = vmax.f32 %v1740, %v1741
        %v1743 = vrot.slane %v1742, 1
        %v1744 = vmax.f32 %v1742, %v1743
        %v1745 = vadd.f32 %v1726, %v1744
        %1746 = vst [vmem:[%s190 + $0x1a] sm:$0x1] %v1745
        %s1747 = sld [smem:[#allocation6 + $0x1b]]
        %s1748 = sld [smem:[#allocation6 + $0x9b]]
        %s1749 = sld [smem:[#allocation6 + $0x11b]]
        %v1750 = vstv %s1747
        %v1751 = vmul.f32 %v205, %v1750
        %v1752 = vstv %s1748
        %v1753 = vmul.f32 %v206, %v1752
        %v1754 = vadd.f32 %v1751, %v1753
        %v1755 = vstv %s1749
        %v1756 = vmul.f32 %v207, %v1755
        %v1757 = vadd.f32 %v1754, %v1756
        %v1758 = vmax.f32 %v1757, 0.0
        %v1759 = vrot.slane %v1758, 4
        %v1760 = vmax.f32 %v1758, %v1759
        %v1761 = vrot.slane %v1760, 2
        %v1762 = vmax.f32 %v1760, %v1761
        %v1763 = vrot.slane %v1762, 1
        %v1764 = vmax.f32 %v1762, %v1763
        %s1765 = sld [smem:[#allocation6 + $0x3b]]
        %s1766 = sld [smem:[#allocation6 + $0xbb]]
        %s1767 = sld [smem:[#allocation6 + $0x13b]]
        %v1768 = vstv %s1765
        %v1769 = vmul.f32 %v205, %v1768
        %v1770 = vstv %s1766
        %v1771 = vmul.f32 %v206, %v1770
        %v1772 = vadd.f32 %v1769, %v1771
        %v1773 = vstv %s1767
        %v1774 = vmul.f32 %v207, %v1773
        %v1775 = vadd.f32 %v1772, %v1774
        %v1776 = vmax.f32 %v1775, 0.0
        %v1777 = vrot.slane %v1776, 4
        %v1778 = vmax.f32 %v1776, %v1777
        %v1779 = vrot.slane %v1778, 2
        %v1780 = vmax.f32 %v1778, %v1779
        %v1781 = vrot.slane %v1780, 1
        %v1782 = vmax.f32 %v1780, %v1781
        %v1783 = vadd.f32 %v1764, %v1782
        %s1784 = sld [smem:[#allocation6 + $0x5b]]
        %s1785 = sld [smem:[#allocation6 + $0xdb]]
        %s1786 = sld [smem:[#allocation6 + $0x15b]]
        %v1787 = vstv %s1784
        %v1788 = vmul.f32 %v205, %v1787
        %v1789 = vstv %s1785
        %v1790 = vmul.f32 %v206, %v1789
        %v1791 = vadd.f32 %v1788, %v1790
        %v1792 = vstv %s1786
        %v1793 = vmul.f32 %v207, %v1792
        %v1794 = vadd.f32 %v1791, %v1793
        %v1795 = vmax.f32 %v1794, 0.0
        %v1796 = vrot.slane %v1795, 4
        %v1797 = vmax.f32 %v1795, %v1796
        %v1798 = vrot.slane %v1797, 2
        %v1799 = vmax.f32 %v1797, %v1798
        %v1800 = vrot.slane %v1799, 1
        %v1801 = vmax.f32 %v1799, %v1800
        %v1802 = vadd.f32 %v1783, %v1801
        %1803 = vst [vmem:[%s190 + $0x1b] sm:$0x1] %v1802
        %s1804 = sld [smem:[#allocation6 + $0x1c]]
        %s1805 = sld [smem:[#allocation6 + $0x9c]]
        %s1806 = sld [smem:[#allocation6 + $0x11c]]
        %v1807 = vstv %s1804
        %v1808 = vmul.f32 %v205, %v1807
        %v1809 = vstv %s1805
        %v1810 = vmul.f32 %v206, %v1809
        %v1811 = vadd.f32 %v1808, %v1810
        %v1812 = vstv %s1806
        %v1813 = vmul.f32 %v207, %v1812
        %v1814 = vadd.f32 %v1811, %v1813
        %v1815 = vmax.f32 %v1814, 0.0
        %v1816 = vrot.slane %v1815, 4
        %v1817 = vmax.f32 %v1815, %v1816
        %v1818 = vrot.slane %v1817, 2
        %v1819 = vmax.f32 %v1817, %v1818
        %v1820 = vrot.slane %v1819, 1
        %v1821 = vmax.f32 %v1819, %v1820
        %s1822 = sld [smem:[#allocation6 + $0x3c]]
        %s1823 = sld [smem:[#allocation6 + $0xbc]]
        %s1824 = sld [smem:[#allocation6 + $0x13c]]
        %v1825 = vstv %s1822
        %v1826 = vmul.f32 %v205, %v1825
        %v1827 = vstv %s1823
        %v1828 = vmul.f32 %v206, %v1827
        %v1829 = vadd.f32 %v1826, %v1828
        %v1830 = vstv %s1824
        %v1831 = vmul.f32 %v207, %v1830
        %v1832 = vadd.f32 %v1829, %v1831
        %v1833 = vmax.f32 %v1832, 0.0
        %v1834 = vrot.slane %v1833, 4
        %v1835 = vmax.f32 %v1833, %v1834
        %v1836 = vrot.slane %v1835, 2
        %v1837 = vmax.f32 %v1835, %v1836
        %v1838 = vrot.slane %v1837, 1
        %v1839 = vmax.f32 %v1837, %v1838
        %v1840 = vadd.f32 %v1821, %v1839
        %s1841 = sld [smem:[#allocation6 + $0x5c]]
        %s1842 = sld [smem:[#allocation6 + $0xdc]]
        %s1843 = sld [smem:[#allocation6 + $0x15c]]
        %v1844 = vstv %s1841
        %v1845 = vmul.f32 %v205, %v1844
        %v1846 = vstv %s1842
        %v1847 = vmul.f32 %v206, %v1846
        %v1848 = vadd.f32 %v1845, %v1847
        %v1849 = vstv %s1843
        %v1850 = vmul.f32 %v207, %v1849
        %v1851 = vadd.f32 %v1848, %v1850
        %v1852 = vmax.f32 %v1851, 0.0
        %v1853 = vrot.slane %v1852, 4
        %v1854 = vmax.f32 %v1852, %v1853
        %v1855 = vrot.slane %v1854, 2
        %v1856 = vmax.f32 %v1854, %v1855
        %v1857 = vrot.slane %v1856, 1
        %v1858 = vmax.f32 %v1856, %v1857
        %v1859 = vadd.f32 %v1840, %v1858
        %1860 = vst [vmem:[%s190 + $0x1c] sm:$0x1] %v1859
        %s1861 = sld [smem:[#allocation6 + $0x1d]]
        %s1862 = sld [smem:[#allocation6 + $0x9d]]
        %s1863 = sld [smem:[#allocation6 + $0x11d]]
        %v1864 = vstv %s1861
        %v1865 = vmul.f32 %v205, %v1864
        %v1866 = vstv %s1862
        %v1867 = vmul.f32 %v206, %v1866
        %v1868 = vadd.f32 %v1865, %v1867
        %v1869 = vstv %s1863
        %v1870 = vmul.f32 %v207, %v1869
        %v1871 = vadd.f32 %v1868, %v1870
        %v1872 = vmax.f32 %v1871, 0.0
        %v1873 = vrot.slane %v1872, 4
        %v1874 = vmax.f32 %v1872, %v1873
        %v1875 = vrot.slane %v1874, 2
        %v1876 = vmax.f32 %v1874, %v1875
        %v1877 = vrot.slane %v1876, 1
        %v1878 = vmax.f32 %v1876, %v1877
        %s1879 = sld [smem:[#allocation6 + $0x3d]]
        %s1880 = sld [smem:[#allocation6 + $0xbd]]
        %s1881 = sld [smem:[#allocation6 + $0x13d]]
        %v1882 = vstv %s1879
        %v1883 = vmul.f32 %v205, %v1882
        %v1884 = vstv %s1880
        %v1885 = vmul.f32 %v206, %v1884
        %v1886 = vadd.f32 %v1883, %v1885
        %v1887 = vstv %s1881
        %v1888 = vmul.f32 %v207, %v1887
        %v1889 = vadd.f32 %v1886, %v1888
        %v1890 = vmax.f32 %v1889, 0.0
        %v1891 = vrot.slane %v1890, 4
        %v1892 = vmax.f32 %v1890, %v1891
        %v1893 = vrot.slane %v1892, 2
        %v1894 = vmax.f32 %v1892, %v1893
        %v1895 = vrot.slane %v1894, 1
        %v1896 = vmax.f32 %v1894, %v1895
        %v1897 = vadd.f32 %v1878, %v1896
        %s1898 = sld [smem:[#allocation6 + $0x5d]]
        %s1899 = sld [smem:[#allocation6 + $0xdd]]
        %s1900 = sld [smem:[#allocation6 + $0x15d]]
        %v1901 = vstv %s1898
        %v1902 = vmul.f32 %v205, %v1901
        %v1903 = vstv %s1899
        %v1904 = vmul.f32 %v206, %v1903
        %v1905 = vadd.f32 %v1902, %v1904
        %v1906 = vstv %s1900
        %v1907 = vmul.f32 %v207, %v1906
        %v1908 = vadd.f32 %v1905, %v1907
        %v1909 = vmax.f32 %v1908, 0.0
        %v1910 = vrot.slane %v1909, 4
        %v1911 = vmax.f32 %v1909, %v1910
        %v1912 = vrot.slane %v1911, 2
        %v1913 = vmax.f32 %v1911, %v1912
        %v1914 = vrot.slane %v1913, 1
        %v1915 = vmax.f32 %v1913, %v1914
        %v1916 = vadd.f32 %v1897, %v1915
        %1917 = vst [vmem:[%s190 + $0x1d] sm:$0x1] %v1916
        %s1918 = sld [smem:[#allocation6 + $0x1e]]
        %s1919 = sld [smem:[#allocation6 + $0x9e]]
        %s1920 = sld [smem:[#allocation6 + $0x11e]]
        %v1921 = vstv %s1918
        %v1922 = vmul.f32 %v205, %v1921
        %v1923 = vstv %s1919
        %v1924 = vmul.f32 %v206, %v1923
        %v1925 = vadd.f32 %v1922, %v1924
        %v1926 = vstv %s1920
        %v1927 = vmul.f32 %v207, %v1926
        %v1928 = vadd.f32 %v1925, %v1927
        %v1929 = vmax.f32 %v1928, 0.0
        %v1930 = vrot.slane %v1929, 4
        %v1931 = vmax.f32 %v1929, %v1930
        %v1932 = vrot.slane %v1931, 2
        %v1933 = vmax.f32 %v1931, %v1932
        %v1934 = vrot.slane %v1933, 1
        %v1935 = vmax.f32 %v1933, %v1934
        %s1936 = sld [smem:[#allocation6 + $0x3e]]
        %s1937 = sld [smem:[#allocation6 + $0xbe]]
        %s1938 = sld [smem:[#allocation6 + $0x13e]]
        %v1939 = vstv %s1936
        %v1940 = vmul.f32 %v205, %v1939
        %v1941 = vstv %s1937
        %v1942 = vmul.f32 %v206, %v1941
        %v1943 = vadd.f32 %v1940, %v1942
        %v1944 = vstv %s1938
        %v1945 = vmul.f32 %v207, %v1944
        %v1946 = vadd.f32 %v1943, %v1945
        %v1947 = vmax.f32 %v1946, 0.0
        %v1948 = vrot.slane %v1947, 4
        %v1949 = vmax.f32 %v1947, %v1948
        %v1950 = vrot.slane %v1949, 2
        %v1951 = vmax.f32 %v1949, %v1950
        %v1952 = vrot.slane %v1951, 1
        %v1953 = vmax.f32 %v1951, %v1952
        %v1954 = vadd.f32 %v1935, %v1953
        %s1955 = sld [smem:[#allocation6 + $0x5e]]
        %s1956 = sld [smem:[#allocation6 + $0xde]]
        %s1957 = sld [smem:[#allocation6 + $0x15e]]
        %v1958 = vstv %s1955
        %v1959 = vmul.f32 %v205, %v1958
        %v1960 = vstv %s1956
        %v1961 = vmul.f32 %v206, %v1960
        %v1962 = vadd.f32 %v1959, %v1961
        %v1963 = vstv %s1957
        %v1964 = vmul.f32 %v207, %v1963
        %v1965 = vadd.f32 %v1962, %v1964
        %v1966 = vmax.f32 %v1965, 0.0
        %v1967 = vrot.slane %v1966, 4
        %v1968 = vmax.f32 %v1966, %v1967
        %v1969 = vrot.slane %v1968, 2
        %v1970 = vmax.f32 %v1968, %v1969
        %v1971 = vrot.slane %v1970, 1
        %v1972 = vmax.f32 %v1970, %v1971
        %v1973 = vadd.f32 %v1954, %v1972
        %1974 = vst [vmem:[%s190 + $0x1e] sm:$0x1] %v1973
        %s1975 = sld [smem:[#allocation6 + $0x1f]]
        %s1976 = sld [smem:[#allocation6 + $0x9f]]
        %s1977 = sld [smem:[#allocation6 + $0x11f]]
        %v1978 = vstv %s1975
        %v1979 = vmul.f32 %v205, %v1978
        %v1980 = vstv %s1976
        %v1981 = vmul.f32 %v206, %v1980
        %v1982 = vadd.f32 %v1979, %v1981
        %v1983 = vstv %s1977
        %v1984 = vmul.f32 %v207, %v1983
        %v1985 = vadd.f32 %v1982, %v1984
        %v1986 = vmax.f32 %v1985, 0.0
        %v1987 = vrot.slane %v1986, 4
        %v1988 = vmax.f32 %v1986, %v1987
        %v1989 = vrot.slane %v1988, 2
        %v1990 = vmax.f32 %v1988, %v1989
        %v1991 = vrot.slane %v1990, 1
        %v1992 = vmax.f32 %v1990, %v1991
        %s1993 = sld [smem:[#allocation6 + $0x3f]]
        %s1994 = sld [smem:[#allocation6 + $0xbf]]
        %s1995 = sld [smem:[#allocation6 + $0x13f]]
        %v1996 = vstv %s1993
        %v1997 = vmul.f32 %v205, %v1996
        %v1998 = vstv %s1994
        %v1999 = vmul.f32 %v206, %v1998
        %v2000 = vadd.f32 %v1997, %v1999
        %v2001 = vstv %s1995
        %v2002 = vmul.f32 %v207, %v2001
        %v2003 = vadd.f32 %v2000, %v2002
        %v2004 = vmax.f32 %v2003, 0.0
        %v2005 = vrot.slane %v2004, 4
        %v2006 = vmax.f32 %v2004, %v2005
        %v2007 = vrot.slane %v2006, 2
        %v2008 = vmax.f32 %v2006, %v2007
        %v2009 = vrot.slane %v2008, 1
        %v2010 = vmax.f32 %v2008, %v2009
        %v2011 = vadd.f32 %v1992, %v2010
        %s2012 = sld [smem:[#allocation6 + $0x5f]]
        %s2013 = sld [smem:[#allocation6 + $0xdf]]
        %s2014 = sld [smem:[#allocation6 + $0x15f]]
        %v2015 = vstv %s2012
        %v2016 = vmul.f32 %v205, %v2015
        %v2017 = vstv %s2013
        %v2018 = vmul.f32 %v206, %v2017
        %v2019 = vadd.f32 %v2016, %v2018
        %v2020 = vstv %s2014
        %v2021 = vmul.f32 %v207, %v2020
        %v2022 = vadd.f32 %v2019, %v2021
        %v2023 = vmax.f32 %v2022, 0.0
        %v2024 = vrot.slane %v2023, 4
        %v2025 = vmax.f32 %v2023, %v2024
        %v2026 = vrot.slane %v2025, 2
        %v2027 = vmax.f32 %v2025, %v2026
        %v2028 = vrot.slane %v2027, 1
        %v2029 = vmax.f32 %v2027, %v2028
        %v2030 = vadd.f32 %v2011, %v2029
        %2031 = vst [vmem:[%s190 + $0x1f] sm:$0x1] %v2030
        %s2032 = sand.u32 %s91, 1
        %s2033 = scalar_lea.sflag [#allocation4], %s2032
        %s2034 = sand.u32 %s91, 1
        %s2035 = smul.addr %s2034, 32
        %s2036 = scalar_lea.vmem [#allocation7], %s2035
        // Predicated region
        $region37: #{tpu_custom_call.1} parent=27 // pred_check
          %p2037 = pneg %p101
        $region38: #{tpu_custom_call.1} parent=27 // pred_check_branch
          %2039 = sbr.rel (%p2037) target = $region40
        $region39: #{tpu_custom_call.1} parent=27 // pred_region
          %s2041 = ssub.s32 512, 512
          %2042 = vsyncadd %s2033, %s2041
          %s2043 = smul.addr %s24, 8
          %s2044 = sadd.s32 %s25, %s2043
          %s2045 = smul.addr %s2044, 128
          %s2046 = scalar_lea.hbm %s2, %s2045
          %s2047 = sshll.u32 %s2036, 4
          %s2048 = int_to_ptr.vmem [resolvable:$true] %s2047
          %2053 = dma.vmem_to_hbm [thread:$0]  %s2048, 512, %s2046, %s2033, 128, 256, 8
        $region40: #{tpu_custom_call.1} parent=27 // pred_fallthru
          _
      $region28: #{tpu_custom_call.1} parent=5 // pred_fallthru
        _
      %p2054 = scmp.le.s32.totalorder 2, %s15
      // Predicated region
      $region41: #{tpu_custom_call.1} parent=5 // pred_check
        %p2055 = pneg %p2054
      $region42: #{tpu_custom_call.1} parent=5 // pred_check_branch
        %2057 = sbr.rel (%p2055) target = $region44
      $region43: #{tpu_custom_call.1} parent=5 // pred_region
        %s2058 = ssub.s32 %s15, 2
        // Predicated region
        $region45: #{tpu_custom_call.1} parent=43 // pred_check
          %p2059 = pneg %p107
        $region46: #{tpu_custom_call.1} parent=43 // pred_check_branch
          %2061 = sbr.rel (%p2059) target = $region48
        $region47: #{tpu_custom_call.1} parent=43 // pred_region
          %s2062 = sand.u32 %s92, 1
          %s2063 = scalar_lea.sflag [#allocation4], %s2062
          %s2064 = sand.u32 %s92, 1
          %s2065 = smul.addr %s2064, 32
          %s2066 = scalar_lea.vmem [#allocation7], %s2065
          %2067 = dma.done %s2063, 512
        $region48: #{tpu_custom_call.1} parent=43 // pred_fallthru
          _
      $region44: #{tpu_custom_call.1} parent=5 // pred_fallthru
        _
    $region6: #{tpu_custom_call.1} parent=1 // loop_footer
      %s19 = sadd.s32 1, %s15
    $region7: #{tpu_custom_call.1} parent=1 // loop_footer_branch
      %14 = sbr.rel target = $region3
    $region8: #{tpu_custom_call.1} parent=1 // loop_exit
      _
    %2068 = vsyncpa [#allocation3], 1
    %s2069 = scalar_lea.sflag [#allocation3], 1
    %2070 = vsyncpa %s2069, 1
    %2071 = vsyncpa [#allocation4], 1
    %s2072 = scalar_lea.sflag [#allocation4], 1
    %2073 = vsyncpa %s2072, 1
    %2074 = vsyncpa [#allocation5], 1
    %s2075 = scalar_lea.sflag [#allocation5], 1
    %2076 = vsyncpa %s2075, 1

</llo_original>
